<compile_context>
chip_gen: v7x
topology: tpu7x:2x2x1
jax: 0.10.0
libtpu: 0.0.40
codegen_flags: <defaults>
</compile_context>

<pallas_src>
import functools

import jax
import jax.numpy as jnp
from jax.experimental import pallas as pl
from jax.experimental.pallas import tpu as pltpu


def _matmul_bias_silu_kernel(p_ref, w_ref, b_ref, o_ref):
    # p_ref: (1, M_TILE, K)   bf16 im2col patches (shared by all output phases)
    # w_ref: (K, NOUT)        bf16 phase-concatenated weight (resident across grid)
    # b_ref: (1, NOUT)        f32 phase-tiled bias
    # o_ref: (1, M_TILE, NOUT) f32
    acc = jnp.dot(p_ref[0], w_ref[...], preferred_element_type=jnp.float32)
    acc = acc + b_ref[...]                       # (1, NOUT) broadcasts over rows
    o_ref[0] = (acc * jax.nn.sigmoid(acc)).astype(o_ref.dtype)


def _round_up(x, m):
    return (x + m - 1) // m * m


@functools.partial(jax.jit, static_argnames=("stride",))
def conv_transpose_silu(x_nchw, w_torch, b, *, stride=2):
    """ConvTranspose2d(stride=S, padding=0) followed by SiLU.

    x_nchw : (N, CIN, H, W) float32
    w_torch: (CIN, COUT, KH, KW)  (PyTorch ConvTranspose2d weight layout)
    b      : (COUT,)
    """
    N, CIN, H, W = x_nchw.shape
    _, COUT, KH, KW = w_torch.shape
    S = stride
    HO = (H - 1) * S + KH
    WO = (W - 1) * S + KW

    # ---- stride-phase (sub-pixel) decomposition ---------------------------------
    # y[S*p+ph, S*q+pw, co] = sum_{t,s,ci} x[p-t, q-s, ci] * w[ci, co, S*t+ph, S*s+pw]
    # All S*S phases read the SAME (TH x TW) window of the original input, so the
    # layer collapses to one matmul (GH*GW, TH*TW*CIN) @ (TH*TW*CIN, S*S*COUT) per
    # batch element; kernel taps that fall outside [0,KH)x[0,KW) get zero weights.
    TH = -(-KH // S)                  # ceil(KH/S) -> 3
    TW = -(-KW // S)
    GH = H + (KH - 1) // S            # common per-phase output grid -> H + 2
    GW = W + (KW - 1) // S
    pad_t, pad_b = TH - 1, (KH - 1) // S
    pad_l, pad_r = TW - 1, (KW - 1) // S

    # NCHW -> NHWC, zero-pad the borders of the ORIGINAL input (no zero dilation).
    x = jnp.transpose(x_nchw, (0, 2, 3, 1))
    x_pad = jnp.pad(x, ((0, 0), (pad_t, pad_b), (pad_l, pad_r), (0, 0)))

    # im2col in the wrapper: TH*TW shifted views, stacked -> (N, GH*GW, TH*TW*CIN).
    cols = []
    for t in range(TH):
        for s in range(TW):
            cols.append(x_pad[:, pad_t - t:pad_t - t + GH,
                                 pad_l - s:pad_l - s + GW, :])
    patches = jnp.stack(cols, axis=3).reshape(N, GH * GW, TH * TW * CIN)

    # Phase-concatenated weight (K, S*S*COUT); invalid taps are exactly zero.
    K = TH * TW * CIN
    NOUT = S * S * COUT
    w_pad = jnp.pad(w_torch, ((0, 0), (0, 0), (0, TH * S - KH), (0, TW * S - KW)))
    w_cat = (w_pad.reshape(CIN, COUT, TH, S, TW, S)
                  .transpose(2, 4, 0, 3, 5, 1)          # (t, s, ci, ph, pw, co)
                  .reshape(K, NOUT))
    b_cat = jnp.tile(b, S * S).reshape(1, NOUT).astype(jnp.float32)

    # bf16 operands, f32 accumulation.
    patches = patches.astype(jnp.bfloat16)
    w_cat = w_cat.astype(jnp.bfloat16)

    # Pad rows to a multiple of the M tile so every output store is dense.
    M = GH * GW
    M_TILE = min(128, _round_up(M, 8))
    M_pad = _round_up(M, M_TILE)
    if M_pad != M:
        patches = jnp.pad(patches, ((0, 0), (0, M_pad - M), (0, 0)))

    out_flat = pl.pallas_call(
        _matmul_bias_silu_kernel,
        out_shape=jax.ShapeDtypeStruct((N, M_pad, NOUT), jnp.float32),
        grid_spec=pltpu.PrefetchScalarGridSpec(
            num_scalar_prefetch=0,
            grid=(N, M_pad // M_TILE),
            in_specs=[
                pl.BlockSpec((1, M_TILE, K), lambda n, m: (n, m, 0)),
                pl.BlockSpec((K, NOUT), lambda n, m: (0, 0)),   # weight stays resident
                pl.BlockSpec((1, NOUT), lambda n, m: (0, 0)),
            ],
            out_specs=pl.BlockSpec((1, M_TILE, NOUT), lambda n, m: (n, m, 0)),
        ),
        compiler_params=pltpu.CompilerParams(
            dimension_semantics=("parallel", "parallel"),
        ),
    )(patches, w_cat, b_cat)

    # Un-interleave the S*S output phases and crop to the true output size.
    out = out_flat[:, :M, :].reshape(N, GH, GW, S, S, COUT)
    out = out.transpose(0, 1, 3, 2, 4, 5).reshape(N, GH * S, GW * S, COUT)
    out = out[:, :HO, :WO, :]
    return jnp.transpose(out, (0, 3, 1, 2))             # NHWC -> NCHW


def _reference(x_nchw, w_torch, b, *, stride=2):
    """Pure-JAX f32 reference: lax dilated conv equivalent of ConvTranspose2d, then SiLU."""
    CIN, COUT, KH, KW = w_torch.shape
    w_oihw = jnp.transpose(w_torch[:, :, ::-1, ::-1], (1, 0, 2, 3))  # (COUT, CIN, KH, KW)
    v1 = jax.lax.conv_general_dilated(
        x_nchw, w_oihw,
        window_strides=(1, 1),
        padding=[(KH - 1, KH - 1), (KW - 1, KW - 1)],
        lhs_dilation=(stride, stride),
        dimension_numbers=("NCHW", "OIHW", "NCHW"),
    ) + b.reshape(1, -1, 1, 1)
    return v1 * jax.nn.sigmoid(v1)


if __name__ == "__main__":
    # Small shapes consistent with the module: channels fixed at 64 -> 256 by __init__,
    # batch/spatial reduced from (6, 64, 32, 32) to (2, 64, 8, 8).
    N, CIN, H, W = 2, 64, 8, 8
    COUT, K = 256, 5

    key = jax.random.PRNGKey(0)
    kx, kw, kb = jax.random.split(key, 3)
    x = jax.random.normal(kx, (N, CIN, H, W), dtype=jnp.float32)
    bound = 1.0 / (CIN * K * K) ** 0.5
    w = jax.random.uniform(kw, (CIN, COUT, K, K), jnp.float32, -bound, bound)
    b = jax.random.uniform(kb, (COUT,), jnp.float32, -bound, bound)

    out = conv_transpose_silu(x, w, b, stride=2)
    out = jax.block_until_ready(out)

    ref = _reference(x, w, b, stride=2)
    assert out.shape == (N, COUT, (H - 1) * 2 + K, (W - 1) * 2 + K), out.shape
    err = jnp.max(jnp.abs(out - ref))
    mean_err = jnp.mean(jnp.abs(out - ref))
    # bf16 operands + f32 accumulation: wider abs tolerance than the pure-f32 path,
    # but still orders of magnitude below any phase/layout bug (which gives O(0.1-1)).
    assert err < 2e-2, f"max abs error {err}"
    assert mean_err < 2e-3, f"mean abs error {mean_err}"

    print("KERNEL_OK")
</pallas_src>

<mosaic_0001>
module attributes {stable_mosaic.version = 11 : i64} {
  func.func @_matmul_bias_silu_kernel(%arg0: i32, %arg1: i32, %arg2: memref<1x104x576xbf16, #tpu.memory_space<vmem>>, %arg3: memref<576x1024xbf16, #tpu.memory_space<vmem>>, %arg4: memref<1x1024xf32, #tpu.memory_space<vmem>>, %arg5: memref<1x104x1024xf32, #tpu.memory_space<vmem>>) attributes {dimension_semantics = [#tpu.dimension_semantics<parallel>, #tpu.dimension_semantics<parallel>], iteration_bounds = array<i64: 2, 1>, scalar_prefetch = 0 : i64, scratch_operands = 0 : i64, tpu.core_type = #tpu.core_type<tc>, window_params = [{transform_indices = @transform_0, window_bounds = array<i64: 1, 104, 576>}, {pipeline_mode = #tpu.pipeline_mode<synchronous>, transform_indices = @transform_1, window_bounds = array<i64: 576, 1024>}, {pipeline_mode = #tpu.pipeline_mode<synchronous>, transform_indices = @transform_2, window_bounds = array<i64: 1, 1024>}, {transform_indices = @transform_3, window_bounds = array<i64: 1, 104, 1024>}]} {
    %c0 = arith.constant 0 : index
    %c0_0 = arith.constant 0 : index
    %c0_1 = arith.constant 0 : index
    %0 = vector.load %arg2[%c0, %c0_0, %c0_1] : memref<1x104x576xbf16, #tpu.memory_space<vmem>>, vector<1x104x576xbf16>
    %1 = vector.shape_cast %0 : vector<1x104x576xbf16> to vector<104x576xbf16>
    %c0_2 = arith.constant 0 : index
    %c0_3 = arith.constant 0 : index
    %2 = vector.load %arg3[%c0_2, %c0_3] : memref<576x1024xbf16, #tpu.memory_space<vmem>>, vector<576x1024xbf16>
    %cst = arith.constant dense<0.000000e+00> : vector<104x1024xf32>
    %3 = tpu.matmul %1, %2, %cst {dimension_numbers = #tpu.dot_dimension_numbers<[1], [0], [0], [1], [0, 0, 1, 1], [], []>} : vector<104x576xbf16>, vector<576x1024xbf16>, vector<104x1024xf32> -> vector<104x1024xf32>
    %c0_4 = arith.constant 0 : index
    %c0_5 = arith.constant 0 : index
    %4 = vector.load %arg4[%c0_4, %c0_5] : memref<1x1024xf32, #tpu.memory_space<vmem>>, vector<1x1024xf32>
    %5 = vector.broadcast %4 : vector<1x1024xf32> to vector<104x1024xf32>
    %6 = arith.addf %3, %5 : vector<104x1024xf32>
    %7 = arith.negf %6 : vector<104x1024xf32>
    %8 = math.exp %7 : vector<104x1024xf32>
    %cst_6 = arith.constant 1.000000e+00 : f32
    %9 = vector.broadcast %cst_6 : f32 to vector<104x1024xf32>
    %10 = arith.addf %9, %8 : vector<104x1024xf32>
    %11 = arith.divf %9, %10 : vector<104x1024xf32>
    %12 = arith.mulf %6, %11 : vector<104x1024xf32>
    %c0_7 = arith.constant 0 : index
    %c0_8 = arith.constant 0 : index
    %c0_9 = arith.constant 0 : index
    %13 = vector.load %arg5[%c0_7, %c0_8, %c0_9] : memref<1x104x1024xf32, #tpu.memory_space<vmem>>, vector<1x104x1024xf32>
    %14 = vector.shape_cast %13 : vector<1x104x1024xf32> to vector<104x1024xf32>
    %15 = vector.shape_cast %12 : vector<104x1024xf32> to vector<1x104x1024xf32>
    tpu.vector_store %arg5[%c0_7, %c0_8, %c0_9], %15 {strides = array<i32>} : memref<1x104x1024xf32, #tpu.memory_space<vmem>>, vector<1x104x1024xf32>,
    return
  }
  func.func @transform_0(%arg0: i32, %arg1: i32) -> (i32, i32, i32) {
    %c0_i32 = arith.constant 0 : i32
    %c0_i32_0 = arith.constant 0 : i32
    return %arg0, %arg1, %c0_i32 : i32, i32, i32
  }
  func.func @transform_1(%arg0: i32, %arg1: i32) -> (i32, i32) {
    %c0_i32 = arith.constant 0 : i32
    %c0_i32_0 = arith.constant 0 : i32
    %c0_i32_1 = arith.constant 0 : i32
    return %c0_i32, %c0_i32_0 : i32, i32
  }
  func.func @transform_2(%arg0: i32, %arg1: i32) -> (i32, i32) {
    %c0_i32 = arith.constant 0 : i32
    %c0_i32_0 = arith.constant 0 : i32
    %c0_i32_1 = arith.constant 0 : i32
    return %c0_i32, %c0_i32_0 : i32, i32
  }
  func.func @transform_3(%arg0: i32, %arg1: i32) -> (i32, i32, i32) {
    %c0_i32 = arith.constant 0 : i32
    %c0_i32_0 = arith.constant 0 : i32
    return %arg0, %arg1, %c0_i32 : i32, i32, i32
  }
}

</mosaic_0001>

<llo_original>
// kernel: conv_transpose_silu.1
$region0: #{conv_transpose_silu.1}
  #allocation0 [shape = 'u32[]', space=smem, size = 0x4, offset = 0x4, fixed_abs, tag = 'smem constant byte address 0x4 - core index']
  #allocation1 [shape = 'u32[144,128]{1,0:T(1,128)}', space=vmem, size = 0x12000, scoped, tag = 'internal scratch']
  %s0 = inlined_call_operand.vmem [shape: bf16[2,104,576], index: 0, kind: input, shape index: {}]
  %s1 = inlined_call_operand.vmem [shape: bf16[576,1024], index: 1, kind: input, shape index: {}]
  %s2 = inlined_call_operand.vmem [shape: f32[1,1024], index: 2, kind: input, shape index: {}]
  %s3 = inlined_call_operand.vmem [shape: f32[2,104,1024], index: 3, kind: output, shape index: {}]
  %s4 = sld [smem:[#allocation0]]
  $region45: #{conv_transpose_silu.1} parent=0
    _
  %s6 = ssub.s32 1, %s4
  %s7 = scalar_select 0, %s6, %s4
  loop: start=0, step=1, limit=4
  $region2: #{conv_transpose_silu.1} parent=0 // loop_pre_header
    _
  $region3: #{conv_transpose_silu.1} parent=0 // loop_header
    %s9 = sphi 0, %s13
    %p10 = scmp.ge.s32.totalorder %s9, 4
    %s16 = sphi 0, %s28
    %s17 = sphi 0, %s24
    %s18 = sphi 0, %s16
    %s19 = sphi 0, %s17
    %s20 = sphi 0, %s18
    %s21 = sphi 0, %s19
    %s33 = sphi 0, %s35
    %s36 = sphi 0, %s33
    %s37 = sphi 0, %s36
    %s53 = sphi 0, %s37
    %s57 = sphi 0, %s57
    %s59 = sphi 0, %s57
    %s60 = sphi 0, %s59
    %s74 = sphi 0, %s60
    %s78 = sphi 0, %s78
    %s80 = sphi 0, %s78
    %s81 = sphi 0, %s80
    %s95 = sphi 0, %s81
    %s103 = sphi 0, %s105
    %s106 = sphi 0, %s103
    %s107 = sphi 0, %s106
    %s123 = sphi 0, %s107
  $region4: #{conv_transpose_silu.1} parent=0 // loop_header_branch
    %12 = sbr.rel (%p10) target = $region8
  $region5: #{conv_transpose_silu.1} parent=0 // loop_body
    %s14 = ssub.s32 %s9, 1
    %s15 = ssub.s32 %s9, 2
    %s22 = sadd.s32 1, %s17
    %p23 = scmp.ge.s32.totalorder %s22, 1
    %s24 = scalar_select %p23, 0, %s22
    %s25 = sadd.s32 1, %s16
    %s26 = scalar_select %p23, %s25, %s16
    %p27 = scmp.ge.s32.totalorder %s26, 2
    %s28 = scalar_select %p27, 0, %s26
    %s29 = ssub.s32 %s16, %s28
    %s30 = ssub.s32 %s17, %s24
    %s31 = sor.u32 %s29, %s30
    %p32 = scmp.eq.s32.totalorder %s31, 0
    %s34 = sadd.s32 %s33, 1
    %s35 = scalar_select %p32, %s33, %s34
    %p38 = pneg %p32
    %p39 = scmp.eq.s32.totalorder %s9, 1
    %p40 = por %p38, %p39
    %p41 = scmp.ne.s32.totalorder %s33, %s36
    %p42 = scmp.eq.s32.totalorder %s9, 0
    %p43 = por %p41, %p42
    %p44 = scmp.ne.s32.totalorder %s33, %s36
    %p45 = scmp.eq.s32.totalorder %s14, 1
    %p46 = por %p44, %p45
    %p47 = scmp.ne.s32.totalorder %s36, %s37
    %p48 = scmp.eq.s32.totalorder %s14, 0
    %p49 = por %p47, %p48
    %p50 = scmp.ne.s32.totalorder %s36, %s37
    %p51 = scmp.eq.s32.totalorder %s15, 1
    %p52 = por %p50, %p51
    %p54 = scmp.ne.s32.totalorder %s37, %s53
    %p55 = scmp.eq.s32.totalorder %s15, 0
    %p56 = por %p54, %p55
    %s58 = sadd.s32 %s57, 1
    %p61 = scmp.eq.s32.totalorder %s9, 1
    %p62 = scmp.ne.s32.totalorder %s57, %s59
    %p63 = scmp.eq.s32.totalorder %s9, 0
    %p64 = por %p62, %p63
    %p65 = scmp.ne.s32.totalorder %s57, %s59
    %p66 = scmp.eq.s32.totalorder %s14, 1
    %p67 = por %p65, %p66
    %p68 = scmp.ne.s32.totalorder %s59, %s60
    %p69 = scmp.eq.s32.totalorder %s14, 0
    %p70 = por %p68, %p69
    %p71 = scmp.ne.s32.totalorder %s59, %s60
    %p72 = scmp.eq.s32.totalorder %s15, 1
    %p73 = por %p71, %p72
    %p75 = scmp.ne.s32.totalorder %s60, %s74
    %p76 = scmp.eq.s32.totalorder %s15, 0
    %p77 = por %p75, %p76
    %s79 = sadd.s32 %s78, 1
    %p82 = scmp.eq.s32.totalorder %s9, 1
    %p83 = scmp.ne.s32.totalorder %s78, %s80
    %p84 = scmp.eq.s32.totalorder %s9, 0
    %p85 = por %p83, %p84
    %p86 = scmp.ne.s32.totalorder %s78, %s80
    %p87 = scmp.eq.s32.totalorder %s14, 1
    %p88 = por %p86, %p87
    %p89 = scmp.ne.s32.totalorder %s80, %s81
    %p90 = scmp.eq.s32.totalorder %s14, 0
    %p91 = por %p89, %p90
    %p92 = scmp.ne.s32.totalorder %s80, %s81
    %p93 = scmp.eq.s32.totalorder %s15, 1
    %p94 = por %p92, %p93
    %p96 = scmp.ne.s32.totalorder %s81, %s95
    %p97 = scmp.eq.s32.totalorder %s15, 0
    %p98 = por %p96, %p97
    %s99 = ssub.s32 %s16, %s28
    %s100 = ssub.s32 %s17, %s24
    %s101 = sor.u32 %s99, %s100
    %p102 = scmp.eq.s32.totalorder %s101, 0
    %s104 = sadd.s32 %s103, 1
    %s105 = scalar_select %p102, %s103, %s104
    %p108 = pneg %p102
    %p109 = scmp.eq.s32.totalorder %s9, 1
    %p110 = por %p108, %p109
    %p111 = scmp.ne.s32.totalorder %s103, %s106
    %p112 = scmp.eq.s32.totalorder %s9, 0
    %p113 = por %p111, %p112
    %p114 = scmp.ne.s32.totalorder %s103, %s106
    %p115 = scmp.eq.s32.totalorder %s14, 1
    %p116 = por %p114, %p115
    %p117 = scmp.ne.s32.totalorder %s106, %s107
    %p118 = scmp.eq.s32.totalorder %s14, 0
    %p119 = por %p117, %p118
    %p120 = scmp.ne.s32.totalorder %s106, %s107
    %p121 = scmp.eq.s32.totalorder %s15, 1
    %p122 = por %p120, %p121
    %p124 = scmp.ne.s32.totalorder %s107, %s123
    %p125 = scmp.eq.s32.totalorder %s15, 0
    %p126 = por %p124, %p125
    %p127 = scmp.le.s32.totalorder 1, %s9
    %p128 = scmp.lt.s32.totalorder %s9, 3
    %p129 = pnand %p127, %p128
    %p130 = pneg %p129
    // Predicated region
    $region9: #{conv_transpose_silu.1} parent=5 // pred_check
      _
    $region10: #{conv_transpose_silu.1} parent=5 // pred_check_branch
      %132 = sbr.rel (%p129) target = $region12
    $region11: #{conv_transpose_silu.1} parent=5 // pred_region
      %s133 = ssub.s32 %s9, 1
      // Predicated region
      $region13: #{conv_transpose_silu.1} parent=11 // pred_check
        %p134 = pneg %p70
      $region14: #{conv_transpose_silu.1} parent=11 // pred_check_branch
        %136 = sbr.rel (%p134) target = $region16
      $region15: #{conv_transpose_silu.1} parent=11 // pred_region
        _
      $region16: #{conv_transpose_silu.1} parent=11 // pred_fallthru
        _
      // Predicated region
      $region17: #{conv_transpose_silu.1} parent=11 // pred_check
        %p137 = pneg %p91
      $region18: #{conv_transpose_silu.1} parent=11 // pred_check_branch
        %139 = sbr.rel (%p137) target = $region20
      $region19: #{conv_transpose_silu.1} parent=11 // pred_region
        _
      $region20: #{conv_transpose_silu.1} parent=11 // pred_fallthru
        _
    $region12: #{conv_transpose_silu.1} parent=5 // pred_fallthru
      _
    %p140 = scmp.lt.s32.totalorder %s9, 2
    // Predicated region
    $region21: #{conv_transpose_silu.1} parent=5 // pred_check
      %p141 = pneg %p140
    $region22: #{conv_transpose_silu.1} parent=5 // pred_check_branch
      %143 = sbr.rel (%p141) target = $region24
    $region23: #{conv_transpose_silu.1} parent=5 // pred_region
      // Predicated region
      $region25: #{conv_transpose_silu.1} parent=23 // pred_check
        %p144 = pneg %p43
      $region26: #{conv_transpose_silu.1} parent=23 // pred_check_branch
        %146 = sbr.rel (%p144) target = $region28
      $region27: #{conv_transpose_silu.1} parent=23 // pred_region
        %s147 = smul.u32 13, %s17
        %p148 = scmp.lt.s32.totalorder %s16, 1
        %s149 = scalar_select %p148, %s16, 1
        %p150 = scmp.lt.s32.totalorder %s147, 12
        %s151 = scalar_select %p150, %s147, 12
        %s152 = smul.addr %s151, 5
        %s153 = smul.addr %s149, 65
        %s154 = sadd.s32 %s152, %s153
        %s155 = smul.addr %s154, 4
        %s156 = scalar_lea.vmem %s0, %s155
        %s157 = smul.u32 13, %s17
      $region28: #{conv_transpose_silu.1} parent=23 // pred_fallthru
        _
    $region24: #{conv_transpose_silu.1} parent=5 // pred_fallthru
      _
    %p158 = scmp.le.s32.totalorder 1, %s9
    %p159 = scmp.lt.s32.totalorder %s9, 3
    %p160 = pnand %p158, %p159
    %p161 = pneg %p160
    // Predicated region
    $region29: #{conv_transpose_silu.1} parent=5 // pred_check
      _
    $region30: #{conv_transpose_silu.1} parent=5 // pred_check_branch
      %163 = sbr.rel (%p160) target = $region32
    $region31: #{conv_transpose_silu.1} parent=5 // pred_region
      %s164 = ssub.s32 %s9, 1
      %s165 = smul.u32 13, %s19
      %p166 = scmp.lt.s32.totalorder %s18, 1
      %s167 = scalar_select %p166, %s18, 1
      %p168 = scmp.lt.s32.totalorder %s165, 12
      %s169 = scalar_select %p168, %s165, 12
      %s170 = smul.addr %s169, 5
      %s171 = smul.addr %s167, 65
      %s172 = sadd.s32 %s170, %s171
      %s173 = smul.addr %s172, 4
      %s174 = scalar_lea.vmem %s0, %s173
      %p175 = pneg %p49
      %p176 = pneg %p46
      %p177 = pneg %p70
      %p178 = pneg %p67
      %p179 = pneg %p91
      %p180 = pneg %p88
      %p181 = pneg %p119
      %p182 = pneg %p116
      %s183 = smul.u32 13, %s19
      %p184 = scmp.lt.s32.totalorder %s18, 1
      %s185 = scalar_select %p184, %s18, 1
      %p186 = scmp.lt.s32.totalorder %s183, 12
      %s187 = scalar_select %p186, %s183, 12
      %s188 = smul.addr %s187, 8
      %s189 = smul.addr %s185, 104
      %s190 = sadd.s32 %s188, %s189
      %s191 = smul.addr %s190, 8
      %s192 = scalar_lea.vmem %s3, %s191
      %s193 = smul.u32 13, %s19
      %p194 = scmp.lt.s32.totalorder %s18, 1
      %s195 = scalar_select %p194, %s18, 1
      %p196 = scmp.lt.s32.totalorder %s193, 12
      %s197 = scalar_select %p196, %s193, 12
      %s198 = smul.addr %s197, 5
      %s199 = smul.addr %s195, 65
      %s200 = sadd.s32 %s198, %s199
      %s201 = smul.addr %s200, 4
      %s202 = scalar_lea.vmem %s0, %s201
      %s203 = smul.u32 13, %s19
      %s204 = smul.u32 13, %s19
      %p205 = scmp.lt.s32.totalorder %s18, 1
      %s206 = scalar_select %p205, %s18, 1
      %p207 = scmp.lt.s32.totalorder %s204, 12
      %s208 = scalar_select %p207, %s204, 12
      %s209 = smul.addr %s208, 8
      %s210 = smul.addr %s206, 104
      %s211 = sadd.s32 %s209, %s210
      %s212 = smul.addr %s211, 8
      %s213 = scalar_lea.vmem %s3, %s212
      %s214 = smul.u32 13, %s19
      %v216 = vld [vmem:[%s202] sm:$0xff]
      %v217 = vld [vmem:[%s202 + $0x8] sm:$0xff]
      %v218 = vld [vmem:[%s202 + $0x10] sm:$0xf]
      %v219 = vld [vmem:[%s202 + $0x14] sm:$0xff]
      %v220 = vld [vmem:[%s202 + $0x1c] sm:$0xff]
      %v221 = vld [vmem:[%s202 + $0x24] sm:$0xf]
      %v222 = vld [vmem:[%s202 + $0x28] sm:$0xff]
      %v223 = vld [vmem:[%s202 + $0x30] sm:$0xff]
      %v224 = vld [vmem:[%s202 + $0x38] sm:$0xf]
      %v225 = vld [vmem:[%s202 + $0x3c] sm:$0xff]
      %v226 = vld [vmem:[%s202 + $0x44] sm:$0xff]
      %v227 = vld [vmem:[%s202 + $0x4c] sm:$0xf]
      %v228 = vld [vmem:[%s202 + $0x50] sm:$0xff]
      %v229 = vld [vmem:[%s202 + $0x58] sm:$0xff]
      %v230 = vld [vmem:[%s202 + $0x60] sm:$0xf]
      %v231 = vld [vmem:[%s202 + $0x64] sm:$0xff]
      %v232 = vld [vmem:[%s202 + $0x6c] sm:$0xff]
      %v233 = vld [vmem:[%s202 + $0x74] sm:$0xf]
      %v234 = vld [vmem:[%s202 + $0x78] sm:$0xff]
      %v235 = vld [vmem:[%s202 + $0x80] sm:$0xff]
      %v236 = vld [vmem:[%s202 + $0x88] sm:$0xf]
      %v237 = vld [vmem:[%s202 + $0x8c] sm:$0xff]
      %v238 = vld [vmem:[%s202 + $0x94] sm:$0xff]
      %v239 = vld [vmem:[%s202 + $0x9c] sm:$0xf]
      %v240 = vld [vmem:[%s202 + $0xa0] sm:$0xff]
      %v241 = vld [vmem:[%s202 + $0xa8] sm:$0xff]
      %v242 = vld [vmem:[%s202 + $0xb0] sm:$0xf]
      %v243 = vld [vmem:[%s202 + $0xb4] sm:$0xff]
      %v244 = vld [vmem:[%s202 + $0xbc] sm:$0xff]
      %v245 = vld [vmem:[%s202 + $0xc4] sm:$0xf]
      %v246 = vld [vmem:[%s202 + $0xc8] sm:$0xff]
      %v247 = vld [vmem:[%s202 + $0xd0] sm:$0xff]
      %v248 = vld [vmem:[%s202 + $0xd8] sm:$0xf]
      %v249 = vld [vmem:[%s202 + $0xdc] sm:$0xff]
      %v250 = vld [vmem:[%s202 + $0xe4] sm:$0xff]
      %v251 = vld [vmem:[%s202 + $0xec] sm:$0xf]
      %v252 = vld [vmem:[%s202 + $0xf0] sm:$0xff]
      %v253 = vld [vmem:[%s202 + $0xf8] sm:$0xff]
      %v254 = vld [vmem:[%s202 + $0x100] sm:$0xf]
      %v255 = vld [vmem:[%s1] sm:$0xff]
      %v256 = vld [vmem:[%s1 + $0x8] sm:$0xff]
      %v257 = vld [vmem:[%s1 + $0x10] sm:$0xff]
      %v258 = vld [vmem:[%s1 + $0x18] sm:$0xff]
      %v259 = vld [vmem:[%s1 + $0x20] sm:$0xff]
      %v260 = vld [vmem:[%s1 + $0x28] sm:$0xff]
      %v261 = vld [vmem:[%s1 + $0x30] sm:$0xff]
      %v262 = vld [vmem:[%s1 + $0x38] sm:$0xff]
      %v263 = vld [vmem:[%s1 + $0x40] sm:$0xff]
      %v264 = vld [vmem:[%s1 + $0x48] sm:$0xff]
      %v265 = vld [vmem:[%s1 + $0x50] sm:$0xff]
      %v266 = vld [vmem:[%s1 + $0x58] sm:$0xff]
      %v267 = vld [vmem:[%s1 + $0x60] sm:$0xff]
      %v268 = vld [vmem:[%s1 + $0x68] sm:$0xff]
      %v269 = vld [vmem:[%s1 + $0x70] sm:$0xff]
      %v270 = vld [vmem:[%s1 + $0x78] sm:$0xff]
      %v271 = vld [vmem:[%s1 + $0x80] sm:$0xff]
      %v272 = vld [vmem:[%s1 + $0x88] sm:$0xff]
      %v273 = vld [vmem:[%s1 + $0x90] sm:$0xff]
      %v274 = vld [vmem:[%s1 + $0x98] sm:$0xff]
      %v275 = vld [vmem:[%s1 + $0xa0] sm:$0xff]
      %v276 = vld [vmem:[%s1 + $0xa8] sm:$0xff]
      %v277 = vld [vmem:[%s1 + $0xb0] sm:$0xff]
      %v278 = vld [vmem:[%s1 + $0xb8] sm:$0xff]
      %v279 = vld [vmem:[%s1 + $0xc0] sm:$0xff]
      %v280 = vld [vmem:[%s1 + $0xc8] sm:$0xff]
      %v281 = vld [vmem:[%s1 + $0xd0] sm:$0xff]
      %v282 = vld [vmem:[%s1 + $0xd8] sm:$0xff]
      %v283 = vld [vmem:[%s1 + $0xe0] sm:$0xff]
      %v284 = vld [vmem:[%s1 + $0xe8] sm:$0xff]
      %v285 = vld [vmem:[%s1 + $0xf0] sm:$0xff]
      %v286 = vld [vmem:[%s1 + $0xf8] sm:$0xff]
      %v287 = vld [vmem:[%s1 + $0x100] sm:$0xff]
      %v288 = vld [vmem:[%s1 + $0x108] sm:$0xff]
      %v289 = vld [vmem:[%s1 + $0x110] sm:$0xff]
      %v290 = vld [vmem:[%s1 + $0x118] sm:$0xff]
      %v291 = vld [vmem:[%s1 + $0x120] sm:$0xff]
      %v292 = vld [vmem:[%s1 + $0x128] sm:$0xff]
      %v293 = vld [vmem:[%s1 + $0x130] sm:$0xff]
      %v294 = vld [vmem:[%s1 + $0x138] sm:$0xff]
      %v295 = vld [vmem:[%s1 + $0x140] sm:$0xff]
      %v296 = vld [vmem:[%s1 + $0x148] sm:$0xff]
      %v297 = vld [vmem:[%s1 + $0x150] sm:$0xff]
      %v298 = vld [vmem:[%s1 + $0x158] sm:$0xff]
      %v299 = vld [vmem:[%s1 + $0x160] sm:$0xff]
      %v300 = vld [vmem:[%s1 + $0x168] sm:$0xff]
      %v301 = vld [vmem:[%s1 + $0x170] sm:$0xff]
      %v302 = vld [vmem:[%s1 + $0x178] sm:$0xff]
      %v303 = vld [vmem:[%s1 + $0x180] sm:$0xff]
      %v304 = vld [vmem:[%s1 + $0x188] sm:$0xff]
      %v305 = vld [vmem:[%s1 + $0x190] sm:$0xff]
      %v306 = vld [vmem:[%s1 + $0x198] sm:$0xff]
      %v307 = vld [vmem:[%s1 + $0x1a0] sm:$0xff]
      %v308 = vld [vmem:[%s1 + $0x1a8] sm:$0xff]
      %v309 = vld [vmem:[%s1 + $0x1b0] sm:$0xff]
      %v310 = vld [vmem:[%s1 + $0x1b8] sm:$0xff]
      %v311 = vld [vmem:[%s1 + $0x1c0] sm:$0xff]
      %v312 = vld [vmem:[%s1 + $0x1c8] sm:$0xff]
      %v313 = vld [vmem:[%s1 + $0x1d0] sm:$0xff]
      %v314 = vld [vmem:[%s1 + $0x1d8] sm:$0xff]
      %v315 = vld [vmem:[%s1 + $0x1e0] sm:$0xff]
      %v316 = vld [vmem:[%s1 + $0x1e8] sm:$0xff]
      %v317 = vld [vmem:[%s1 + $0x1f0] sm:$0xff]
      %v318 = vld [vmem:[%s1 + $0x1f8] sm:$0xff]
      %v319 = vld [vmem:[%s1 + $0x200] sm:$0xff]
      %v320 = vld [vmem:[%s1 + $0x208] sm:$0xff]
      %v321 = vld [vmem:[%s1 + $0x210] sm:$0xff]
      %v322 = vld [vmem:[%s1 + $0x218] sm:$0xff]
      %v323 = vld [vmem:[%s1 + $0x220] sm:$0xff]
      %v324 = vld [vmem:[%s1 + $0x228] sm:$0xff]
      %v325 = vld [vmem:[%s1 + $0x230] sm:$0xff]
      %v326 = vld [vmem:[%s1 + $0x238] sm:$0xff]
      %v327 = vld [vmem:[%s1 + $0x240] sm:$0xff]
      %v328 = vld [vmem:[%s1 + $0x248] sm:$0xff]
      %v329 = vld [vmem:[%s1 + $0x250] sm:$0xff]
      %v330 = vld [vmem:[%s1 + $0x258] sm:$0xff]
      %v331 = vld [vmem:[%s1 + $0x260] sm:$0xff]
      %v332 = vld [vmem:[%s1 + $0x268] sm:$0xff]
      %v333 = vld [vmem:[%s1 + $0x270] sm:$0xff]
      %v334 = vld [vmem:[%s1 + $0x278] sm:$0xff]
      %v335 = vld [vmem:[%s1 + $0x280] sm:$0xff]
      %v336 = vld [vmem:[%s1 + $0x288] sm:$0xff]
      %v337 = vld [vmem:[%s1 + $0x290] sm:$0xff]
      %v338 = vld [vmem:[%s1 + $0x298] sm:$0xff]
      %v339 = vld [vmem:[%s1 + $0x2a0] sm:$0xff]
      %v340 = vld [vmem:[%s1 + $0x2a8] sm:$0xff]
      %v341 = vld [vmem:[%s1 + $0x2b0] sm:$0xff]
      %v342 = vld [vmem:[%s1 + $0x2b8] sm:$0xff]
      %v343 = vld [vmem:[%s1 + $0x2c0] sm:$0xff]
      %v344 = vld [vmem:[%s1 + $0x2c8] sm:$0xff]
      %v345 = vld [vmem:[%s1 + $0x2d0] sm:$0xff]
      %v346 = vld [vmem:[%s1 + $0x2d8] sm:$0xff]
      %v347 = vld [vmem:[%s1 + $0x2e0] sm:$0xff]
      %v348 = vld [vmem:[%s1 + $0x2e8] sm:$0xff]
      %v349 = vld [vmem:[%s1 + $0x2f0] sm:$0xff]
      %v350 = vld [vmem:[%s1 + $0x2f8] sm:$0xff]
      %v351 = vld [vmem:[%s1 + $0x300] sm:$0xff]
      %v352 = vld [vmem:[%s1 + $0x308] sm:$0xff]
      %v353 = vld [vmem:[%s1 + $0x310] sm:$0xff]
      %v354 = vld [vmem:[%s1 + $0x318] sm:$0xff]
      %v355 = vld [vmem:[%s1 + $0x320] sm:$0xff]
      %v356 = vld [vmem:[%s1 + $0x328] sm:$0xff]
      %v357 = vld [vmem:[%s1 + $0x330] sm:$0xff]
      %v358 = vld [vmem:[%s1 + $0x338] sm:$0xff]
      %v359 = vld [vmem:[%s1 + $0x340] sm:$0xff]
      %v360 = vld [vmem:[%s1 + $0x348] sm:$0xff]
      %v361 = vld [vmem:[%s1 + $0x350] sm:$0xff]
      %v362 = vld [vmem:[%s1 + $0x358] sm:$0xff]
      %v363 = vld [vmem:[%s1 + $0x360] sm:$0xff]
      %v364 = vld [vmem:[%s1 + $0x368] sm:$0xff]
      %v365 = vld [vmem:[%s1 + $0x370] sm:$0xff]
      %v366 = vld [vmem:[%s1 + $0x378] sm:$0xff]
      %v367 = vld [vmem:[%s1 + $0x380] sm:$0xff]
      %v368 = vld [vmem:[%s1 + $0x388] sm:$0xff]
      %v369 = vld [vmem:[%s1 + $0x390] sm:$0xff]
      %v370 = vld [vmem:[%s1 + $0x398] sm:$0xff]
      %v371 = vld [vmem:[%s1 + $0x3a0] sm:$0xff]
      %v372 = vld [vmem:[%s1 + $0x3a8] sm:$0xff]
      %v373 = vld [vmem:[%s1 + $0x3b0] sm:$0xff]
      %v374 = vld [vmem:[%s1 + $0x3b8] sm:$0xff]
      %v375 = vld [vmem:[%s1 + $0x3c0] sm:$0xff]
      %v376 = vld [vmem:[%s1 + $0x3c8] sm:$0xff]
      %v377 = vld [vmem:[%s1 + $0x3d0] sm:$0xff]
      %v378 = vld [vmem:[%s1 + $0x3d8] sm:$0xff]
      %v379 = vld [vmem:[%s1 + $0x3e0] sm:$0xff]
      %v380 = vld [vmem:[%s1 + $0x3e8] sm:$0xff]
      %v381 = vld [vmem:[%s1 + $0x3f0] sm:$0xff]
      %v382 = vld [vmem:[%s1 + $0x3f8] sm:$0xff]
      %v383 = vld [vmem:[%s1 + $0x400] sm:$0xff]
      %v384 = vld [vmem:[%s1 + $0x408] sm:$0xff]
      %v385 = vld [vmem:[%s1 + $0x410] sm:$0xff]
      %v386 = vld [vmem:[%s1 + $0x418] sm:$0xff]
      %v387 = vld [vmem:[%s1 + $0x420] sm:$0xff]
      %v388 = vld [vmem:[%s1 + $0x428] sm:$0xff]
      %v389 = vld [vmem:[%s1 + $0x430] sm:$0xff]
      %v390 = vld [vmem:[%s1 + $0x438] sm:$0xff]
      %v391 = vld [vmem:[%s1 + $0x440] sm:$0xff]
      %v392 = vld [vmem:[%s1 + $0x448] sm:$0xff]
      %v393 = vld [vmem:[%s1 + $0x450] sm:$0xff]
      %v394 = vld [vmem:[%s1 + $0x458] sm:$0xff]
      %v395 = vld [vmem:[%s1 + $0x460] sm:$0xff]
      %v396 = vld [vmem:[%s1 + $0x468] sm:$0xff]
      %v397 = vld [vmem:[%s1 + $0x470] sm:$0xff]
      %v398 = vld [vmem:[%s1 + $0x478] sm:$0xff]
      %v399 = vld [vmem:[%s1 + $0x480] sm:$0xff]
      %v400 = vld [vmem:[%s1 + $0x488] sm:$0xff]
      %v401 = vld [vmem:[%s1 + $0x490] sm:$0xff]
      %v402 = vld [vmem:[%s1 + $0x498] sm:$0xff]
      %v403 = vld [vmem:[%s1 + $0x4a0] sm:$0xff]
      %v404 = vld [vmem:[%s1 + $0x4a8] sm:$0xff]
      %v405 = vld [vmem:[%s1 + $0x4b0] sm:$0xff]
      %v406 = vld [vmem:[%s1 + $0x4b8] sm:$0xff]
      %v407 = vld [vmem:[%s1 + $0x4c0] sm:$0xff]
      %v408 = vld [vmem:[%s1 + $0x4c8] sm:$0xff]
      %v409 = vld [vmem:[%s1 + $0x4d0] sm:$0xff]
      %v410 = vld [vmem:[%s1 + $0x4d8] sm:$0xff]
      %v411 = vld [vmem:[%s1 + $0x4e0] sm:$0xff]
      %v412 = vld [vmem:[%s1 + $0x4e8] sm:$0xff]
      %v413 = vld [vmem:[%s1 + $0x4f0] sm:$0xff]
      %v414 = vld [vmem:[%s1 + $0x4f8] sm:$0xff]
      %v415 = vld [vmem:[%s1 + $0x500] sm:$0xff]
      %v416 = vld [vmem:[%s1 + $0x508] sm:$0xff]
      %v417 = vld [vmem:[%s1 + $0x510] sm:$0xff]
      %v418 = vld [vmem:[%s1 + $0x518] sm:$0xff]
      %v419 = vld [vmem:[%s1 + $0x520] sm:$0xff]
      %v420 = vld [vmem:[%s1 + $0x528] sm:$0xff]
      %v421 = vld [vmem:[%s1 + $0x530] sm:$0xff]
      %v422 = vld [vmem:[%s1 + $0x538] sm:$0xff]
      %v423 = vld [vmem:[%s1 + $0x540] sm:$0xff]
      %v424 = vld [vmem:[%s1 + $0x548] sm:$0xff]
      %v425 = vld [vmem:[%s1 + $0x550] sm:$0xff]
      %v426 = vld [vmem:[%s1 + $0x558] sm:$0xff]
      %v427 = vld [vmem:[%s1 + $0x560] sm:$0xff]
      %v428 = vld [vmem:[%s1 + $0x568] sm:$0xff]
      %v429 = vld [vmem:[%s1 + $0x570] sm:$0xff]
      %v430 = vld [vmem:[%s1 + $0x578] sm:$0xff]
      %v431 = vld [vmem:[%s1 + $0x580] sm:$0xff]
      %v432 = vld [vmem:[%s1 + $0x588] sm:$0xff]
      %v433 = vld [vmem:[%s1 + $0x590] sm:$0xff]
      %v434 = vld [vmem:[%s1 + $0x598] sm:$0xff]
      %v435 = vld [vmem:[%s1 + $0x5a0] sm:$0xff]
      %v436 = vld [vmem:[%s1 + $0x5a8] sm:$0xff]
      %v437 = vld [vmem:[%s1 + $0x5b0] sm:$0xff]
      %v438 = vld [vmem:[%s1 + $0x5b8] sm:$0xff]
      %v439 = vld [vmem:[%s1 + $0x5c0] sm:$0xff]
      %v440 = vld [vmem:[%s1 + $0x5c8] sm:$0xff]
      %v441 = vld [vmem:[%s1 + $0x5d0] sm:$0xff]
      %v442 = vld [vmem:[%s1 + $0x5d8] sm:$0xff]
      %v443 = vld [vmem:[%s1 + $0x5e0] sm:$0xff]
      %v444 = vld [vmem:[%s1 + $0x5e8] sm:$0xff]
      %v445 = vld [vmem:[%s1 + $0x5f0] sm:$0xff]
      %v446 = vld [vmem:[%s1 + $0x5f8] sm:$0xff]
      %v447 = vld [vmem:[%s1 + $0x600] sm:$0xff]
      %v448 = vld [vmem:[%s1 + $0x608] sm:$0xff]
      %v449 = vld [vmem:[%s1 + $0x610] sm:$0xff]
      %v450 = vld [vmem:[%s1 + $0x618] sm:$0xff]
      %v451 = vld [vmem:[%s1 + $0x620] sm:$0xff]
      %v452 = vld [vmem:[%s1 + $0x628] sm:$0xff]
      %v453 = vld [vmem:[%s1 + $0x630] sm:$0xff]
      %v454 = vld [vmem:[%s1 + $0x638] sm:$0xff]
      %v455 = vld [vmem:[%s1 + $0x640] sm:$0xff]
      %v456 = vld [vmem:[%s1 + $0x648] sm:$0xff]
      %v457 = vld [vmem:[%s1 + $0x650] sm:$0xff]
      %v458 = vld [vmem:[%s1 + $0x658] sm:$0xff]
      %v459 = vld [vmem:[%s1 + $0x660] sm:$0xff]
      %v460 = vld [vmem:[%s1 + $0x668] sm:$0xff]
      %v461 = vld [vmem:[%s1 + $0x670] sm:$0xff]
      %v462 = vld [vmem:[%s1 + $0x678] sm:$0xff]
      %v463 = vld [vmem:[%s1 + $0x680] sm:$0xff]
      %v464 = vld [vmem:[%s1 + $0x688] sm:$0xff]
      %v465 = vld [vmem:[%s1 + $0x690] sm:$0xff]
      %v466 = vld [vmem:[%s1 + $0x698] sm:$0xff]
      %v467 = vld [vmem:[%s1 + $0x6a0] sm:$0xff]
      %v468 = vld [vmem:[%s1 + $0x6a8] sm:$0xff]
      %v469 = vld [vmem:[%s1 + $0x6b0] sm:$0xff]
      %v470 = vld [vmem:[%s1 + $0x6b8] sm:$0xff]
      %v471 = vld [vmem:[%s1 + $0x6c0] sm:$0xff]
      %v472 = vld [vmem:[%s1 + $0x6c8] sm:$0xff]
      %v473 = vld [vmem:[%s1 + $0x6d0] sm:$0xff]
      %v474 = vld [vmem:[%s1 + $0x6d8] sm:$0xff]
      %v475 = vld [vmem:[%s1 + $0x6e0] sm:$0xff]
      %v476 = vld [vmem:[%s1 + $0x6e8] sm:$0xff]
      %v477 = vld [vmem:[%s1 + $0x6f0] sm:$0xff]
      %v478 = vld [vmem:[%s1 + $0x6f8] sm:$0xff]
      %v479 = vld [vmem:[%s1 + $0x700] sm:$0xff]
      %v480 = vld [vmem:[%s1 + $0x708] sm:$0xff]
      %v481 = vld [vmem:[%s1 + $0x710] sm:$0xff]
      %v482 = vld [vmem:[%s1 + $0x718] sm:$0xff]
      %v483 = vld [vmem:[%s1 + $0x720] sm:$0xff]
      %v484 = vld [vmem:[%s1 + $0x728] sm:$0xff]
      %v485 = vld [vmem:[%s1 + $0x730] sm:$0xff]
      %v486 = vld [vmem:[%s1 + $0x738] sm:$0xff]
      %v487 = vld [vmem:[%s1 + $0x740] sm:$0xff]
      %v488 = vld [vmem:[%s1 + $0x748] sm:$0xff]
      %v489 = vld [vmem:[%s1 + $0x750] sm:$0xff]
      %v490 = vld [vmem:[%s1 + $0x758] sm:$0xff]
      %v491 = vld [vmem:[%s1 + $0x760] sm:$0xff]
      %v492 = vld [vmem:[%s1 + $0x768] sm:$0xff]
      %v493 = vld [vmem:[%s1 + $0x770] sm:$0xff]
      %v494 = vld [vmem:[%s1 + $0x778] sm:$0xff]
      %v495 = vld [vmem:[%s1 + $0x780] sm:$0xff]
      %v496 = vld [vmem:[%s1 + $0x788] sm:$0xff]
      %v497 = vld [vmem:[%s1 + $0x790] sm:$0xff]
      %v498 = vld [vmem:[%s1 + $0x798] sm:$0xff]
      %v499 = vld [vmem:[%s1 + $0x7a0] sm:$0xff]
      %v500 = vld [vmem:[%s1 + $0x7a8] sm:$0xff]
      %v501 = vld [vmem:[%s1 + $0x7b0] sm:$0xff]
      %v502 = vld [vmem:[%s1 + $0x7b8] sm:$0xff]
      %v503 = vld [vmem:[%s1 + $0x7c0] sm:$0xff]
      %v504 = vld [vmem:[%s1 + $0x7c8] sm:$0xff]
      %v505 = vld [vmem:[%s1 + $0x7d0] sm:$0xff]
      %v506 = vld [vmem:[%s1 + $0x7d8] sm:$0xff]
      %v507 = vld [vmem:[%s1 + $0x7e0] sm:$0xff]
      %v508 = vld [vmem:[%s1 + $0x7e8] sm:$0xff]
      %v509 = vld [vmem:[%s1 + $0x7f0] sm:$0xff]
      %v510 = vld [vmem:[%s1 + $0x7f8] sm:$0xff]
      %v511 = vld [vmem:[%s1 + $0x800] sm:$0xff]
      %v512 = vld [vmem:[%s1 + $0x808] sm:$0xff]
      %v513 = vld [vmem:[%s1 + $0x810] sm:$0xff]
      %v514 = vld [vmem:[%s1 + $0x818] sm:$0xff]
      %v515 = vld [vmem:[%s1 + $0x820] sm:$0xff]
      %v516 = vld [vmem:[%s1 + $0x828] sm:$0xff]
      %v517 = vld [vmem:[%s1 + $0x830] sm:$0xff]
      %v518 = vld [vmem:[%s1 + $0x838] sm:$0xff]
      %v519 = vld [vmem:[%s1 + $0x840] sm:$0xff]
      %v520 = vld [vmem:[%s1 + $0x848] sm:$0xff]
      %v521 = vld [vmem:[%s1 + $0x850] sm:$0xff]
      %v522 = vld [vmem:[%s1 + $0x858] sm:$0xff]
      %v523 = vld [vmem:[%s1 + $0x860] sm:$0xff]
      %v524 = vld [vmem:[%s1 + $0x868] sm:$0xff]
      %v525 = vld [vmem:[%s1 + $0x870] sm:$0xff]
      %v526 = vld [vmem:[%s1 + $0x878] sm:$0xff]
      %v527 = vld [vmem:[%s1 + $0x880] sm:$0xff]
      %v528 = vld [vmem:[%s1 + $0x888] sm:$0xff]
      %v529 = vld [vmem:[%s1 + $0x890] sm:$0xff]
      %v530 = vld [vmem:[%s1 + $0x898] sm:$0xff]
      %v531 = vld [vmem:[%s1 + $0x8a0] sm:$0xff]
      %v532 = vld [vmem:[%s1 + $0x8a8] sm:$0xff]
      %v533 = vld [vmem:[%s1 + $0x8b0] sm:$0xff]
      %v534 = vld [vmem:[%s1 + $0x8b8] sm:$0xff]
      %v535 = vld [vmem:[%s1 + $0x8c0] sm:$0xff]
      %v536 = vld [vmem:[%s1 + $0x8c8] sm:$0xff]
      %v537 = vld [vmem:[%s1 + $0x8d0] sm:$0xff]
      %v538 = vld [vmem:[%s1 + $0x8d8] sm:$0xff]
      %v539 = vld [vmem:[%s1 + $0x8e0] sm:$0xff]
      %v540 = vld [vmem:[%s1 + $0x8e8] sm:$0xff]
      %v541 = vld [vmem:[%s1 + $0x8f0] sm:$0xff]
      %v542 = vld [vmem:[%s1 + $0x8f8] sm:$0xff]
      %v543 = vld [vmem:[%s2] sm:$0xff]
      %v545 = vlaneseq
      %v546 = vshrl.u32 %v545, 7
      %v547 = vsub.s32 0, %v546
      %v548 = vrot.slane %v543, %v547
      %v549 = vlaneseq
      %v550 = vshrl.u32 %v549, 7
      %v551 = vsub.s32 1, %v550
      %v552 = vrot.slane %v543, %v551
      %v553 = vlaneseq
      %v554 = vshrl.u32 %v553, 7
      %v555 = vsub.s32 2, %v554
      %v556 = vrot.slane %v543, %v555
      %v557 = vlaneseq
      %v558 = vshrl.u32 %v557, 7
      %v559 = vsub.s32 3, %v558
      %v560 = vrot.slane %v543, %v559
      %v561 = vlaneseq
      %v562 = vshrl.u32 %v561, 7
      %v563 = vsub.s32 4, %v562
      %v564 = vrot.slane %v543, %v563
      %v565 = vlaneseq
      %v566 = vshrl.u32 %v565, 7
      %v567 = vsub.s32 5, %v566
      %v568 = vrot.slane %v543, %v567
      %v569 = vlaneseq
      %v570 = vshrl.u32 %v569, 7
      %v571 = vsub.s32 6, %v570
      %v572 = vrot.slane %v543, %v571
      %v573 = vlaneseq
      %v574 = vshrl.u32 %v573, 7
      %v575 = vsub.s32 7, %v574
      %v576 = vrot.slane %v543, %v575
      %v624 = vunpack.c.l.b16 %v216
      %v625 = vunpack.c.h.b16 %v216
      %v626 = vunpack.c.l.b16 %v217
      %v627 = vunpack.c.h.b16 %v217
      %v628 = vunpack.c.l.b16 %v218
      %v629 = vunpack.c.l.b16 %v219
      %v630 = vunpack.c.h.b16 %v219
      %v631 = vunpack.c.l.b16 %v220
      %v632 = vunpack.c.h.b16 %v220
      %v633 = vunpack.c.l.b16 %v221
      %v634 = vunpack.c.l.b16 %v222
      %v635 = vunpack.c.h.b16 %v222
      %v636 = vunpack.c.l.b16 %v223
      %v637 = vunpack.c.h.b16 %v223
      %v638 = vunpack.c.l.b16 %v224
      %v639 = vunpack.c.l.b16 %v225
      %v640 = vunpack.c.h.b16 %v225
      %v641 = vunpack.c.l.b16 %v226
      %v642 = vunpack.c.h.b16 %v226
      %v643 = vunpack.c.l.b16 %v227
      %v644 = vunpack.c.l.b16 %v228
      %v645 = vunpack.c.h.b16 %v228
      %v646 = vunpack.c.l.b16 %v229
      %v647 = vunpack.c.h.b16 %v229
      %v648 = vunpack.c.l.b16 %v230
      %v649 = vunpack.c.l.b16 %v231
      %v650 = vunpack.c.h.b16 %v231
      %v651 = vunpack.c.l.b16 %v232
      %v652 = vunpack.c.h.b16 %v232
      %v653 = vunpack.c.l.b16 %v233
      %v654 = vunpack.c.l.b16 %v234
      %v655 = vunpack.c.h.b16 %v234
      %v656 = vunpack.c.l.b16 %v235
      %v657 = vunpack.c.h.b16 %v235
      %v658 = vunpack.c.l.b16 %v236
      %v659 = vunpack.c.l.b16 %v237
      %v660 = vunpack.c.h.b16 %v237
      %v661 = vunpack.c.l.b16 %v238
      %v662 = vunpack.c.h.b16 %v238
      %v663 = vunpack.c.l.b16 %v239
      %v664 = vunpack.c.l.b16 %v240
      %v665 = vunpack.c.h.b16 %v240
      %v666 = vunpack.c.l.b16 %v241
      %v667 = vunpack.c.h.b16 %v241
      %v668 = vunpack.c.l.b16 %v242
      %v669 = vunpack.c.l.b16 %v243
      %v670 = vunpack.c.h.b16 %v243
      %v671 = vunpack.c.l.b16 %v244
      %v672 = vunpack.c.h.b16 %v244
      %v673 = vunpack.c.l.b16 %v245
      %v674 = vunpack.c.l.b16 %v246
      %v675 = vunpack.c.h.b16 %v246
      %v676 = vunpack.c.l.b16 %v247
      %v677 = vunpack.c.h.b16 %v247
      %v678 = vunpack.c.l.b16 %v248
      %v679 = vunpack.c.l.b16 %v249
      %v680 = vunpack.c.h.b16 %v249
      %v681 = vunpack.c.l.b16 %v250
      %v682 = vunpack.c.h.b16 %v250
      %v683 = vunpack.c.l.b16 %v251
      %v684 = vunpack.c.l.b16 %v252
      %v685 = vunpack.c.h.b16 %v252
      %v686 = vunpack.c.l.b16 %v253
      %v687 = vunpack.c.h.b16 %v253
      %v688 = vunpack.c.l.b16 %v254
      %v689 = vpack.c.b16 %v629, %v624
      %v690 = vpack.c.b16 %v630, %v625
      %v691 = vpack.c.b16 %v631, %v626
      %v692 = vpack.c.b16 %v632, %v627
      %v693 = vpack.c.b16 %v633, %v628
      %v694 = vpack.c.b16 %v639, %v634
      %v695 = vpack.c.b16 %v640, %v635
      %v696 = vpack.c.b16 %v641, %v636
      %v697 = vpack.c.b16 %v642, %v637
      %v698 = vpack.c.b16 %v643, %v638
      %v699 = vpack.c.b16 %v649, %v644
      %v700 = vpack.c.b16 %v650, %v645
      %v701 = vpack.c.b16 %v651, %v646
      %v702 = vpack.c.b16 %v652, %v647
      %v703 = vpack.c.b16 %v653, %v648
      %v704 = vpack.c.b16 %v659, %v654
      %v705 = vpack.c.b16 %v660, %v655
      %v706 = vpack.c.b16 %v661, %v656
      %v707 = vpack.c.b16 %v662, %v657
      %v708 = vpack.c.b16 %v663, %v658
      %v709 = vpack.c.b16 %v669, %v664
      %v710 = vpack.c.b16 %v670, %v665
      %v711 = vpack.c.b16 %v671, %v666
      %v712 = vpack.c.b16 %v672, %v667
      %v713 = vpack.c.b16 %v673, %v668
      %v714 = vpack.c.b16 %v679, %v674
      %v715 = vpack.c.b16 %v680, %v675
      %v716 = vpack.c.b16 %v681, %v676
      %v717 = vpack.c.b16 %v682, %v677
      %v718 = vpack.c.b16 %v683, %v678
      %v719 = vpack.c.b16 %v684, %v684
      %v720 = vpack.c.b16 %v685, %v685
      %v721 = vpack.c.b16 %v686, %v686
      %v722 = vpack.c.b16 %v687, %v687
      %v723 = vpack.c.b16 %v688, %v688
      %v1040 = vunpack.c.l.b16 %v255
      %v1041 = vunpack.c.h.b16 %v255
      %v1042 = vunpack.c.l.b16 %v256
      %v1043 = vunpack.c.h.b16 %v256
      %v1044 = vunpack.c.l.b16 %v257
      %v1045 = vunpack.c.h.b16 %v257
      %v1046 = vunpack.c.l.b16 %v258
      %v1047 = vunpack.c.h.b16 %v258
      %v1048 = vunpack.c.l.b16 %v259
      %v1049 = vunpack.c.h.b16 %v259
      %v1050 = vunpack.c.l.b16 %v260
      %v1051 = vunpack.c.h.b16 %v260
      %v1052 = vunpack.c.l.b16 %v261
      %v1053 = vunpack.c.h.b16 %v261
      %v1054 = vunpack.c.l.b16 %v262
      %v1055 = vunpack.c.h.b16 %v262
      %v1056 = vunpack.c.l.b16 %v263
      %v1057 = vunpack.c.h.b16 %v263
      %v1058 = vunpack.c.l.b16 %v264
      %v1059 = vunpack.c.h.b16 %v264
      %v1060 = vunpack.c.l.b16 %v265
      %v1061 = vunpack.c.h.b16 %v265
      %v1062 = vunpack.c.l.b16 %v266
      %v1063 = vunpack.c.h.b16 %v266
      %v1064 = vunpack.c.l.b16 %v267
      %v1065 = vunpack.c.h.b16 %v267
      %v1066 = vunpack.c.l.b16 %v268
      %v1067 = vunpack.c.h.b16 %v268
      %v1068 = vunpack.c.l.b16 %v269
      %v1069 = vunpack.c.h.b16 %v269
      %v1070 = vunpack.c.l.b16 %v270
      %v1071 = vunpack.c.h.b16 %v270
      %v1072 = vunpack.c.l.b16 %v271
      %v1073 = vunpack.c.h.b16 %v271
      %v1074 = vunpack.c.l.b16 %v272
      %v1075 = vunpack.c.h.b16 %v272
      %v1076 = vunpack.c.l.b16 %v273
      %v1077 = vunpack.c.h.b16 %v273
      %v1078 = vunpack.c.l.b16 %v274
      %v1079 = vunpack.c.h.b16 %v274
      %v1080 = vunpack.c.l.b16 %v275
      %v1081 = vunpack.c.h.b16 %v275
      %v1082 = vunpack.c.l.b16 %v276
      %v1083 = vunpack.c.h.b16 %v276
      %v1084 = vunpack.c.l.b16 %v277
      %v1085 = vunpack.c.h.b16 %v277
      %v1086 = vunpack.c.l.b16 %v278
      %v1087 = vunpack.c.h.b16 %v278
      %v1088 = vunpack.c.l.b16 %v279
      %v1089 = vunpack.c.h.b16 %v279
      %v1090 = vunpack.c.l.b16 %v280
      %v1091 = vunpack.c.h.b16 %v280
      %v1092 = vunpack.c.l.b16 %v281
      %v1093 = vunpack.c.h.b16 %v281
      %v1094 = vunpack.c.l.b16 %v282
      %v1095 = vunpack.c.h.b16 %v282
      %v1096 = vunpack.c.l.b16 %v283
      %v1097 = vunpack.c.h.b16 %v283
      %v1098 = vunpack.c.l.b16 %v284
      %v1099 = vunpack.c.h.b16 %v284
      %v1100 = vunpack.c.l.b16 %v285
      %v1101 = vunpack.c.h.b16 %v285
      %v1102 = vunpack.c.l.b16 %v286
      %v1103 = vunpack.c.h.b16 %v286
      %v1104 = vunpack.c.l.b16 %v287
      %v1105 = vunpack.c.h.b16 %v287
      %v1106 = vunpack.c.l.b16 %v288
      %v1107 = vunpack.c.h.b16 %v288
      %v1108 = vunpack.c.l.b16 %v289
      %v1109 = vunpack.c.h.b16 %v289
      %v1110 = vunpack.c.l.b16 %v290
      %v1111 = vunpack.c.h.b16 %v290
      %v1112 = vunpack.c.l.b16 %v291
      %v1113 = vunpack.c.h.b16 %v291
      %v1114 = vunpack.c.l.b16 %v292
      %v1115 = vunpack.c.h.b16 %v292
      %v1116 = vunpack.c.l.b16 %v293
      %v1117 = vunpack.c.h.b16 %v293
      %v1118 = vunpack.c.l.b16 %v294
      %v1119 = vunpack.c.h.b16 %v294
      %v1120 = vunpack.c.l.b16 %v295
      %v1121 = vunpack.c.h.b16 %v295
      %v1122 = vunpack.c.l.b16 %v296
      %v1123 = vunpack.c.h.b16 %v296
      %v1124 = vunpack.c.l.b16 %v297
      %v1125 = vunpack.c.h.b16 %v297
      %v1126 = vunpack.c.l.b16 %v298
      %v1127 = vunpack.c.h.b16 %v298
      %v1128 = vunpack.c.l.b16 %v299
      %v1129 = vunpack.c.h.b16 %v299
      %v1130 = vunpack.c.l.b16 %v300
      %v1131 = vunpack.c.h.b16 %v300
      %v1132 = vunpack.c.l.b16 %v301
      %v1133 = vunpack.c.h.b16 %v301
      %v1134 = vunpack.c.l.b16 %v302
      %v1135 = vunpack.c.h.b16 %v302
      %v1136 = vunpack.c.l.b16 %v303
      %v1137 = vunpack.c.h.b16 %v303
      %v1138 = vunpack.c.l.b16 %v304
      %v1139 = vunpack.c.h.b16 %v304
      %v1140 = vunpack.c.l.b16 %v305
      %v1141 = vunpack.c.h.b16 %v305
      %v1142 = vunpack.c.l.b16 %v306
      %v1143 = vunpack.c.h.b16 %v306
      %v1144 = vunpack.c.l.b16 %v307
      %v1145 = vunpack.c.h.b16 %v307
      %v1146 = vunpack.c.l.b16 %v308
      %v1147 = vunpack.c.h.b16 %v308
      %v1148 = vunpack.c.l.b16 %v309
      %v1149 = vunpack.c.h.b16 %v309
      %v1150 = vunpack.c.l.b16 %v310
      %v1151 = vunpack.c.h.b16 %v310
      %v1152 = vunpack.c.l.b16 %v311
      %v1153 = vunpack.c.h.b16 %v311
      %v1154 = vunpack.c.l.b16 %v312
      %v1155 = vunpack.c.h.b16 %v312
      %v1156 = vunpack.c.l.b16 %v313
      %v1157 = vunpack.c.h.b16 %v313
      %v1158 = vunpack.c.l.b16 %v314
      %v1159 = vunpack.c.h.b16 %v314
      %v1160 = vunpack.c.l.b16 %v315
      %v1161 = vunpack.c.h.b16 %v315
      %v1162 = vunpack.c.l.b16 %v316
      %v1163 = vunpack.c.h.b16 %v316
      %v1164 = vunpack.c.l.b16 %v317
      %v1165 = vunpack.c.h.b16 %v317
      %v1166 = vunpack.c.l.b16 %v318
      %v1167 = vunpack.c.h.b16 %v318
      %v1168 = vunpack.c.l.b16 %v319
      %v1169 = vunpack.c.h.b16 %v319
      %v1170 = vunpack.c.l.b16 %v320
      %v1171 = vunpack.c.h.b16 %v320
      %v1172 = vunpack.c.l.b16 %v321
      %v1173 = vunpack.c.h.b16 %v321
      %v1174 = vunpack.c.l.b16 %v322
      %v1175 = vunpack.c.h.b16 %v322
      %v1176 = vunpack.c.l.b16 %v323
      %v1177 = vunpack.c.h.b16 %v323
      %v1178 = vunpack.c.l.b16 %v324
      %v1179 = vunpack.c.h.b16 %v324
      %v1180 = vunpack.c.l.b16 %v325
      %v1181 = vunpack.c.h.b16 %v325
      %v1182 = vunpack.c.l.b16 %v326
      %v1183 = vunpack.c.h.b16 %v326
      %v1184 = vunpack.c.l.b16 %v327
      %v1185 = vunpack.c.h.b16 %v327
      %v1186 = vunpack.c.l.b16 %v328
      %v1187 = vunpack.c.h.b16 %v328
      %v1188 = vunpack.c.l.b16 %v329
      %v1189 = vunpack.c.h.b16 %v329
      %v1190 = vunpack.c.l.b16 %v330
      %v1191 = vunpack.c.h.b16 %v330
      %v1192 = vunpack.c.l.b16 %v331
      %v1193 = vunpack.c.h.b16 %v331
      %v1194 = vunpack.c.l.b16 %v332
      %v1195 = vunpack.c.h.b16 %v332
      %v1196 = vunpack.c.l.b16 %v333
      %v1197 = vunpack.c.h.b16 %v333
      %v1198 = vunpack.c.l.b16 %v334
      %v1199 = vunpack.c.h.b16 %v334
      %v1200 = vunpack.c.l.b16 %v335
      %v1201 = vunpack.c.h.b16 %v335
      %v1202 = vunpack.c.l.b16 %v336
      %v1203 = vunpack.c.h.b16 %v336
      %v1204 = vunpack.c.l.b16 %v337
      %v1205 = vunpack.c.h.b16 %v337
      %v1206 = vunpack.c.l.b16 %v338
      %v1207 = vunpack.c.h.b16 %v338
      %v1208 = vunpack.c.l.b16 %v339
      %v1209 = vunpack.c.h.b16 %v339
      %v1210 = vunpack.c.l.b16 %v340
      %v1211 = vunpack.c.h.b16 %v340
      %v1212 = vunpack.c.l.b16 %v341
      %v1213 = vunpack.c.h.b16 %v341
      %v1214 = vunpack.c.l.b16 %v342
      %v1215 = vunpack.c.h.b16 %v342
      %v1216 = vunpack.c.l.b16 %v343
      %v1217 = vunpack.c.h.b16 %v343
      %v1218 = vunpack.c.l.b16 %v344
      %v1219 = vunpack.c.h.b16 %v344
      %v1220 = vunpack.c.l.b16 %v345
      %v1221 = vunpack.c.h.b16 %v345
      %v1222 = vunpack.c.l.b16 %v346
      %v1223 = vunpack.c.h.b16 %v346
      %v1224 = vunpack.c.l.b16 %v347
      %v1225 = vunpack.c.h.b16 %v347
      %v1226 = vunpack.c.l.b16 %v348
      %v1227 = vunpack.c.h.b16 %v348
      %v1228 = vunpack.c.l.b16 %v349
      %v1229 = vunpack.c.h.b16 %v349
      %v1230 = vunpack.c.l.b16 %v350
      %v1231 = vunpack.c.h.b16 %v350
      %v1232 = vunpack.c.l.b16 %v351
      %v1233 = vunpack.c.h.b16 %v351
      %v1234 = vunpack.c.l.b16 %v352
      %v1235 = vunpack.c.h.b16 %v352
      %v1236 = vunpack.c.l.b16 %v353
      %v1237 = vunpack.c.h.b16 %v353
      %v1238 = vunpack.c.l.b16 %v354
      %v1239 = vunpack.c.h.b16 %v354
      %v1240 = vunpack.c.l.b16 %v355
      %v1241 = vunpack.c.h.b16 %v355
      %v1242 = vunpack.c.l.b16 %v356
      %v1243 = vunpack.c.h.b16 %v356
      %v1244 = vunpack.c.l.b16 %v357
      %v1245 = vunpack.c.h.b16 %v357
      %v1246 = vunpack.c.l.b16 %v358
      %v1247 = vunpack.c.h.b16 %v358
      %v1248 = vunpack.c.l.b16 %v359
      %v1249 = vunpack.c.h.b16 %v359
      %v1250 = vunpack.c.l.b16 %v360
      %v1251 = vunpack.c.h.b16 %v360
      %v1252 = vunpack.c.l.b16 %v361
      %v1253 = vunpack.c.h.b16 %v361
      %v1254 = vunpack.c.l.b16 %v362
      %v1255 = vunpack.c.h.b16 %v362
      %v1256 = vunpack.c.l.b16 %v363
      %v1257 = vunpack.c.h.b16 %v363
      %v1258 = vunpack.c.l.b16 %v364
      %v1259 = vunpack.c.h.b16 %v364
      %v1260 = vunpack.c.l.b16 %v365
      %v1261 = vunpack.c.h.b16 %v365
      %v1262 = vunpack.c.l.b16 %v366
      %v1263 = vunpack.c.h.b16 %v366
      %v1264 = vunpack.c.l.b16 %v367
      %v1265 = vunpack.c.h.b16 %v367
      %v1266 = vunpack.c.l.b16 %v368
      %v1267 = vunpack.c.h.b16 %v368
      %v1268 = vunpack.c.l.b16 %v369
      %v1269 = vunpack.c.h.b16 %v369
      %v1270 = vunpack.c.l.b16 %v370
      %v1271 = vunpack.c.h.b16 %v370
      %v1272 = vunpack.c.l.b16 %v371
      %v1273 = vunpack.c.h.b16 %v371
      %v1274 = vunpack.c.l.b16 %v372
      %v1275 = vunpack.c.h.b16 %v372
      %v1276 = vunpack.c.l.b16 %v373
      %v1277 = vunpack.c.h.b16 %v373
      %v1278 = vunpack.c.l.b16 %v374
      %v1279 = vunpack.c.h.b16 %v374
      %v1280 = vunpack.c.l.b16 %v375
      %v1281 = vunpack.c.h.b16 %v375
      %v1282 = vunpack.c.l.b16 %v376
      %v1283 = vunpack.c.h.b16 %v376
      %v1284 = vunpack.c.l.b16 %v377
      %v1285 = vunpack.c.h.b16 %v377
      %v1286 = vunpack.c.l.b16 %v378
      %v1287 = vunpack.c.h.b16 %v378
      %v1288 = vunpack.c.l.b16 %v379
      %v1289 = vunpack.c.h.b16 %v379
      %v1290 = vunpack.c.l.b16 %v380
      %v1291 = vunpack.c.h.b16 %v380
      %v1292 = vunpack.c.l.b16 %v381
      %v1293 = vunpack.c.h.b16 %v381
      %v1294 = vunpack.c.l.b16 %v382
      %v1295 = vunpack.c.h.b16 %v382
      %v1296 = vunpack.c.l.b16 %v383
      %v1297 = vunpack.c.h.b16 %v383
      %v1298 = vunpack.c.l.b16 %v384
      %v1299 = vunpack.c.h.b16 %v384
      %v1300 = vunpack.c.l.b16 %v385
      %v1301 = vunpack.c.h.b16 %v385
      %v1302 = vunpack.c.l.b16 %v386
      %v1303 = vunpack.c.h.b16 %v386
      %v1304 = vunpack.c.l.b16 %v387
      %v1305 = vunpack.c.h.b16 %v387
      %v1306 = vunpack.c.l.b16 %v388
      %v1307 = vunpack.c.h.b16 %v388
      %v1308 = vunpack.c.l.b16 %v389
      %v1309 = vunpack.c.h.b16 %v389
      %v1310 = vunpack.c.l.b16 %v390
      %v1311 = vunpack.c.h.b16 %v390
      %v1312 = vunpack.c.l.b16 %v391
      %v1313 = vunpack.c.h.b16 %v391
      %v1314 = vunpack.c.l.b16 %v392
      %v1315 = vunpack.c.h.b16 %v392
      %v1316 = vunpack.c.l.b16 %v393
      %v1317 = vunpack.c.h.b16 %v393
      %v1318 = vunpack.c.l.b16 %v394
      %v1319 = vunpack.c.h.b16 %v394
      %v1320 = vunpack.c.l.b16 %v395
      %v1321 = vunpack.c.h.b16 %v395
      %v1322 = vunpack.c.l.b16 %v396
      %v1323 = vunpack.c.h.b16 %v396
      %v1324 = vunpack.c.l.b16 %v397
      %v1325 = vunpack.c.h.b16 %v397
      %v1326 = vunpack.c.l.b16 %v398
      %v1327 = vunpack.c.h.b16 %v398
      %v1328 = vunpack.c.l.b16 %v399
      %v1329 = vunpack.c.h.b16 %v399
      %v1330 = vunpack.c.l.b16 %v400
      %v1331 = vunpack.c.h.b16 %v400
      %v1332 = vunpack.c.l.b16 %v401
      %v1333 = vunpack.c.h.b16 %v401
      %v1334 = vunpack.c.l.b16 %v402
      %v1335 = vunpack.c.h.b16 %v402
      %v1336 = vunpack.c.l.b16 %v403
      %v1337 = vunpack.c.h.b16 %v403
      %v1338 = vunpack.c.l.b16 %v404
      %v1339 = vunpack.c.h.b16 %v404
      %v1340 = vunpack.c.l.b16 %v405
      %v1341 = vunpack.c.h.b16 %v405
      %v1342 = vunpack.c.l.b16 %v406
      %v1343 = vunpack.c.h.b16 %v406
      %v1344 = vunpack.c.l.b16 %v407
      %v1345 = vunpack.c.h.b16 %v407
      %v1346 = vunpack.c.l.b16 %v408
      %v1347 = vunpack.c.h.b16 %v408
      %v1348 = vunpack.c.l.b16 %v409
      %v1349 = vunpack.c.h.b16 %v409
      %v1350 = vunpack.c.l.b16 %v410
      %v1351 = vunpack.c.h.b16 %v410
      %v1352 = vunpack.c.l.b16 %v411
      %v1353 = vunpack.c.h.b16 %v411
      %v1354 = vunpack.c.l.b16 %v412
      %v1355 = vunpack.c.h.b16 %v412
      %v1356 = vunpack.c.l.b16 %v413
      %v1357 = vunpack.c.h.b16 %v413
      %v1358 = vunpack.c.l.b16 %v414
      %v1359 = vunpack.c.h.b16 %v414
      %v1360 = vunpack.c.l.b16 %v415
      %v1361 = vunpack.c.h.b16 %v415
      %v1362 = vunpack.c.l.b16 %v416
      %v1363 = vunpack.c.h.b16 %v416
      %v1364 = vunpack.c.l.b16 %v417
      %v1365 = vunpack.c.h.b16 %v417
      %v1366 = vunpack.c.l.b16 %v418
      %v1367 = vunpack.c.h.b16 %v418
      %v1368 = vunpack.c.l.b16 %v419
      %v1369 = vunpack.c.h.b16 %v419
      %v1370 = vunpack.c.l.b16 %v420
      %v1371 = vunpack.c.h.b16 %v420
      %v1372 = vunpack.c.l.b16 %v421
      %v1373 = vunpack.c.h.b16 %v421
      %v1374 = vunpack.c.l.b16 %v422
      %v1375 = vunpack.c.h.b16 %v422
      %v1376 = vunpack.c.l.b16 %v423
      %v1377 = vunpack.c.h.b16 %v423
      %v1378 = vunpack.c.l.b16 %v424
      %v1379 = vunpack.c.h.b16 %v424
      %v1380 = vunpack.c.l.b16 %v425
      %v1381 = vunpack.c.h.b16 %v425
      %v1382 = vunpack.c.l.b16 %v426
      %v1383 = vunpack.c.h.b16 %v426
      %v1384 = vunpack.c.l.b16 %v427
      %v1385 = vunpack.c.h.b16 %v427
      %v1386 = vunpack.c.l.b16 %v428
      %v1387 = vunpack.c.h.b16 %v428
      %v1388 = vunpack.c.l.b16 %v429
      %v1389 = vunpack.c.h.b16 %v429
      %v1390 = vunpack.c.l.b16 %v430
      %v1391 = vunpack.c.h.b16 %v430
      %v1392 = vunpack.c.l.b16 %v431
      %v1393 = vunpack.c.h.b16 %v431
      %v1394 = vunpack.c.l.b16 %v432
      %v1395 = vunpack.c.h.b16 %v432
      %v1396 = vunpack.c.l.b16 %v433
      %v1397 = vunpack.c.h.b16 %v433
      %v1398 = vunpack.c.l.b16 %v434
      %v1399 = vunpack.c.h.b16 %v434
      %v1400 = vunpack.c.l.b16 %v435
      %v1401 = vunpack.c.h.b16 %v435
      %v1402 = vunpack.c.l.b16 %v436
      %v1403 = vunpack.c.h.b16 %v436
      %v1404 = vunpack.c.l.b16 %v437
      %v1405 = vunpack.c.h.b16 %v437
      %v1406 = vunpack.c.l.b16 %v438
      %v1407 = vunpack.c.h.b16 %v438
      %v1408 = vunpack.c.l.b16 %v439
      %v1409 = vunpack.c.h.b16 %v439
      %v1410 = vunpack.c.l.b16 %v440
      %v1411 = vunpack.c.h.b16 %v440
      %v1412 = vunpack.c.l.b16 %v441
      %v1413 = vunpack.c.h.b16 %v441
      %v1414 = vunpack.c.l.b16 %v442
      %v1415 = vunpack.c.h.b16 %v442
      %v1416 = vunpack.c.l.b16 %v443
      %v1417 = vunpack.c.h.b16 %v443
      %v1418 = vunpack.c.l.b16 %v444
      %v1419 = vunpack.c.h.b16 %v444
      %v1420 = vunpack.c.l.b16 %v445
      %v1421 = vunpack.c.h.b16 %v445
      %v1422 = vunpack.c.l.b16 %v446
      %v1423 = vunpack.c.h.b16 %v446
      %v1424 = vunpack.c.l.b16 %v447
      %v1425 = vunpack.c.h.b16 %v447
      %v1426 = vunpack.c.l.b16 %v448
      %v1427 = vunpack.c.h.b16 %v448
      %v1428 = vunpack.c.l.b16 %v449
      %v1429 = vunpack.c.h.b16 %v449
      %v1430 = vunpack.c.l.b16 %v450
      %v1431 = vunpack.c.h.b16 %v450
      %v1432 = vunpack.c.l.b16 %v451
      %v1433 = vunpack.c.h.b16 %v451
      %v1434 = vunpack.c.l.b16 %v452
      %v1435 = vunpack.c.h.b16 %v452
      %v1436 = vunpack.c.l.b16 %v453
      %v1437 = vunpack.c.h.b16 %v453
      %v1438 = vunpack.c.l.b16 %v454
      %v1439 = vunpack.c.h.b16 %v454
      %v1440 = vunpack.c.l.b16 %v455
      %v1441 = vunpack.c.h.b16 %v455
      %v1442 = vunpack.c.l.b16 %v456
      %v1443 = vunpack.c.h.b16 %v456
      %v1444 = vunpack.c.l.b16 %v457
      %v1445 = vunpack.c.h.b16 %v457
      %v1446 = vunpack.c.l.b16 %v458
      %v1447 = vunpack.c.h.b16 %v458
      %v1448 = vunpack.c.l.b16 %v459
      %v1449 = vunpack.c.h.b16 %v459
      %v1450 = vunpack.c.l.b16 %v460
      %v1451 = vunpack.c.h.b16 %v460
      %v1452 = vunpack.c.l.b16 %v461
      %v1453 = vunpack.c.h.b16 %v461
      %v1454 = vunpack.c.l.b16 %v462
      %v1455 = vunpack.c.h.b16 %v462
      %v1456 = vunpack.c.l.b16 %v463
      %v1457 = vunpack.c.h.b16 %v463
      %v1458 = vunpack.c.l.b16 %v464
      %v1459 = vunpack.c.h.b16 %v464
      %v1460 = vunpack.c.l.b16 %v465
      %v1461 = vunpack.c.h.b16 %v465
      %v1462 = vunpack.c.l.b16 %v466
      %v1463 = vunpack.c.h.b16 %v466
      %v1464 = vunpack.c.l.b16 %v467
      %v1465 = vunpack.c.h.b16 %v467
      %v1466 = vunpack.c.l.b16 %v468
      %v1467 = vunpack.c.h.b16 %v468
      %v1468 = vunpack.c.l.b16 %v469
      %v1469 = vunpack.c.h.b16 %v469
      %v1470 = vunpack.c.l.b16 %v470
      %v1471 = vunpack.c.h.b16 %v470
      %v1472 = vunpack.c.l.b16 %v471
      %v1473 = vunpack.c.h.b16 %v471
      %v1474 = vunpack.c.l.b16 %v472
      %v1475 = vunpack.c.h.b16 %v472
      %v1476 = vunpack.c.l.b16 %v473
      %v1477 = vunpack.c.h.b16 %v473
      %v1478 = vunpack.c.l.b16 %v474
      %v1479 = vunpack.c.h.b16 %v474
      %v1480 = vunpack.c.l.b16 %v475
      %v1481 = vunpack.c.h.b16 %v475
      %v1482 = vunpack.c.l.b16 %v476
      %v1483 = vunpack.c.h.b16 %v476
      %v1484 = vunpack.c.l.b16 %v477
      %v1485 = vunpack.c.h.b16 %v477
      %v1486 = vunpack.c.l.b16 %v478
      %v1487 = vunpack.c.h.b16 %v478
      %v1488 = vunpack.c.l.b16 %v479
      %v1489 = vunpack.c.h.b16 %v479
      %v1490 = vunpack.c.l.b16 %v480
      %v1491 = vunpack.c.h.b16 %v480
      %v1492 = vunpack.c.l.b16 %v481
      %v1493 = vunpack.c.h.b16 %v481
      %v1494 = vunpack.c.l.b16 %v482
      %v1495 = vunpack.c.h.b16 %v482
      %v1496 = vunpack.c.l.b16 %v483
      %v1497 = vunpack.c.h.b16 %v483
      %v1498 = vunpack.c.l.b16 %v484
      %v1499 = vunpack.c.h.b16 %v484
      %v1500 = vunpack.c.l.b16 %v485
      %v1501 = vunpack.c.h.b16 %v485
      %v1502 = vunpack.c.l.b16 %v486
      %v1503 = vunpack.c.h.b16 %v486
      %v1504 = vunpack.c.l.b16 %v487
      %v1505 = vunpack.c.h.b16 %v487
      %v1506 = vunpack.c.l.b16 %v488
      %v1507 = vunpack.c.h.b16 %v488
      %v1508 = vunpack.c.l.b16 %v489
      %v1509 = vunpack.c.h.b16 %v489
      %v1510 = vunpack.c.l.b16 %v490
      %v1511 = vunpack.c.h.b16 %v490
      %v1512 = vunpack.c.l.b16 %v491
      %v1513 = vunpack.c.h.b16 %v491
      %v1514 = vunpack.c.l.b16 %v492
      %v1515 = vunpack.c.h.b16 %v492
      %v1516 = vunpack.c.l.b16 %v493
      %v1517 = vunpack.c.h.b16 %v493
      %v1518 = vunpack.c.l.b16 %v494
      %v1519 = vunpack.c.h.b16 %v494
      %v1520 = vunpack.c.l.b16 %v495
      %v1521 = vunpack.c.h.b16 %v495
      %v1522 = vunpack.c.l.b16 %v496
      %v1523 = vunpack.c.h.b16 %v496
      %v1524 = vunpack.c.l.b16 %v497
      %v1525 = vunpack.c.h.b16 %v497
      %v1526 = vunpack.c.l.b16 %v498
      %v1527 = vunpack.c.h.b16 %v498
      %v1528 = vunpack.c.l.b16 %v499
      %v1529 = vunpack.c.h.b16 %v499
      %v1530 = vunpack.c.l.b16 %v500
      %v1531 = vunpack.c.h.b16 %v500
      %v1532 = vunpack.c.l.b16 %v501
      %v1533 = vunpack.c.h.b16 %v501
      %v1534 = vunpack.c.l.b16 %v502
      %v1535 = vunpack.c.h.b16 %v502
      %v1536 = vunpack.c.l.b16 %v503
      %v1537 = vunpack.c.h.b16 %v503
      %v1538 = vunpack.c.l.b16 %v504
      %v1539 = vunpack.c.h.b16 %v504
      %v1540 = vunpack.c.l.b16 %v505
      %v1541 = vunpack.c.h.b16 %v505
      %v1542 = vunpack.c.l.b16 %v506
      %v1543 = vunpack.c.h.b16 %v506
      %v1544 = vunpack.c.l.b16 %v507
      %v1545 = vunpack.c.h.b16 %v507
      %v1546 = vunpack.c.l.b16 %v508
      %v1547 = vunpack.c.h.b16 %v508
      %v1548 = vunpack.c.l.b16 %v509
      %v1549 = vunpack.c.h.b16 %v509
      %v1550 = vunpack.c.l.b16 %v510
      %v1551 = vunpack.c.h.b16 %v510
      %v1552 = vunpack.c.l.b16 %v511
      %v1553 = vunpack.c.h.b16 %v511
      %v1554 = vunpack.c.l.b16 %v512
      %v1555 = vunpack.c.h.b16 %v512
      %v1556 = vunpack.c.l.b16 %v513
      %v1557 = vunpack.c.h.b16 %v513
      %v1558 = vunpack.c.l.b16 %v514
      %v1559 = vunpack.c.h.b16 %v514
      %v1560 = vunpack.c.l.b16 %v515
      %v1561 = vunpack.c.h.b16 %v515
      %v1562 = vunpack.c.l.b16 %v516
      %v1563 = vunpack.c.h.b16 %v516
      %v1564 = vunpack.c.l.b16 %v517
      %v1565 = vunpack.c.h.b16 %v517
      %v1566 = vunpack.c.l.b16 %v518
      %v1567 = vunpack.c.h.b16 %v518
      %v1568 = vunpack.c.l.b16 %v519
      %v1569 = vunpack.c.h.b16 %v519
      %v1570 = vunpack.c.l.b16 %v520
      %v1571 = vunpack.c.h.b16 %v520
      %v1572 = vunpack.c.l.b16 %v521
      %v1573 = vunpack.c.h.b16 %v521
      %v1574 = vunpack.c.l.b16 %v522
      %v1575 = vunpack.c.h.b16 %v522
      %v1576 = vunpack.c.l.b16 %v523
      %v1577 = vunpack.c.h.b16 %v523
      %v1578 = vunpack.c.l.b16 %v524
      %v1579 = vunpack.c.h.b16 %v524
      %v1580 = vunpack.c.l.b16 %v525
      %v1581 = vunpack.c.h.b16 %v525
      %v1582 = vunpack.c.l.b16 %v526
      %v1583 = vunpack.c.h.b16 %v526
      %v1584 = vunpack.c.l.b16 %v527
      %v1585 = vunpack.c.h.b16 %v527
      %v1586 = vunpack.c.l.b16 %v528
      %v1587 = vunpack.c.h.b16 %v528
      %v1588 = vunpack.c.l.b16 %v529
      %v1589 = vunpack.c.h.b16 %v529
      %v1590 = vunpack.c.l.b16 %v530
      %v1591 = vunpack.c.h.b16 %v530
      %v1592 = vunpack.c.l.b16 %v531
      %v1593 = vunpack.c.h.b16 %v531
      %v1594 = vunpack.c.l.b16 %v532
      %v1595 = vunpack.c.h.b16 %v532
      %v1596 = vunpack.c.l.b16 %v533
      %v1597 = vunpack.c.h.b16 %v533
      %v1598 = vunpack.c.l.b16 %v534
      %v1599 = vunpack.c.h.b16 %v534
      %v1600 = vunpack.c.l.b16 %v535
      %v1601 = vunpack.c.h.b16 %v535
      %v1602 = vunpack.c.l.b16 %v536
      %v1603 = vunpack.c.h.b16 %v536
      %v1604 = vunpack.c.l.b16 %v537
      %v1605 = vunpack.c.h.b16 %v537
      %v1606 = vunpack.c.l.b16 %v538
      %v1607 = vunpack.c.h.b16 %v538
      %v1608 = vunpack.c.l.b16 %v539
      %v1609 = vunpack.c.h.b16 %v539
      %v1610 = vunpack.c.l.b16 %v540
      %v1611 = vunpack.c.h.b16 %v540
      %v1612 = vunpack.c.l.b16 %v541
      %v1613 = vunpack.c.h.b16 %v541
      %v1614 = vunpack.c.l.b16 %v542
      %v1615 = vunpack.c.h.b16 %v542
      %v1616 = vpack.c.b16 %v1048, %v1040
      %v1617 = vpack.c.b16 %v1049, %v1041
      %v1618 = vpack.c.b16 %v1050, %v1042
      %v1619 = vpack.c.b16 %v1051, %v1043
      %v1620 = vpack.c.b16 %v1052, %v1044
      %v1621 = vpack.c.b16 %v1053, %v1045
      %v1622 = vpack.c.b16 %v1054, %v1046
      %v1623 = vpack.c.b16 %v1055, %v1047
      %v1624 = vpack.c.b16 %v1064, %v1056
      %v1625 = vpack.c.b16 %v1065, %v1057
      %v1626 = vpack.c.b16 %v1066, %v1058
      %v1627 = vpack.c.b16 %v1067, %v1059
      %v1628 = vpack.c.b16 %v1068, %v1060
      %v1629 = vpack.c.b16 %v1069, %v1061
      %v1630 = vpack.c.b16 %v1070, %v1062
      %v1631 = vpack.c.b16 %v1071, %v1063
      %v1632 = vpack.c.b16 %v1080, %v1072
      %v1633 = vpack.c.b16 %v1081, %v1073
      %v1634 = vpack.c.b16 %v1082, %v1074
      %v1635 = vpack.c.b16 %v1083, %v1075
      %v1636 = vpack.c.b16 %v1084, %v1076
      %v1637 = vpack.c.b16 %v1085, %v1077
      %v1638 = vpack.c.b16 %v1086, %v1078
      %v1639 = vpack.c.b16 %v1087, %v1079
      %v1640 = vpack.c.b16 %v1096, %v1088
      %v1641 = vpack.c.b16 %v1097, %v1089
      %v1642 = vpack.c.b16 %v1098, %v1090
      %v1643 = vpack.c.b16 %v1099, %v1091
      %v1644 = vpack.c.b16 %v1100, %v1092
      %v1645 = vpack.c.b16 %v1101, %v1093
      %v1646 = vpack.c.b16 %v1102, %v1094
      %v1647 = vpack.c.b16 %v1103, %v1095
      %v1648 = vpack.c.b16 %v1112, %v1104
      %v1649 = vpack.c.b16 %v1113, %v1105
      %v1650 = vpack.c.b16 %v1114, %v1106
      %v1651 = vpack.c.b16 %v1115, %v1107
      %v1652 = vpack.c.b16 %v1116, %v1108
      %v1653 = vpack.c.b16 %v1117, %v1109
      %v1654 = vpack.c.b16 %v1118, %v1110
      %v1655 = vpack.c.b16 %v1119, %v1111
      %v1656 = vpack.c.b16 %v1128, %v1120
      %v1657 = vpack.c.b16 %v1129, %v1121
      %v1658 = vpack.c.b16 %v1130, %v1122
      %v1659 = vpack.c.b16 %v1131, %v1123
      %v1660 = vpack.c.b16 %v1132, %v1124
      %v1661 = vpack.c.b16 %v1133, %v1125
      %v1662 = vpack.c.b16 %v1134, %v1126
      %v1663 = vpack.c.b16 %v1135, %v1127
      %v1664 = vpack.c.b16 %v1144, %v1136
      %v1665 = vpack.c.b16 %v1145, %v1137
      %v1666 = vpack.c.b16 %v1146, %v1138
      %v1667 = vpack.c.b16 %v1147, %v1139
      %v1668 = vpack.c.b16 %v1148, %v1140
      %v1669 = vpack.c.b16 %v1149, %v1141
      %v1670 = vpack.c.b16 %v1150, %v1142
      %v1671 = vpack.c.b16 %v1151, %v1143
      %v1672 = vpack.c.b16 %v1160, %v1152
      %v1673 = vpack.c.b16 %v1161, %v1153
      %v1674 = vpack.c.b16 %v1162, %v1154
      %v1675 = vpack.c.b16 %v1163, %v1155
      %v1676 = vpack.c.b16 %v1164, %v1156
      %v1677 = vpack.c.b16 %v1165, %v1157
      %v1678 = vpack.c.b16 %v1166, %v1158
      %v1679 = vpack.c.b16 %v1167, %v1159
      %v1680 = vpack.c.b16 %v1176, %v1168
      %v1681 = vpack.c.b16 %v1177, %v1169
      %v1682 = vpack.c.b16 %v1178, %v1170
      %v1683 = vpack.c.b16 %v1179, %v1171
      %v1684 = vpack.c.b16 %v1180, %v1172
      %v1685 = vpack.c.b16 %v1181, %v1173
      %v1686 = vpack.c.b16 %v1182, %v1174
      %v1687 = vpack.c.b16 %v1183, %v1175
      %v1688 = vpack.c.b16 %v1192, %v1184
      %v1689 = vpack.c.b16 %v1193, %v1185
      %v1690 = vpack.c.b16 %v1194, %v1186
      %v1691 = vpack.c.b16 %v1195, %v1187
      %v1692 = vpack.c.b16 %v1196, %v1188
      %v1693 = vpack.c.b16 %v1197, %v1189
      %v1694 = vpack.c.b16 %v1198, %v1190
      %v1695 = vpack.c.b16 %v1199, %v1191
      %v1696 = vpack.c.b16 %v1208, %v1200
      %v1697 = vpack.c.b16 %v1209, %v1201
      %v1698 = vpack.c.b16 %v1210, %v1202
      %v1699 = vpack.c.b16 %v1211, %v1203
      %v1700 = vpack.c.b16 %v1212, %v1204
      %v1701 = vpack.c.b16 %v1213, %v1205
      %v1702 = vpack.c.b16 %v1214, %v1206
      %v1703 = vpack.c.b16 %v1215, %v1207
      %v1704 = vpack.c.b16 %v1224, %v1216
      %v1705 = vpack.c.b16 %v1225, %v1217
      %v1706 = vpack.c.b16 %v1226, %v1218
      %v1707 = vpack.c.b16 %v1227, %v1219
      %v1708 = vpack.c.b16 %v1228, %v1220
      %v1709 = vpack.c.b16 %v1229, %v1221
      %v1710 = vpack.c.b16 %v1230, %v1222
      %v1711 = vpack.c.b16 %v1231, %v1223
      %v1712 = vpack.c.b16 %v1240, %v1232
      %v1713 = vpack.c.b16 %v1241, %v1233
      %v1714 = vpack.c.b16 %v1242, %v1234
      %v1715 = vpack.c.b16 %v1243, %v1235
      %v1716 = vpack.c.b16 %v1244, %v1236
      %v1717 = vpack.c.b16 %v1245, %v1237
      %v1718 = vpack.c.b16 %v1246, %v1238
      %v1719 = vpack.c.b16 %v1247, %v1239
      %v1720 = vpack.c.b16 %v1256, %v1248
      %v1721 = vpack.c.b16 %v1257, %v1249
      %v1722 = vpack.c.b16 %v1258, %v1250
      %v1723 = vpack.c.b16 %v1259, %v1251
      %v1724 = vpack.c.b16 %v1260, %v1252
      %v1725 = vpack.c.b16 %v1261, %v1253
      %v1726 = vpack.c.b16 %v1262, %v1254
      %v1727 = vpack.c.b16 %v1263, %v1255
      %v1728 = vpack.c.b16 %v1272, %v1264
      %v1729 = vpack.c.b16 %v1273, %v1265
      %v1730 = vpack.c.b16 %v1274, %v1266
      %v1731 = vpack.c.b16 %v1275, %v1267
      %v1732 = vpack.c.b16 %v1276, %v1268
      %v1733 = vpack.c.b16 %v1277, %v1269
      %v1734 = vpack.c.b16 %v1278, %v1270
      %v1735 = vpack.c.b16 %v1279, %v1271
      %v1736 = vpack.c.b16 %v1288, %v1280
      %v1737 = vpack.c.b16 %v1289, %v1281
      %v1738 = vpack.c.b16 %v1290, %v1282
      %v1739 = vpack.c.b16 %v1291, %v1283
      %v1740 = vpack.c.b16 %v1292, %v1284
      %v1741 = vpack.c.b16 %v1293, %v1285
      %v1742 = vpack.c.b16 %v1294, %v1286
      %v1743 = vpack.c.b16 %v1295, %v1287
      %v1744 = vpack.c.b16 %v1304, %v1296
      %v1745 = vpack.c.b16 %v1305, %v1297
      %v1746 = vpack.c.b16 %v1306, %v1298
      %v1747 = vpack.c.b16 %v1307, %v1299
      %v1748 = vpack.c.b16 %v1308, %v1300
      %v1749 = vpack.c.b16 %v1309, %v1301
      %v1750 = vpack.c.b16 %v1310, %v1302
      %v1751 = vpack.c.b16 %v1311, %v1303
      %v1752 = vpack.c.b16 %v1320, %v1312
      %v1753 = vpack.c.b16 %v1321, %v1313
      %v1754 = vpack.c.b16 %v1322, %v1314
      %v1755 = vpack.c.b16 %v1323, %v1315
      %v1756 = vpack.c.b16 %v1324, %v1316
      %v1757 = vpack.c.b16 %v1325, %v1317
      %v1758 = vpack.c.b16 %v1326, %v1318
      %v1759 = vpack.c.b16 %v1327, %v1319
      %v1760 = vpack.c.b16 %v1336, %v1328
      %v1761 = vpack.c.b16 %v1337, %v1329
      %v1762 = vpack.c.b16 %v1338, %v1330
      %v1763 = vpack.c.b16 %v1339, %v1331
      %v1764 = vpack.c.b16 %v1340, %v1332
      %v1765 = vpack.c.b16 %v1341, %v1333
      %v1766 = vpack.c.b16 %v1342, %v1334
      %v1767 = vpack.c.b16 %v1343, %v1335
      %v1768 = vpack.c.b16 %v1352, %v1344
      %v1769 = vpack.c.b16 %v1353, %v1345
      %v1770 = vpack.c.b16 %v1354, %v1346
      %v1771 = vpack.c.b16 %v1355, %v1347
      %v1772 = vpack.c.b16 %v1356, %v1348
      %v1773 = vpack.c.b16 %v1357, %v1349
      %v1774 = vpack.c.b16 %v1358, %v1350
      %v1775 = vpack.c.b16 %v1359, %v1351
      %v1776 = vpack.c.b16 %v1368, %v1360
      %v1777 = vpack.c.b16 %v1369, %v1361
      %v1778 = vpack.c.b16 %v1370, %v1362
      %v1779 = vpack.c.b16 %v1371, %v1363
      %v1780 = vpack.c.b16 %v1372, %v1364
      %v1781 = vpack.c.b16 %v1373, %v1365
      %v1782 = vpack.c.b16 %v1374, %v1366
      %v1783 = vpack.c.b16 %v1375, %v1367
      %v1784 = vpack.c.b16 %v1384, %v1376
      %v1785 = vpack.c.b16 %v1385, %v1377
      %v1786 = vpack.c.b16 %v1386, %v1378
      %v1787 = vpack.c.b16 %v1387, %v1379
      %v1788 = vpack.c.b16 %v1388, %v1380
      %v1789 = vpack.c.b16 %v1389, %v1381
      %v1790 = vpack.c.b16 %v1390, %v1382
      %v1791 = vpack.c.b16 %v1391, %v1383
      %v1792 = vpack.c.b16 %v1400, %v1392
      %v1793 = vpack.c.b16 %v1401, %v1393
      %v1794 = vpack.c.b16 %v1402, %v1394
      %v1795 = vpack.c.b16 %v1403, %v1395
      %v1796 = vpack.c.b16 %v1404, %v1396
      %v1797 = vpack.c.b16 %v1405, %v1397
      %v1798 = vpack.c.b16 %v1406, %v1398
      %v1799 = vpack.c.b16 %v1407, %v1399
      %v1800 = vpack.c.b16 %v1416, %v1408
      %v1801 = vpack.c.b16 %v1417, %v1409
      %v1802 = vpack.c.b16 %v1418, %v1410
      %v1803 = vpack.c.b16 %v1419, %v1411
      %v1804 = vpack.c.b16 %v1420, %v1412
      %v1805 = vpack.c.b16 %v1421, %v1413
      %v1806 = vpack.c.b16 %v1422, %v1414
      %v1807 = vpack.c.b16 %v1423, %v1415
      %v1808 = vpack.c.b16 %v1432, %v1424
      %v1809 = vpack.c.b16 %v1433, %v1425
      %v1810 = vpack.c.b16 %v1434, %v1426
      %v1811 = vpack.c.b16 %v1435, %v1427
      %v1812 = vpack.c.b16 %v1436, %v1428
      %v1813 = vpack.c.b16 %v1437, %v1429
      %v1814 = vpack.c.b16 %v1438, %v1430
      %v1815 = vpack.c.b16 %v1439, %v1431
      %v1816 = vpack.c.b16 %v1448, %v1440
      %v1817 = vpack.c.b16 %v1449, %v1441
      %v1818 = vpack.c.b16 %v1450, %v1442
      %v1819 = vpack.c.b16 %v1451, %v1443
      %v1820 = vpack.c.b16 %v1452, %v1444
      %v1821 = vpack.c.b16 %v1453, %v1445
      %v1822 = vpack.c.b16 %v1454, %v1446
      %v1823 = vpack.c.b16 %v1455, %v1447
      %v1824 = vpack.c.b16 %v1464, %v1456
      %v1825 = vpack.c.b16 %v1465, %v1457
      %v1826 = vpack.c.b16 %v1466, %v1458
      %v1827 = vpack.c.b16 %v1467, %v1459
      %v1828 = vpack.c.b16 %v1468, %v1460
      %v1829 = vpack.c.b16 %v1469, %v1461
      %v1830 = vpack.c.b16 %v1470, %v1462
      %v1831 = vpack.c.b16 %v1471, %v1463
      %v1832 = vpack.c.b16 %v1480, %v1472
      %v1833 = vpack.c.b16 %v1481, %v1473
      %v1834 = vpack.c.b16 %v1482, %v1474
      %v1835 = vpack.c.b16 %v1483, %v1475
      %v1836 = vpack.c.b16 %v1484, %v1476
      %v1837 = vpack.c.b16 %v1485, %v1477
      %v1838 = vpack.c.b16 %v1486, %v1478
      %v1839 = vpack.c.b16 %v1487, %v1479
      %v1840 = vpack.c.b16 %v1496, %v1488
      %v1841 = vpack.c.b16 %v1497, %v1489
      %v1842 = vpack.c.b16 %v1498, %v1490
      %v1843 = vpack.c.b16 %v1499, %v1491
      %v1844 = vpack.c.b16 %v1500, %v1492
      %v1845 = vpack.c.b16 %v1501, %v1493
      %v1846 = vpack.c.b16 %v1502, %v1494
      %v1847 = vpack.c.b16 %v1503, %v1495
      %v1848 = vpack.c.b16 %v1512, %v1504
      %v1849 = vpack.c.b16 %v1513, %v1505
      %v1850 = vpack.c.b16 %v1514, %v1506
      %v1851 = vpack.c.b16 %v1515, %v1507
      %v1852 = vpack.c.b16 %v1516, %v1508
      %v1853 = vpack.c.b16 %v1517, %v1509
      %v1854 = vpack.c.b16 %v1518, %v1510
      %v1855 = vpack.c.b16 %v1519, %v1511
      %v1856 = vpack.c.b16 %v1528, %v1520
      %v1857 = vpack.c.b16 %v1529, %v1521
      %v1858 = vpack.c.b16 %v1530, %v1522
      %v1859 = vpack.c.b16 %v1531, %v1523
      %v1860 = vpack.c.b16 %v1532, %v1524
      %v1861 = vpack.c.b16 %v1533, %v1525
      %v1862 = vpack.c.b16 %v1534, %v1526
      %v1863 = vpack.c.b16 %v1535, %v1527
      %v1864 = vpack.c.b16 %v1544, %v1536
      %v1865 = vpack.c.b16 %v1545, %v1537
      %v1866 = vpack.c.b16 %v1546, %v1538
      %v1867 = vpack.c.b16 %v1547, %v1539
      %v1868 = vpack.c.b16 %v1548, %v1540
      %v1869 = vpack.c.b16 %v1549, %v1541
      %v1870 = vpack.c.b16 %v1550, %v1542
      %v1871 = vpack.c.b16 %v1551, %v1543
      %v1872 = vpack.c.b16 %v1560, %v1552
      %v1873 = vpack.c.b16 %v1561, %v1553
      %v1874 = vpack.c.b16 %v1562, %v1554
      %v1875 = vpack.c.b16 %v1563, %v1555
      %v1876 = vpack.c.b16 %v1564, %v1556
      %v1877 = vpack.c.b16 %v1565, %v1557
      %v1878 = vpack.c.b16 %v1566, %v1558
      %v1879 = vpack.c.b16 %v1567, %v1559
      %v1880 = vpack.c.b16 %v1576, %v1568
      %v1881 = vpack.c.b16 %v1577, %v1569
      %v1882 = vpack.c.b16 %v1578, %v1570
      %v1883 = vpack.c.b16 %v1579, %v1571
      %v1884 = vpack.c.b16 %v1580, %v1572
      %v1885 = vpack.c.b16 %v1581, %v1573
      %v1886 = vpack.c.b16 %v1582, %v1574
      %v1887 = vpack.c.b16 %v1583, %v1575
      %v1888 = vpack.c.b16 %v1592, %v1584
      %v1889 = vpack.c.b16 %v1593, %v1585
      %v1890 = vpack.c.b16 %v1594, %v1586
      %v1891 = vpack.c.b16 %v1595, %v1587
      %v1892 = vpack.c.b16 %v1596, %v1588
      %v1893 = vpack.c.b16 %v1597, %v1589
      %v1894 = vpack.c.b16 %v1598, %v1590
      %v1895 = vpack.c.b16 %v1599, %v1591
      %v1896 = vpack.c.b16 %v1608, %v1600
      %v1897 = vpack.c.b16 %v1609, %v1601
      %v1898 = vpack.c.b16 %v1610, %v1602
      %v1899 = vpack.c.b16 %v1611, %v1603
      %v1900 = vpack.c.b16 %v1612, %v1604
      %v1901 = vpack.c.b16 %v1613, %v1605
      %v1902 = vpack.c.b16 %v1614, %v1606
      %v1903 = vpack.c.b16 %v1615, %v1607
      %vm2192 = vcmask 523264
      %v2194 = vsel %vm2192, %v693, 0
      %v2197 = vsel %vm2192, %v698, 0
      %v2200 = vsel %vm2192, %v703, 0
      %v2203 = vsel %vm2192, %v708, 0
      %v2206 = vsel %vm2192, %v713, 0
      %v2209 = vsel %vm2192, %v718, 0
      %v2212 = vsel %vm2192, %v723, 0
      %2214 = vmatprep.subr.bf16.mxu0 %v1617
      %2215 = vmatpush1.bf16.msra.mxu0 %v1616
      %2216 = vmatprep.subr.bf16.mxu0 %v1625
      %2217 = vmatpush1.bf16.msra.mxu0 %v1624
      %2218 = vmatprep.subr.bf16.mxu0 %v1633
      %2219 = vmatpush1.bf16.msra.mxu0 %v1632
      %2220 = vmatprep.subr.bf16.mxu0 %v1641
      %2221 = vmatpush1.bf16.msra.mxu0 %v1640
      %2222 = vmatprep.subr.bf16.mxu0 %v1649
      %2223 = vmatpush1.bf16.msra.mxu0 %v1648
      %2224 = vmatprep.subr.bf16.mxu0 %v1657
      %2225 = vmatpush1.bf16.msra.mxu0 %v1656
      %2226 = vmatprep.subr.bf16.mxu0 %v1665
      %2227 = vmatpush1.bf16.msra.mxu0 %v1664
      %2228 = vmatprep.subr.bf16.mxu0 %v1673
      %2229 = vmatpush1.bf16.msra.mxu0 %v1672
      %2230 = vmatprep.subr.bf16.mxu0 %v1681
      %2231 = vmatpush1.bf16.msra.mxu0 %v1680
      %2232 = vmatprep.subr.bf16.mxu0 %v1689
      %2233 = vmatpush1.bf16.msra.mxu0 %v1688
      %2234 = vmatprep.subr.bf16.mxu0 %v1697
      %2235 = vmatpush1.bf16.msra.mxu0 %v1696
      %2236 = vmatprep.subr.bf16.mxu0 %v1705
      %2237 = vmatpush1.bf16.msra.mxu0 %v1704
      %2238 = vmatprep.subr.bf16.mxu0 %v1713
      %2239 = vmatpush1.bf16.msra.mxu0 %v1712
      %2240 = vmatprep.subr.bf16.mxu0 %v1721
      %2241 = vmatpush1.bf16.msra.mxu0 %v1720
      %2242 = vmatprep.subr.bf16.mxu0 %v1729
      %2243 = vmatpush1.bf16.msra.mxu0 %v1728
      %2244 = vmatprep.subr.bf16.mxu0 %v1737
      %2245 = vmatpush1.bf16.msra.mxu0 %v1736
      %2246 = vmatprep.mubr.bf16.mxu0 %v690
      %2247 = vmatmul.mubr.bf16.gmra.mrb[0].mxu0 %v689
      %v2248 = vpop.f32.mrb[0].mxu0
      %v2249 = vadd.f32 %v548, %v2248
      %v2250 = vpop.f32.mrb[0].mxu0
      %v2251 = vadd.f32 %v552, %v2250
      %v2252 = vpop.f32.mrb[0].mxu0
      %v2253 = vadd.f32 %v548, %v2252
      %v2254 = vpop.f32.mrb[0].mxu0
      %v2255 = vadd.f32 %v552, %v2254
      %2256 = vmatprep.mubr.bf16.mxu0 %v695
      %2257 = vmatmul.mubr.bf16.gmra.mrb[0].mxu0 %v694
      %v2258 = vpop.f32.mrb[0].mxu0
      %v2259 = vadd.f32 %v548, %v2258
      %v2260 = vpop.f32.mrb[0].mxu0
      %v2261 = vadd.f32 %v552, %v2260
      %v2262 = vpop.f32.mrb[0].mxu0
      %v2263 = vadd.f32 %v548, %v2262
      %v2264 = vpop.f32.mrb[0].mxu0
      %v2265 = vadd.f32 %v552, %v2264
      %2266 = vmatprep.mubr.bf16.mxu0 %v700
      %2267 = vmatmul.mubr.bf16.gmra.mrb[0].mxu0 %v699
      %v2268 = vpop.f32.mrb[0].mxu0
      %v2269 = vadd.f32 %v548, %v2268
      %v2270 = vpop.f32.mrb[0].mxu0
      %v2271 = vadd.f32 %v552, %v2270
      %v2272 = vpop.f32.mrb[0].mxu0
      %v2273 = vadd.f32 %v548, %v2272
      %v2274 = vpop.f32.mrb[0].mxu0
      %v2275 = vadd.f32 %v552, %v2274
      %2276 = vmatprep.mubr.bf16.mxu0 %v705
      %2277 = vmatmul.mubr.bf16.gmra.mrb[0].mxu0 %v704
      %v2278 = vpop.f32.mrb[0].mxu0
      %v2279 = vadd.f32 %v548, %v2278
      %v2280 = vpop.f32.mrb[0].mxu0
      %v2281 = vadd.f32 %v552, %v2280
      %v2282 = vpop.f32.mrb[0].mxu0
      %v2283 = vadd.f32 %v548, %v2282
      %v2284 = vpop.f32.mrb[0].mxu0
      %v2285 = vadd.f32 %v552, %v2284
      %2286 = vmatprep.mubr.bf16.mxu0 %v710
      %2287 = vmatmul.mubr.bf16.gmra.mrb[0].mxu0 %v709
      %v2288 = vpop.f32.mrb[0].mxu0
      %v2289 = vadd.f32 %v548, %v2288
      %v2290 = vpop.f32.mrb[0].mxu0
      %v2291 = vadd.f32 %v552, %v2290
      %v2292 = vpop.f32.mrb[0].mxu0
      %v2293 = vadd.f32 %v548, %v2292
      %v2294 = vpop.f32.mrb[0].mxu0
      %v2295 = vadd.f32 %v552, %v2294
      %2296 = vmatprep.mubr.bf16.mxu0 %v715
      %2297 = vmatmul.mubr.bf16.gmra.mrb[0].mxu0 %v714
      %v2298 = vpop.f32.mrb[0].mxu0
      %v2299 = vadd.f32 %v548, %v2298
      %v2300 = vpop.f32.mrb[0].mxu0
      %v2301 = vadd.f32 %v552, %v2300
      %v2302 = vpop.f32.mrb[0].mxu0
      %v2303 = vadd.f32 %v548, %v2302
      %v2304 = vpop.f32.mrb[0].mxu0
      %v2305 = vadd.f32 %v552, %v2304
      %2306 = vmatprep.mubr.bf16.mxu0 %v720
      %2307 = vmatmul.mubr.bf16.gmra.mrb[0].mxu0 %v719
      %v2308 = vpop.f32.mrb[0].mxu0
      %v2309 = vadd.f32 %v548, %v2308
      %v2310 = vpop.f32.mrb[0].mxu0
      %v2311 = vadd.f32 %v552, %v2310
      %v2312 = vpop.f32.mrb[0].mxu0
      %v2313 = vpop.f32.mrb[0].mxu0
      %2314 = vdwg.mxu0
      %2315 = vmatprep.subr.bf16.mxu0 %v1745
      %2316 = vmatpush1.bf16.msra.mxu0 %v1744
      %2317 = vmatprep.subr.bf16.mxu0 %v1753
      %2318 = vmatpush1.bf16.msra.mxu0 %v1752
      %2319 = vmatprep.subr.bf16.mxu0 %v1761
      %2320 = vmatpush1.bf16.msra.mxu0 %v1760
      %2321 = vmatprep.subr.bf16.mxu0 %v1769
      %2322 = vmatpush1.bf16.msra.mxu0 %v1768
      %2323 = vmatprep.subr.bf16.mxu0 %v1777
      %2324 = vmatpush1.bf16.msra.mxu0 %v1776
      %2325 = vmatprep.subr.bf16.mxu0 %v1785
      %2326 = vmatpush1.bf16.msra.mxu0 %v1784
      %2327 = vmatprep.subr.bf16.mxu0 %v1793
      %2328 = vmatpush1.bf16.msra.mxu0 %v1792
      %2329 = vmatprep.subr.bf16.mxu0 %v1801
      %2330 = vmatpush1.bf16.msra.mxu0 %v1800
      %2331 = vmatprep.subr.bf16.mxu0 %v1809
      %2332 = vmatpush1.bf16.msra.mxu0 %v1808
      %2333 = vmatprep.subr.bf16.mxu0 %v1817
      %2334 = vmatpush1.bf16.msra.mxu0 %v1816
      %2335 = vmatprep.subr.bf16.mxu0 %v1825
      %2336 = vmatpush1.bf16.msra.mxu0 %v1824
      %2337 = vmatprep.subr.bf16.mxu0 %v1833
      %2338 = vmatpush1.bf16.msra.mxu0 %v1832
      %2339 = vmatprep.subr.bf16.mxu0 %v1841
      %2340 = vmatpush1.bf16.msra.mxu0 %v1840
      %2341 = vmatprep.subr.bf16.mxu0 %v1849
      %2342 = vmatpush1.bf16.msra.mxu0 %v1848
      %2343 = vmatprep.subr.bf16.mxu0 %v1857
      %2344 = vmatpush1.bf16.msra.mxu0 %v1856
      %2345 = vmatprep.subr.bf16.mxu0 %v1865
      %2346 = vmatpush1.bf16.msra.mxu0 %v1864
      %2347 = vmatprep.mubr.bf16.mxu0 %v692
      %2348 = vmatmul.mubr.bf16.gmra.mrb[0].mxu0 %v691
      %v2349 = vpop.f32.mrb[0].mxu0
      %v2350 = vadd.f32 %v2249, %v2349
      %v2351 = vpop.f32.mrb[0].mxu0
      %v2352 = vadd.f32 %v2251, %v2351
      %v2353 = vpop.f32.mrb[0].mxu0
      %v2354 = vadd.f32 %v2253, %v2353
      %v2355 = vpop.f32.mrb[0].mxu0
      %v2356 = vadd.f32 %v2255, %v2355
      %2357 = vmatprep.mubr.bf16.mxu0 %v697
      %2358 = vmatmul.mubr.bf16.gmra.mrb[0].mxu0 %v696
      %v2359 = vpop.f32.mrb[0].mxu0
      %v2360 = vadd.f32 %v2259, %v2359
      %v2361 = vpop.f32.mrb[0].mxu0
      %v2362 = vadd.f32 %v2261, %v2361
      %v2363 = vpop.f32.mrb[0].mxu0
      %v2364 = vadd.f32 %v2263, %v2363
      %v2365 = vpop.f32.mrb[0].mxu0
      %v2366 = vadd.f32 %v2265, %v2365
      %2367 = vmatprep.mubr.bf16.mxu0 %v702
      %2368 = vmatmul.mubr.bf16.gmra.mrb[0].mxu0 %v701
      %v2369 = vpop.f32.mrb[0].mxu0
      %v2370 = vadd.f32 %v2269, %v2369
      %v2371 = vpop.f32.mrb[0].mxu0
      %v2372 = vadd.f32 %v2271, %v2371
      %v2373 = vpop.f32.mrb[0].mxu0
      %v2374 = vadd.f32 %v2273, %v2373
      %v2375 = vpop.f32.mrb[0].mxu0
      %v2376 = vadd.f32 %v2275, %v2375
      %2377 = vmatprep.mubr.bf16.mxu0 %v707
      %2378 = vmatmul.mubr.bf16.gmra.mrb[0].mxu0 %v706
      %v2379 = vpop.f32.mrb[0].mxu0
      %v2380 = vadd.f32 %v2279, %v2379
      %v2381 = vpop.f32.mrb[0].mxu0
      %v2382 = vadd.f32 %v2281, %v2381
      %v2383 = vpop.f32.mrb[0].mxu0
      %v2384 = vadd.f32 %v2283, %v2383
      %v2385 = vpop.f32.mrb[0].mxu0
      %v2386 = vadd.f32 %v2285, %v2385
      %2387 = vmatprep.mubr.bf16.mxu0 %v712
      %2388 = vmatmul.mubr.bf16.gmra.mrb[0].mxu0 %v711
      %v2389 = vpop.f32.mrb[0].mxu0
      %v2390 = vadd.f32 %v2289, %v2389
      %v2391 = vpop.f32.mrb[0].mxu0
      %v2392 = vadd.f32 %v2291, %v2391
      %v2393 = vpop.f32.mrb[0].mxu0
      %v2394 = vadd.f32 %v2293, %v2393
      %v2395 = vpop.f32.mrb[0].mxu0
      %v2396 = vadd.f32 %v2295, %v2395
      %2397 = vmatprep.mubr.bf16.mxu0 %v717
      %2398 = vmatmul.mubr.bf16.gmra.mrb[0].mxu0 %v716
      %v2399 = vpop.f32.mrb[0].mxu0
      %v2400 = vadd.f32 %v2299, %v2399
      %v2401 = vpop.f32.mrb[0].mxu0
      %v2402 = vadd.f32 %v2301, %v2401
      %v2403 = vpop.f32.mrb[0].mxu0
      %v2404 = vadd.f32 %v2303, %v2403
      %v2405 = vpop.f32.mrb[0].mxu0
      %v2406 = vadd.f32 %v2305, %v2405
      %2407 = vmatprep.mubr.bf16.mxu0 %v722
      %2408 = vmatmul.mubr.bf16.gmra.mrb[0].mxu0 %v721
      %v2409 = vpop.f32.mrb[0].mxu0
      %v2410 = vadd.f32 %v2309, %v2409
      %v2411 = vpop.f32.mrb[0].mxu0
      %v2412 = vadd.f32 %v2311, %v2411
      %v2413 = vpop.f32.mrb[0].mxu0
      %v2414 = vpop.f32.mrb[0].mxu0
      %2415 = vdwg.mxu0
      %2416 = vmatprep.subr.bf16.mxu0 %v1873
      %2417 = vmatpush1.bf16.msra.mxu0 %v1872
      %2418 = vmatprep.subr.bf16.mxu0 %v1881
      %2419 = vmatpush1.bf16.msra.mxu0 %v1880
      %2420 = vmatprep.subr.bf16.mxu0 %v1889
      %2421 = vmatpush1.bf16.msra.mxu0 %v1888
      %2422 = vmatprep.subr.bf16.mxu0 %v1897
      %2423 = vmatpush1.bf16.msra.mxu0 %v1896
      %2424 = vmatprep.subr.bf16.mxu0 0
      %2425 = vmatpush1.bf16.msra.mxu0 0
      %2426 = vmatprep.subr.bf16.mxu0 0
      %2427 = vmatpush1.bf16.msra.mxu0 0
      %2428 = vmatprep.subr.bf16.mxu0 0
      %2429 = vmatpush1.bf16.msra.mxu0 0
      %2430 = vmatprep.subr.bf16.mxu0 0
      %2431 = vmatpush1.bf16.msra.mxu0 0
      %2432 = vmatprep.subr.bf16.mxu0 0
      %2433 = vmatpush1.bf16.msra.mxu0 0
      %2434 = vmatprep.subr.bf16.mxu0 0
      %2435 = vmatpush1.bf16.msra.mxu0 0
      %2436 = vmatprep.subr.bf16.mxu0 0
      %2437 = vmatpush1.bf16.msra.mxu0 0
      %2438 = vmatprep.subr.bf16.mxu0 0
      %2439 = vmatpush1.bf16.msra.mxu0 0
      %2440 = vmatprep.subr.bf16.mxu0 0
      %2441 = vmatpush1.bf16.msra.mxu0 0
      %2442 = vmatprep.subr.bf16.mxu0 0
      %2443 = vmatpush1.bf16.msra.mxu0 0
      %2444 = vmatprep.subr.bf16.mxu0 0
      %2445 = vmatpush1.bf16.msra.mxu0 0
      %2446 = vmatprep.subr.bf16.mxu0 0
      %2447 = vmatpush1.bf16.msra.mxu0 0
      %2448 = vmatprep.mubr.bf16.mxu0 0
      %2449 = vmatmul.mubr.bf16.gmra.mrb[0].mxu0 %v2194
      %v2450 = vpop.f32.mrb[0].mxu0
      %v2451 = vadd.f32 %v2350, %v2450
      %v2452 = vpop.f32.mrb[0].mxu0
      %v2453 = vadd.f32 %v2352, %v2452
      %v2454 = vpop.f32.mrb[0].mxu0
      %v2455 = vadd.f32 %v2354, %v2454
      %v2456 = vpop.f32.mrb[0].mxu0
      %v2457 = vadd.f32 %v2356, %v2456
      %2458 = vmatprep.mubr.bf16.mxu0 0
      %2459 = vmatmul.mubr.bf16.gmra.mrb[0].mxu0 %v2197
      %v2460 = vpop.f32.mrb[0].mxu0
      %v2461 = vadd.f32 %v2360, %v2460
      %v2462 = vpop.f32.mrb[0].mxu0
      %v2463 = vadd.f32 %v2362, %v2462
      %v2464 = vpop.f32.mrb[0].mxu0
      %v2465 = vadd.f32 %v2364, %v2464
      %v2466 = vpop.f32.mrb[0].mxu0
      %v2467 = vadd.f32 %v2366, %v2466
      %2468 = vmatprep.mubr.bf16.mxu0 0
      %2469 = vmatmul.mubr.bf16.gmra.mrb[0].mxu0 %v2200
      %v2470 = vpop.f32.mrb[0].mxu0
      %v2471 = vadd.f32 %v2370, %v2470
      %v2472 = vpop.f32.mrb[0].mxu0
      %v2473 = vadd.f32 %v2372, %v2472
      %v2474 = vpop.f32.mrb[0].mxu0
      %v2475 = vadd.f32 %v2374, %v2474
      %v2476 = vpop.f32.mrb[0].mxu0
      %v2477 = vadd.f32 %v2376, %v2476
      %2478 = vmatprep.mubr.bf16.mxu0 0
      %2479 = vmatmul.mubr.bf16.gmra.mrb[0].mxu0 %v2203
      %v2480 = vpop.f32.mrb[0].mxu0
      %v2481 = vadd.f32 %v2380, %v2480
      %v2482 = vpop.f32.mrb[0].mxu0
      %v2483 = vadd.f32 %v2382, %v2482
      %v2484 = vpop.f32.mrb[0].mxu0
      %v2485 = vadd.f32 %v2384, %v2484
      %v2486 = vpop.f32.mrb[0].mxu0
      %v2487 = vadd.f32 %v2386, %v2486
      %2488 = vmatprep.mubr.bf16.mxu0 0
      %2489 = vmatmul.mubr.bf16.gmra.mrb[0].mxu0 %v2206
      %v2490 = vpop.f32.mrb[0].mxu0
      %v2491 = vadd.f32 %v2390, %v2490
      %v2492 = vpop.f32.mrb[0].mxu0
      %v2493 = vadd.f32 %v2392, %v2492
      %v2494 = vpop.f32.mrb[0].mxu0
      %v2495 = vadd.f32 %v2394, %v2494
      %v2496 = vpop.f32.mrb[0].mxu0
      %v2497 = vadd.f32 %v2396, %v2496
      %2498 = vmatprep.mubr.bf16.mxu0 0
      %2499 = vmatmul.mubr.bf16.gmra.mrb[0].mxu0 %v2209
      %v2500 = vpop.f32.mrb[0].mxu0
      %v2501 = vadd.f32 %v2400, %v2500
      %v2502 = vpop.f32.mrb[0].mxu0
      %v2503 = vadd.f32 %v2402, %v2502
      %v2504 = vpop.f32.mrb[0].mxu0
      %v2505 = vadd.f32 %v2404, %v2504
      %v2506 = vpop.f32.mrb[0].mxu0
      %v2507 = vadd.f32 %v2406, %v2506
      %2508 = vmatprep.mubr.bf16.mxu0 0
      %2509 = vmatmul.mubr.bf16.gmra.mrb[0].mxu0 %v2212
      %v2510 = vpop.f32.mrb[0].mxu0
      %v2511 = vadd.f32 %v2410, %v2510
      %v2512 = vpop.f32.mrb[0].mxu0
      %v2513 = vadd.f32 %v2412, %v2512
      %v2514 = vpop.f32.mrb[0].mxu0
      %v2515 = vpop.f32.mrb[0].mxu0
      %2516 = vdwg.mxu0
      %2517 = vmatprep.subr.bf16.mxu0 %v1619
      %2518 = vmatpush1.bf16.msra.mxu0 %v1618
      %2519 = vmatprep.subr.bf16.mxu0 %v1627
      %2520 = vmatpush1.bf16.msra.mxu0 %v1626
      %2521 = vmatprep.subr.bf16.mxu0 %v1635
      %2522 = vmatpush1.bf16.msra.mxu0 %v1634
      %2523 = vmatprep.subr.bf16.mxu0 %v1643
      %2524 = vmatpush1.bf16.msra.mxu0 %v1642
      %2525 = vmatprep.subr.bf16.mxu0 %v1651
      %2526 = vmatpush1.bf16.msra.mxu0 %v1650
      %2527 = vmatprep.subr.bf16.mxu0 %v1659
      %2528 = vmatpush1.bf16.msra.mxu0 %v1658
      %2529 = vmatprep.subr.bf16.mxu0 %v1667
      %2530 = vmatpush1.bf16.msra.mxu0 %v1666
      %2531 = vmatprep.subr.bf16.mxu0 %v1675
      %2532 = vmatpush1.bf16.msra.mxu0 %v1674
      %2533 = vmatprep.subr.bf16.mxu0 %v1683
      %2534 = vmatpush1.bf16.msra.mxu0 %v1682
      %2535 = vmatprep.subr.bf16.mxu0 %v1691
      %2536 = vmatpush1.bf16.msra.mxu0 %v1690
      %2537 = vmatprep.subr.bf16.mxu0 %v1699
      %2538 = vmatpush1.bf16.msra.mxu0 %v1698
      %2539 = vmatprep.subr.bf16.mxu0 %v1707
      %2540 = vmatpush1.bf16.msra.mxu0 %v1706
      %2541 = vmatprep.subr.bf16.mxu0 %v1715
      %2542 = vmatpush1.bf16.msra.mxu0 %v1714
      %2543 = vmatprep.subr.bf16.mxu0 %v1723
      %2544 = vmatpush1.bf16.msra.mxu0 %v1722
      %2545 = vmatprep.subr.bf16.mxu0 %v1731
      %2546 = vmatpush1.bf16.msra.mxu0 %v1730
      %2547 = vmatprep.subr.bf16.mxu0 %v1739
      %2548 = vmatpush1.bf16.msra.mxu0 %v1738
      %2549 = vmatprep.mubr.bf16.mxu0 %v690
      %2550 = vmatmul.mubr.bf16.gmra.mrb[0].mxu0 %v689
      %v2551 = vpop.f32.mrb[0].mxu0
      %v2552 = vadd.f32 %v556, %v2551
      %v2553 = vpop.f32.mrb[0].mxu0
      %v2554 = vadd.f32 %v560, %v2553
      %v2555 = vpop.f32.mrb[0].mxu0
      %v2556 = vadd.f32 %v556, %v2555
      %v2557 = vpop.f32.mrb[0].mxu0
      %v2558 = vadd.f32 %v560, %v2557
      %2559 = vmatprep.mubr.bf16.mxu0 %v695
      %2560 = vmatmul.mubr.bf16.gmra.mrb[0].mxu0 %v694
      %v2561 = vpop.f32.mrb[0].mxu0
      %v2562 = vadd.f32 %v556, %v2561
      %v2563 = vpop.f32.mrb[0].mxu0
      %v2564 = vadd.f32 %v560, %v2563
      %v2565 = vpop.f32.mrb[0].mxu0
      %v2566 = vadd.f32 %v556, %v2565
      %v2567 = vpop.f32.mrb[0].mxu0
      %v2568 = vadd.f32 %v560, %v2567
      %2569 = vmatprep.mubr.bf16.mxu0 %v700
      %2570 = vmatmul.mubr.bf16.gmra.mrb[0].mxu0 %v699
      %v2571 = vpop.f32.mrb[0].mxu0
      %v2572 = vadd.f32 %v556, %v2571
      %v2573 = vpop.f32.mrb[0].mxu0
      %v2574 = vadd.f32 %v560, %v2573
      %v2575 = vpop.f32.mrb[0].mxu0
      %v2576 = vadd.f32 %v556, %v2575
      %v2577 = vpop.f32.mrb[0].mxu0
      %v2578 = vadd.f32 %v560, %v2577
      %2579 = vmatprep.mubr.bf16.mxu0 %v705
      %2580 = vmatmul.mubr.bf16.gmra.mrb[0].mxu0 %v704
      %v2581 = vpop.f32.mrb[0].mxu0
      %v2582 = vadd.f32 %v556, %v2581
      %v2583 = vpop.f32.mrb[0].mxu0
      %v2584 = vadd.f32 %v560, %v2583
      %v2585 = vpop.f32.mrb[0].mxu0
      %v2586 = vadd.f32 %v556, %v2585
      %v2587 = vpop.f32.mrb[0].mxu0
      %v2588 = vadd.f32 %v560, %v2587
      %2589 = vmatprep.mubr.bf16.mxu0 %v710
      %2590 = vmatmul.mubr.bf16.gmra.mrb[0].mxu0 %v709
      %v2591 = vpop.f32.mrb[0].mxu0
      %v2592 = vadd.f32 %v556, %v2591
      %v2593 = vpop.f32.mrb[0].mxu0
      %v2594 = vadd.f32 %v560, %v2593
      %v2595 = vpop.f32.mrb[0].mxu0
      %v2596 = vadd.f32 %v556, %v2595
      %v2597 = vpop.f32.mrb[0].mxu0
      %v2598 = vadd.f32 %v560, %v2597
      %2599 = vmatprep.mubr.bf16.mxu0 %v715
      %2600 = vmatmul.mubr.bf16.gmra.mrb[0].mxu0 %v714
      %v2601 = vpop.f32.mrb[0].mxu0
      %v2602 = vadd.f32 %v556, %v2601
      %v2603 = vpop.f32.mrb[0].mxu0
      %v2604 = vadd.f32 %v560, %v2603
      %v2605 = vpop.f32.mrb[0].mxu0
      %v2606 = vadd.f32 %v556, %v2605
      %v2607 = vpop.f32.mrb[0].mxu0
      %v2608 = vadd.f32 %v560, %v2607
      %2609 = vmatprep.mubr.bf16.mxu0 %v720
      %2610 = vmatmul.mubr.bf16.gmra.mrb[0].mxu0 %v719
      %v2611 = vpop.f32.mrb[0].mxu0
      %v2612 = vadd.f32 %v556, %v2611
      %v2613 = vpop.f32.mrb[0].mxu0
      %v2614 = vadd.f32 %v560, %v2613
      %v2615 = vpop.f32.mrb[0].mxu0
      %v2616 = vpop.f32.mrb[0].mxu0
      %2617 = vdwg.mxu0
      %2618 = vmatprep.subr.bf16.mxu0 %v1747
      %2619 = vmatpush1.bf16.msra.mxu0 %v1746
      %2620 = vmatprep.subr.bf16.mxu0 %v1755
      %2621 = vmatpush1.bf16.msra.mxu0 %v1754
      %2622 = vmatprep.subr.bf16.mxu0 %v1763
      %2623 = vmatpush1.bf16.msra.mxu0 %v1762
      %2624 = vmatprep.subr.bf16.mxu0 %v1771
      %2625 = vmatpush1.bf16.msra.mxu0 %v1770
      %2626 = vmatprep.subr.bf16.mxu0 %v1779
      %2627 = vmatpush1.bf16.msra.mxu0 %v1778
      %2628 = vmatprep.subr.bf16.mxu0 %v1787
      %2629 = vmatpush1.bf16.msra.mxu0 %v1786
      %2630 = vmatprep.subr.bf16.mxu0 %v1795
      %2631 = vmatpush1.bf16.msra.mxu0 %v1794
      %2632 = vmatprep.subr.bf16.mxu0 %v1803
      %2633 = vmatpush1.bf16.msra.mxu0 %v1802
      %2634 = vmatprep.subr.bf16.mxu0 %v1811
      %2635 = vmatpush1.bf16.msra.mxu0 %v1810
      %2636 = vmatprep.subr.bf16.mxu0 %v1819
      %2637 = vmatpush1.bf16.msra.mxu0 %v1818
      %2638 = vmatprep.subr.bf16.mxu0 %v1827
      %2639 = vmatpush1.bf16.msra.mxu0 %v1826
      %2640 = vmatprep.subr.bf16.mxu0 %v1835
      %2641 = vmatpush1.bf16.msra.mxu0 %v1834
      %2642 = vmatprep.subr.bf16.mxu0 %v1843
      %2643 = vmatpush1.bf16.msra.mxu0 %v1842
      %2644 = vmatprep.subr.bf16.mxu0 %v1851
      %2645 = vmatpush1.bf16.msra.mxu0 %v1850
      %2646 = vmatprep.subr.bf16.mxu0 %v1859
      %2647 = vmatpush1.bf16.msra.mxu0 %v1858
      %2648 = vmatprep.subr.bf16.mxu0 %v1867
      %2649 = vmatpush1.bf16.msra.mxu0 %v1866
      %2650 = vmatprep.mubr.bf16.mxu0 %v692
      %2651 = vmatmul.mubr.bf16.gmra.mrb[0].mxu0 %v691
      %v2652 = vpop.f32.mrb[0].mxu0
      %v2653 = vadd.f32 %v2552, %v2652
      %v2654 = vpop.f32.mrb[0].mxu0
      %v2655 = vadd.f32 %v2554, %v2654
      %v2656 = vpop.f32.mrb[0].mxu0
      %v2657 = vadd.f32 %v2556, %v2656
      %v2658 = vpop.f32.mrb[0].mxu0
      %v2659 = vadd.f32 %v2558, %v2658
      %2660 = vmatprep.mubr.bf16.mxu0 %v697
      %2661 = vmatmul.mubr.bf16.gmra.mrb[0].mxu0 %v696
      %v2662 = vpop.f32.mrb[0].mxu0
      %v2663 = vadd.f32 %v2562, %v2662
      %v2664 = vpop.f32.mrb[0].mxu0
      %v2665 = vadd.f32 %v2564, %v2664
      %v2666 = vpop.f32.mrb[0].mxu0
      %v2667 = vadd.f32 %v2566, %v2666
      %v2668 = vpop.f32.mrb[0].mxu0
      %v2669 = vadd.f32 %v2568, %v2668
      %2670 = vmatprep.mubr.bf16.mxu0 %v702
      %2671 = vmatmul.mubr.bf16.gmra.mrb[0].mxu0 %v701
      %v2672 = vpop.f32.mrb[0].mxu0
      %v2673 = vadd.f32 %v2572, %v2672
      %v2674 = vpop.f32.mrb[0].mxu0
      %v2675 = vadd.f32 %v2574, %v2674
      %v2676 = vpop.f32.mrb[0].mxu0
      %v2677 = vadd.f32 %v2576, %v2676
      %v2678 = vpop.f32.mrb[0].mxu0
      %v2679 = vadd.f32 %v2578, %v2678
      %2680 = vmatprep.mubr.bf16.mxu0 %v707
      %2681 = vmatmul.mubr.bf16.gmra.mrb[0].mxu0 %v706
      %v2682 = vpop.f32.mrb[0].mxu0
      %v2683 = vadd.f32 %v2582, %v2682
      %v2684 = vpop.f32.mrb[0].mxu0
      %v2685 = vadd.f32 %v2584, %v2684
      %v2686 = vpop.f32.mrb[0].mxu0
      %v2687 = vadd.f32 %v2586, %v2686
      %v2688 = vpop.f32.mrb[0].mxu0
      %v2689 = vadd.f32 %v2588, %v2688
      %2690 = vmatprep.mubr.bf16.mxu0 %v712
      %2691 = vmatmul.mubr.bf16.gmra.mrb[0].mxu0 %v711
      %v2692 = vpop.f32.mrb[0].mxu0
      %v2693 = vadd.f32 %v2592, %v2692
      %v2694 = vpop.f32.mrb[0].mxu0
      %v2695 = vadd.f32 %v2594, %v2694
      %v2696 = vpop.f32.mrb[0].mxu0
      %v2697 = vadd.f32 %v2596, %v2696
      %v2698 = vpop.f32.mrb[0].mxu0
      %v2699 = vadd.f32 %v2598, %v2698
      %2700 = vmatprep.mubr.bf16.mxu0 %v717
      %2701 = vmatmul.mubr.bf16.gmra.mrb[0].mxu0 %v716
      %v2702 = vpop.f32.mrb[0].mxu0
      %v2703 = vadd.f32 %v2602, %v2702
      %v2704 = vpop.f32.mrb[0].mxu0
      %v2705 = vadd.f32 %v2604, %v2704
      %v2706 = vpop.f32.mrb[0].mxu0
      %v2707 = vadd.f32 %v2606, %v2706
      %v2708 = vpop.f32.mrb[0].mxu0
      %v2709 = vadd.f32 %v2608, %v2708
      %2710 = vmatprep.mubr.bf16.mxu0 %v722
      %2711 = vmatmul.mubr.bf16.gmra.mrb[0].mxu0 %v721
      %v2712 = vpop.f32.mrb[0].mxu0
      %v2713 = vadd.f32 %v2612, %v2712
      %v2714 = vpop.f32.mrb[0].mxu0
      %v2715 = vadd.f32 %v2614, %v2714
      %v2716 = vpop.f32.mrb[0].mxu0
      %v2717 = vpop.f32.mrb[0].mxu0
      %2718 = vdwg.mxu0
      %2719 = vmatprep.subr.bf16.mxu0 %v1875
      %2720 = vmatpush1.bf16.msra.mxu0 %v1874
      %2721 = vmatprep.subr.bf16.mxu0 %v1883
      %2722 = vmatpush1.bf16.msra.mxu0 %v1882
      %2723 = vmatprep.subr.bf16.mxu0 %v1891
      %2724 = vmatpush1.bf16.msra.mxu0 %v1890
      %2725 = vmatprep.subr.bf16.mxu0 %v1899
      %2726 = vmatpush1.bf16.msra.mxu0 %v1898
      %2727 = vmatprep.subr.bf16.mxu0 0
      %2728 = vmatpush1.bf16.msra.mxu0 0
      %2729 = vmatprep.subr.bf16.mxu0 0
      %2730 = vmatpush1.bf16.msra.mxu0 0
      %2731 = vmatprep.subr.bf16.mxu0 0
      %2732 = vmatpush1.bf16.msra.mxu0 0
      %2733 = vmatprep.subr.bf16.mxu0 0
      %2734 = vmatpush1.bf16.msra.mxu0 0
      %2735 = vmatprep.subr.bf16.mxu0 0
      %2736 = vmatpush1.bf16.msra.mxu0 0
      %2737 = vmatprep.subr.bf16.mxu0 0
      %2738 = vmatpush1.bf16.msra.mxu0 0
      %2739 = vmatprep.subr.bf16.mxu0 0
      %2740 = vmatpush1.bf16.msra.mxu0 0
      %2741 = vmatprep.subr.bf16.mxu0 0
      %2742 = vmatpush1.bf16.msra.mxu0 0
      %2743 = vmatprep.subr.bf16.mxu0 0
      %2744 = vmatpush1.bf16.msra.mxu0 0
      %2745 = vmatprep.subr.bf16.mxu0 0
      %2746 = vmatpush1.bf16.msra.mxu0 0
      %2747 = vmatprep.subr.bf16.mxu0 0
      %2748 = vmatpush1.bf16.msra.mxu0 0
      %2749 = vmatprep.subr.bf16.mxu0 0
      %2750 = vmatpush1.bf16.msra.mxu0 0
      %2751 = vmatprep.mubr.bf16.mxu0 0
      %2752 = vmatmul.mubr.bf16.gmra.mrb[0].mxu0 %v2194
      %v2753 = vpop.f32.mrb[0].mxu0
      %v2754 = vadd.f32 %v2653, %v2753
      %v2755 = vpop.f32.mrb[0].mxu0
      %v2756 = vadd.f32 %v2655, %v2755
      %v2757 = vpop.f32.mrb[0].mxu0
      %v2758 = vadd.f32 %v2657, %v2757
      %v2759 = vpop.f32.mrb[0].mxu0
      %v2760 = vadd.f32 %v2659, %v2759
      %2761 = vmatprep.mubr.bf16.mxu0 0
      %2762 = vmatmul.mubr.bf16.gmra.mrb[0].mxu0 %v2197
      %v2763 = vpop.f32.mrb[0].mxu0
      %v2764 = vadd.f32 %v2663, %v2763
      %v2765 = vpop.f32.mrb[0].mxu0
      %v2766 = vadd.f32 %v2665, %v2765
      %v2767 = vpop.f32.mrb[0].mxu0
      %v2768 = vadd.f32 %v2667, %v2767
      %v2769 = vpop.f32.mrb[0].mxu0
      %v2770 = vadd.f32 %v2669, %v2769
      %2771 = vmatprep.mubr.bf16.mxu0 0
      %2772 = vmatmul.mubr.bf16.gmra.mrb[0].mxu0 %v2200
      %v2773 = vpop.f32.mrb[0].mxu0
      %v2774 = vadd.f32 %v2673, %v2773
      %v2775 = vpop.f32.mrb[0].mxu0
      %v2776 = vadd.f32 %v2675, %v2775
      %v2777 = vpop.f32.mrb[0].mxu0
      %v2778 = vadd.f32 %v2677, %v2777
      %v2779 = vpop.f32.mrb[0].mxu0
      %v2780 = vadd.f32 %v2679, %v2779
      %2781 = vmatprep.mubr.bf16.mxu0 0
      %2782 = vmatmul.mubr.bf16.gmra.mrb[0].mxu0 %v2203
      %v2783 = vpop.f32.mrb[0].mxu0
      %v2784 = vadd.f32 %v2683, %v2783
      %v2785 = vpop.f32.mrb[0].mxu0
      %v2786 = vadd.f32 %v2685, %v2785
      %v2787 = vpop.f32.mrb[0].mxu0
      %v2788 = vadd.f32 %v2687, %v2787
      %v2789 = vpop.f32.mrb[0].mxu0
      %v2790 = vadd.f32 %v2689, %v2789
      %2791 = vmatprep.mubr.bf16.mxu0 0
      %2792 = vmatmul.mubr.bf16.gmra.mrb[0].mxu0 %v2206
      %v2793 = vpop.f32.mrb[0].mxu0
      %v2794 = vadd.f32 %v2693, %v2793
      %v2795 = vpop.f32.mrb[0].mxu0
      %v2796 = vadd.f32 %v2695, %v2795
      %v2797 = vpop.f32.mrb[0].mxu0
      %v2798 = vadd.f32 %v2697, %v2797
      %v2799 = vpop.f32.mrb[0].mxu0
      %v2800 = vadd.f32 %v2699, %v2799
      %2801 = vmatprep.mubr.bf16.mxu0 0
      %2802 = vmatmul.mubr.bf16.gmra.mrb[0].mxu0 %v2209
      %v2803 = vpop.f32.mrb[0].mxu0
      %v2804 = vadd.f32 %v2703, %v2803
      %v2805 = vpop.f32.mrb[0].mxu0
      %v2806 = vadd.f32 %v2705, %v2805
      %v2807 = vpop.f32.mrb[0].mxu0
      %v2808 = vadd.f32 %v2707, %v2807
      %v2809 = vpop.f32.mrb[0].mxu0
      %v2810 = vadd.f32 %v2709, %v2809
      %2811 = vmatprep.mubr.bf16.mxu0 0
      %2812 = vmatmul.mubr.bf16.gmra.mrb[0].mxu0 %v2212
      %v2813 = vpop.f32.mrb[0].mxu0
      %v2814 = vadd.f32 %v2713, %v2813
      %v2815 = vpop.f32.mrb[0].mxu0
      %v2816 = vadd.f32 %v2715, %v2815
      %v2817 = vpop.f32.mrb[0].mxu0
      %v2818 = vpop.f32.mrb[0].mxu0
      %2819 = vdwg.mxu0
      %2820 = vmatprep.subr.bf16.mxu0 %v1621
      %2821 = vmatpush1.bf16.msra.mxu0 %v1620
      %2822 = vmatprep.subr.bf16.mxu0 %v1629
      %2823 = vmatpush1.bf16.msra.mxu0 %v1628
      %2824 = vmatprep.subr.bf16.mxu0 %v1637
      %2825 = vmatpush1.bf16.msra.mxu0 %v1636
      %2826 = vmatprep.subr.bf16.mxu0 %v1645
      %2827 = vmatpush1.bf16.msra.mxu0 %v1644
      %2828 = vmatprep.subr.bf16.mxu0 %v1653
      %2829 = vmatpush1.bf16.msra.mxu0 %v1652
      %2830 = vmatprep.subr.bf16.mxu0 %v1661
      %2831 = vmatpush1.bf16.msra.mxu0 %v1660
      %2832 = vmatprep.subr.bf16.mxu0 %v1669
      %2833 = vmatpush1.bf16.msra.mxu0 %v1668
      %2834 = vmatprep.subr.bf16.mxu0 %v1677
      %2835 = vmatpush1.bf16.msra.mxu0 %v1676
      %2836 = vmatprep.subr.bf16.mxu0 %v1685
      %2837 = vmatpush1.bf16.msra.mxu0 %v1684
      %2838 = vmatprep.subr.bf16.mxu0 %v1693
      %2839 = vmatpush1.bf16.msra.mxu0 %v1692
      %2840 = vmatprep.subr.bf16.mxu0 %v1701
      %2841 = vmatpush1.bf16.msra.mxu0 %v1700
      %2842 = vmatprep.subr.bf16.mxu0 %v1709
      %2843 = vmatpush1.bf16.msra.mxu0 %v1708
      %2844 = vmatprep.subr.bf16.mxu0 %v1717
      %2845 = vmatpush1.bf16.msra.mxu0 %v1716
      %2846 = vmatprep.subr.bf16.mxu0 %v1725
      %2847 = vmatpush1.bf16.msra.mxu0 %v1724
      %2848 = vmatprep.subr.bf16.mxu0 %v1733
      %2849 = vmatpush1.bf16.msra.mxu0 %v1732
      %2850 = vmatprep.subr.bf16.mxu0 %v1741
      %2851 = vmatpush1.bf16.msra.mxu0 %v1740
      %2852 = vmatprep.mubr.bf16.mxu0 %v690
      %2853 = vmatmul.mubr.bf16.gmra.mrb[0].mxu0 %v689
      %v2854 = vpop.f32.mrb[0].mxu0
      %v2855 = vadd.f32 %v564, %v2854
      %v2856 = vpop.f32.mrb[0].mxu0
      %v2857 = vadd.f32 %v568, %v2856
      %v2858 = vpop.f32.mrb[0].mxu0
      %v2859 = vadd.f32 %v564, %v2858
      %v2860 = vpop.f32.mrb[0].mxu0
      %v2861 = vadd.f32 %v568, %v2860
      %2862 = vmatprep.mubr.bf16.mxu0 %v695
      %2863 = vmatmul.mubr.bf16.gmra.mrb[0].mxu0 %v694
      %v2864 = vpop.f32.mrb[0].mxu0
      %v2865 = vadd.f32 %v564, %v2864
      %v2866 = vpop.f32.mrb[0].mxu0
      %v2867 = vadd.f32 %v568, %v2866
      %v2868 = vpop.f32.mrb[0].mxu0
      %v2869 = vadd.f32 %v564, %v2868
      %v2870 = vpop.f32.mrb[0].mxu0
      %v2871 = vadd.f32 %v568, %v2870
      %2872 = vmatprep.mubr.bf16.mxu0 %v700
      %2873 = vmatmul.mubr.bf16.gmra.mrb[0].mxu0 %v699
      %v2874 = vpop.f32.mrb[0].mxu0
      %v2875 = vadd.f32 %v564, %v2874
      %v2876 = vpop.f32.mrb[0].mxu0
      %v2877 = vadd.f32 %v568, %v2876
      %v2878 = vpop.f32.mrb[0].mxu0
      %v2879 = vadd.f32 %v564, %v2878
      %v2880 = vpop.f32.mrb[0].mxu0
      %v2881 = vadd.f32 %v568, %v2880
      %2882 = vmatprep.mubr.bf16.mxu0 %v705
      %2883 = vmatmul.mubr.bf16.gmra.mrb[0].mxu0 %v704
      %v2884 = vpop.f32.mrb[0].mxu0
      %v2885 = vadd.f32 %v564, %v2884
      %v2886 = vpop.f32.mrb[0].mxu0
      %v2887 = vadd.f32 %v568, %v2886
      %v2888 = vpop.f32.mrb[0].mxu0
      %v2889 = vadd.f32 %v564, %v2888
      %v2890 = vpop.f32.mrb[0].mxu0
      %v2891 = vadd.f32 %v568, %v2890
      %2892 = vmatprep.mubr.bf16.mxu0 %v710
      %2893 = vmatmul.mubr.bf16.gmra.mrb[0].mxu0 %v709
      %v2894 = vpop.f32.mrb[0].mxu0
      %v2895 = vadd.f32 %v564, %v2894
      %v2896 = vpop.f32.mrb[0].mxu0
      %v2897 = vadd.f32 %v568, %v2896
      %v2898 = vpop.f32.mrb[0].mxu0
      %v2899 = vadd.f32 %v564, %v2898
      %v2900 = vpop.f32.mrb[0].mxu0
      %v2901 = vadd.f32 %v568, %v2900
      %2902 = vmatprep.mubr.bf16.mxu0 %v715
      %2903 = vmatmul.mubr.bf16.gmra.mrb[0].mxu0 %v714
      %v2904 = vpop.f32.mrb[0].mxu0
      %v2905 = vadd.f32 %v564, %v2904
      %v2906 = vpop.f32.mrb[0].mxu0
      %v2907 = vadd.f32 %v568, %v2906
      %v2908 = vpop.f32.mrb[0].mxu0
      %v2909 = vadd.f32 %v564, %v2908
      %v2910 = vpop.f32.mrb[0].mxu0
      %v2911 = vadd.f32 %v568, %v2910
      %2912 = vmatprep.mubr.bf16.mxu0 %v720
      %2913 = vmatmul.mubr.bf16.gmra.mrb[0].mxu0 %v719
      %v2914 = vpop.f32.mrb[0].mxu0
      %v2915 = vadd.f32 %v564, %v2914
      %v2916 = vpop.f32.mrb[0].mxu0
      %v2917 = vadd.f32 %v568, %v2916
      %v2918 = vpop.f32.mrb[0].mxu0
      %v2919 = vpop.f32.mrb[0].mxu0
      %2920 = vdwg.mxu0
      %2921 = vmatprep.subr.bf16.mxu0 %v1749
      %2922 = vmatpush1.bf16.msra.mxu0 %v1748
      %2923 = vmatprep.subr.bf16.mxu0 %v1757
      %2924 = vmatpush1.bf16.msra.mxu0 %v1756
      %2925 = vmatprep.subr.bf16.mxu0 %v1765
      %2926 = vmatpush1.bf16.msra.mxu0 %v1764
      %2927 = vmatprep.subr.bf16.mxu0 %v1773
      %2928 = vmatpush1.bf16.msra.mxu0 %v1772
      %2929 = vmatprep.subr.bf16.mxu0 %v1781
      %2930 = vmatpush1.bf16.msra.mxu0 %v1780
      %2931 = vmatprep.subr.bf16.mxu0 %v1789
      %2932 = vmatpush1.bf16.msra.mxu0 %v1788
      %2933 = vmatprep.subr.bf16.mxu0 %v1797
      %2934 = vmatpush1.bf16.msra.mxu0 %v1796
      %2935 = vmatprep.subr.bf16.mxu0 %v1805
      %2936 = vmatpush1.bf16.msra.mxu0 %v1804
      %2937 = vmatprep.subr.bf16.mxu0 %v1813
      %2938 = vmatpush1.bf16.msra.mxu0 %v1812
      %2939 = vmatprep.subr.bf16.mxu0 %v1821
      %2940 = vmatpush1.bf16.msra.mxu0 %v1820
      %2941 = vmatprep.subr.bf16.mxu0 %v1829
      %2942 = vmatpush1.bf16.msra.mxu0 %v1828
      %2943 = vmatprep.subr.bf16.mxu0 %v1837
      %2944 = vmatpush1.bf16.msra.mxu0 %v1836
      %2945 = vmatprep.subr.bf16.mxu0 %v1845
      %2946 = vmatpush1.bf16.msra.mxu0 %v1844
      %2947 = vmatprep.subr.bf16.mxu0 %v1853
      %2948 = vmatpush1.bf16.msra.mxu0 %v1852
      %2949 = vmatprep.subr.bf16.mxu0 %v1861
      %2950 = vmatpush1.bf16.msra.mxu0 %v1860
      %2951 = vmatprep.subr.bf16.mxu0 %v1869
      %2952 = vmatpush1.bf16.msra.mxu0 %v1868
      %2953 = vmatprep.mubr.bf16.mxu0 %v692
      %2954 = vmatmul.mubr.bf16.gmra.mrb[0].mxu0 %v691
      %v2955 = vpop.f32.mrb[0].mxu0
      %v2956 = vadd.f32 %v2855, %v2955
      %v2957 = vpop.f32.mrb[0].mxu0
      %v2958 = vadd.f32 %v2857, %v2957
      %v2959 = vpop.f32.mrb[0].mxu0
      %v2960 = vadd.f32 %v2859, %v2959
      %v2961 = vpop.f32.mrb[0].mxu0
      %v2962 = vadd.f32 %v2861, %v2961
      %2963 = vmatprep.mubr.bf16.mxu0 %v697
      %2964 = vmatmul.mubr.bf16.gmra.mrb[0].mxu0 %v696
      %v2965 = vpop.f32.mrb[0].mxu0
      %v2966 = vadd.f32 %v2865, %v2965
      %v2967 = vpop.f32.mrb[0].mxu0
      %v2968 = vadd.f32 %v2867, %v2967
      %v2969 = vpop.f32.mrb[0].mxu0
      %v2970 = vadd.f32 %v2869, %v2969
      %v2971 = vpop.f32.mrb[0].mxu0
      %v2972 = vadd.f32 %v2871, %v2971
      %2973 = vmatprep.mubr.bf16.mxu0 %v702
      %2974 = vmatmul.mubr.bf16.gmra.mrb[0].mxu0 %v701
      %v2975 = vpop.f32.mrb[0].mxu0
      %v2976 = vadd.f32 %v2875, %v2975
      %v2977 = vpop.f32.mrb[0].mxu0
      %v2978 = vadd.f32 %v2877, %v2977
      %v2979 = vpop.f32.mrb[0].mxu0
      %v2980 = vadd.f32 %v2879, %v2979
      %v2981 = vpop.f32.mrb[0].mxu0
      %v2982 = vadd.f32 %v2881, %v2981
      %2983 = vmatprep.mubr.bf16.mxu0 %v707
      %2984 = vmatmul.mubr.bf16.gmra.mrb[0].mxu0 %v706
      %v2985 = vpop.f32.mrb[0].mxu0
      %v2986 = vadd.f32 %v2885, %v2985
      %v2987 = vpop.f32.mrb[0].mxu0
      %v2988 = vadd.f32 %v2887, %v2987
      %v2989 = vpop.f32.mrb[0].mxu0
      %v2990 = vadd.f32 %v2889, %v2989
      %v2991 = vpop.f32.mrb[0].mxu0
      %v2992 = vadd.f32 %v2891, %v2991
      %2993 = vmatprep.mubr.bf16.mxu0 %v712
      %2994 = vmatmul.mubr.bf16.gmra.mrb[0].mxu0 %v711
      %v2995 = vpop.f32.mrb[0].mxu0
      %v2996 = vadd.f32 %v2895, %v2995
      %v2997 = vpop.f32.mrb[0].mxu0
      %v2998 = vadd.f32 %v2897, %v2997
      %v2999 = vpop.f32.mrb[0].mxu0
      %v3000 = vadd.f32 %v2899, %v2999
      %v3001 = vpop.f32.mrb[0].mxu0
      %v3002 = vadd.f32 %v2901, %v3001
      %3003 = vmatprep.mubr.bf16.mxu0 %v717
      %3004 = vmatmul.mubr.bf16.gmra.mrb[0].mxu0 %v716
      %v3005 = vpop.f32.mrb[0].mxu0
      %v3006 = vadd.f32 %v2905, %v3005
      %v3007 = vpop.f32.mrb[0].mxu0
      %v3008 = vadd.f32 %v2907, %v3007
      %v3009 = vpop.f32.mrb[0].mxu0
      %v3010 = vadd.f32 %v2909, %v3009
      %v3011 = vpop.f32.mrb[0].mxu0
      %v3012 = vadd.f32 %v2911, %v3011
      %3013 = vmatprep.mubr.bf16.mxu0 %v722
      %3014 = vmatmul.mubr.bf16.gmra.mrb[0].mxu0 %v721
      %v3015 = vpop.f32.mrb[0].mxu0
      %v3016 = vadd.f32 %v2915, %v3015
      %v3017 = vpop.f32.mrb[0].mxu0
      %v3018 = vadd.f32 %v2917, %v3017
      %v3019 = vpop.f32.mrb[0].mxu0
      %v3020 = vpop.f32.mrb[0].mxu0
      %3021 = vdwg.mxu0
      %3022 = vmatprep.subr.bf16.mxu0 %v1877
      %3023 = vmatpush1.bf16.msra.mxu0 %v1876
      %3024 = vmatprep.subr.bf16.mxu0 %v1885
      %3025 = vmatpush1.bf16.msra.mxu0 %v1884
      %3026 = vmatprep.subr.bf16.mxu0 %v1893
      %3027 = vmatpush1.bf16.msra.mxu0 %v1892
      %3028 = vmatprep.subr.bf16.mxu0 %v1901
      %3029 = vmatpush1.bf16.msra.mxu0 %v1900
      %3030 = vmatprep.subr.bf16.mxu0 0
      %3031 = vmatpush1.bf16.msra.mxu0 0
      %3032 = vmatprep.subr.bf16.mxu0 0
      %3033 = vmatpush1.bf16.msra.mxu0 0
      %3034 = vmatprep.subr.bf16.mxu0 0
      %3035 = vmatpush1.bf16.msra.mxu0 0
      %3036 = vmatprep.subr.bf16.mxu0 0
      %3037 = vmatpush1.bf16.msra.mxu0 0
      %3038 = vmatprep.subr.bf16.mxu0 0
      %3039 = vmatpush1.bf16.msra.mxu0 0
      %3040 = vmatprep.subr.bf16.mxu0 0
      %3041 = vmatpush1.bf16.msra.mxu0 0
      %3042 = vmatprep.subr.bf16.mxu0 0
      %3043 = vmatpush1.bf16.msra.mxu0 0
      %3044 = vmatprep.subr.bf16.mxu0 0
      %3045 = vmatpush1.bf16.msra.mxu0 0
      %3046 = vmatprep.subr.bf16.mxu0 0
      %3047 = vmatpush1.bf16.msra.mxu0 0
      %3048 = vmatprep.subr.bf16.mxu0 0
      %3049 = vmatpush1.bf16.msra.mxu0 0
      %3050 = vmatprep.subr.bf16.mxu0 0
      %3051 = vmatpush1.bf16.msra.mxu0 0
      %3052 = vmatprep.subr.bf16.mxu0 0
      %3053 = vmatpush1.bf16.msra.mxu0 0
      %3054 = vmatprep.mubr.bf16.mxu0 0
      %3055 = vmatmul.mubr.bf16.gmra.mrb[0].mxu0 %v2194
      %v3056 = vpop.f32.mrb[0].mxu0
      %v3057 = vadd.f32 %v2956, %v3056
      %v3058 = vpop.f32.mrb[0].mxu0
      %v3059 = vadd.f32 %v2958, %v3058
      %v3060 = vpop.f32.mrb[0].mxu0
      %v3061 = vadd.f32 %v2960, %v3060
      %v3062 = vpop.f32.mrb[0].mxu0
      %v3063 = vadd.f32 %v2962, %v3062
      %3064 = vmatprep.mubr.bf16.mxu0 0
      %3065 = vmatmul.mubr.bf16.gmra.mrb[0].mxu0 %v2197
      %v3066 = vpop.f32.mrb[0].mxu0
      %v3067 = vadd.f32 %v2966, %v3066
      %v3068 = vpop.f32.mrb[0].mxu0
      %v3069 = vadd.f32 %v2968, %v3068
      %v3070 = vpop.f32.mrb[0].mxu0
      %v3071 = vadd.f32 %v2970, %v3070
      %v3072 = vpop.f32.mrb[0].mxu0
      %v3073 = vadd.f32 %v2972, %v3072
      %3074 = vmatprep.mubr.bf16.mxu0 0
      %3075 = vmatmul.mubr.bf16.gmra.mrb[0].mxu0 %v2200
      %v3076 = vpop.f32.mrb[0].mxu0
      %v3077 = vadd.f32 %v2976, %v3076
      %v3078 = vpop.f32.mrb[0].mxu0
      %v3079 = vadd.f32 %v2978, %v3078
      %v3080 = vpop.f32.mrb[0].mxu0
      %v3081 = vadd.f32 %v2980, %v3080
      %v3082 = vpop.f32.mrb[0].mxu0
      %v3083 = vadd.f32 %v2982, %v3082
      %3084 = vmatprep.mubr.bf16.mxu0 0
      %3085 = vmatmul.mubr.bf16.gmra.mrb[0].mxu0 %v2203
      %v3086 = vpop.f32.mrb[0].mxu0
      %v3087 = vadd.f32 %v2986, %v3086
      %v3088 = vpop.f32.mrb[0].mxu0
      %v3089 = vadd.f32 %v2988, %v3088
      %v3090 = vpop.f32.mrb[0].mxu0
      %v3091 = vadd.f32 %v2990, %v3090
      %v3092 = vpop.f32.mrb[0].mxu0
      %v3093 = vadd.f32 %v2992, %v3092
      %3094 = vmatprep.mubr.bf16.mxu0 0
      %3095 = vmatmul.mubr.bf16.gmra.mrb[0].mxu0 %v2206
      %v3096 = vpop.f32.mrb[0].mxu0
      %v3097 = vadd.f32 %v2996, %v3096
      %v3098 = vpop.f32.mrb[0].mxu0
      %v3099 = vadd.f32 %v2998, %v3098
      %v3100 = vpop.f32.mrb[0].mxu0
      %v3101 = vadd.f32 %v3000, %v3100
      %v3102 = vpop.f32.mrb[0].mxu0
      %v3103 = vadd.f32 %v3002, %v3102
      %3104 = vmatprep.mubr.bf16.mxu0 0
      %3105 = vmatmul.mubr.bf16.gmra.mrb[0].mxu0 %v2209
      %v3106 = vpop.f32.mrb[0].mxu0
      %v3107 = vadd.f32 %v3006, %v3106
      %v3108 = vpop.f32.mrb[0].mxu0
      %v3109 = vadd.f32 %v3008, %v3108
      %v3110 = vpop.f32.mrb[0].mxu0
      %v3111 = vadd.f32 %v3010, %v3110
      %v3112 = vpop.f32.mrb[0].mxu0
      %v3113 = vadd.f32 %v3012, %v3112
      %3114 = vmatprep.mubr.bf16.mxu0 0
      %3115 = vmatmul.mubr.bf16.gmra.mrb[0].mxu0 %v2212
      %v3116 = vpop.f32.mrb[0].mxu0
      %v3117 = vadd.f32 %v3016, %v3116
      %v3118 = vpop.f32.mrb[0].mxu0
      %v3119 = vadd.f32 %v3018, %v3118
      %v3120 = vpop.f32.mrb[0].mxu0
      %v3121 = vpop.f32.mrb[0].mxu0
      %3122 = vdwg.mxu0
      %3123 = vmatprep.subr.bf16.mxu0 %v1623
      %3124 = vmatpush1.bf16.msra.mxu0 %v1622
      %3125 = vmatprep.subr.bf16.mxu0 %v1631
      %3126 = vmatpush1.bf16.msra.mxu0 %v1630
      %3127 = vmatprep.subr.bf16.mxu0 %v1639
      %3128 = vmatpush1.bf16.msra.mxu0 %v1638
      %3129 = vmatprep.subr.bf16.mxu0 %v1647
      %3130 = vmatpush1.bf16.msra.mxu0 %v1646
      %3131 = vmatprep.subr.bf16.mxu0 %v1655
      %3132 = vmatpush1.bf16.msra.mxu0 %v1654
      %3133 = vmatprep.subr.bf16.mxu0 %v1663
      %3134 = vmatpush1.bf16.msra.mxu0 %v1662
      %3135 = vmatprep.subr.bf16.mxu0 %v1671
      %3136 = vmatpush1.bf16.msra.mxu0 %v1670
      %3137 = vmatprep.subr.bf16.mxu0 %v1679
      %3138 = vmatpush1.bf16.msra.mxu0 %v1678
      %3139 = vmatprep.subr.bf16.mxu0 %v1687
      %3140 = vmatpush1.bf16.msra.mxu0 %v1686
      %3141 = vmatprep.subr.bf16.mxu0 %v1695
      %3142 = vmatpush1.bf16.msra.mxu0 %v1694
      %3143 = vmatprep.subr.bf16.mxu0 %v1703
      %3144 = vmatpush1.bf16.msra.mxu0 %v1702
      %3145 = vmatprep.subr.bf16.mxu0 %v1711
      %3146 = vmatpush1.bf16.msra.mxu0 %v1710
      %3147 = vmatprep.subr.bf16.mxu0 %v1719
      %3148 = vmatpush1.bf16.msra.mxu0 %v1718
      %3149 = vmatprep.subr.bf16.mxu0 %v1727
      %3150 = vmatpush1.bf16.msra.mxu0 %v1726
      %3151 = vmatprep.subr.bf16.mxu0 %v1735
      %3152 = vmatpush1.bf16.msra.mxu0 %v1734
      %3153 = vmatprep.subr.bf16.mxu0 %v1743
      %3154 = vmatpush1.bf16.msra.mxu0 %v1742
      %3155 = vmatprep.mubr.bf16.mxu0 %v690
      %3156 = vmatmul.mubr.bf16.gmra.mrb[0].mxu0 %v689
      %v3157 = vpop.f32.mrb[0].mxu0
      %v3158 = vadd.f32 %v572, %v3157
      %v3159 = vpop.f32.mrb[0].mxu0
      %v3160 = vadd.f32 %v576, %v3159
      %v3161 = vpop.f32.mrb[0].mxu0
      %v3162 = vadd.f32 %v572, %v3161
      %v3163 = vpop.f32.mrb[0].mxu0
      %v3164 = vadd.f32 %v576, %v3163
      %3165 = vmatprep.mubr.bf16.mxu0 %v695
      %3166 = vmatmul.mubr.bf16.gmra.mrb[0].mxu0 %v694
      %v3167 = vpop.f32.mrb[0].mxu0
      %v3168 = vadd.f32 %v572, %v3167
      %v3169 = vpop.f32.mrb[0].mxu0
      %v3170 = vadd.f32 %v576, %v3169
      %v3171 = vpop.f32.mrb[0].mxu0
      %v3172 = vadd.f32 %v572, %v3171
      %v3173 = vpop.f32.mrb[0].mxu0
      %v3174 = vadd.f32 %v576, %v3173
      %3175 = vmatprep.mubr.bf16.mxu0 %v700
      %3176 = vmatmul.mubr.bf16.gmra.mrb[0].mxu0 %v699
      %v3177 = vpop.f32.mrb[0].mxu0
      %v3178 = vadd.f32 %v572, %v3177
      %v3179 = vpop.f32.mrb[0].mxu0
      %v3180 = vadd.f32 %v576, %v3179
      %v3181 = vpop.f32.mrb[0].mxu0
      %v3182 = vadd.f32 %v572, %v3181
      %v3183 = vpop.f32.mrb[0].mxu0
      %v3184 = vadd.f32 %v576, %v3183
      %3185 = vmatprep.mubr.bf16.mxu0 %v705
      %3186 = vmatmul.mubr.bf16.gmra.mrb[0].mxu0 %v704
      %v3187 = vpop.f32.mrb[0].mxu0
      %v3188 = vadd.f32 %v572, %v3187
      %v3189 = vpop.f32.mrb[0].mxu0
      %v3190 = vadd.f32 %v576, %v3189
      %v3191 = vpop.f32.mrb[0].mxu0
      %v3192 = vadd.f32 %v572, %v3191
      %v3193 = vpop.f32.mrb[0].mxu0
      %v3194 = vadd.f32 %v576, %v3193
      %3195 = vmatprep.mubr.bf16.mxu0 %v710
      %3196 = vmatmul.mubr.bf16.gmra.mrb[0].mxu0 %v709
      %v3197 = vpop.f32.mrb[0].mxu0
      %v3198 = vadd.f32 %v572, %v3197
      %v3199 = vpop.f32.mrb[0].mxu0
      %v3200 = vadd.f32 %v576, %v3199
      %v3201 = vpop.f32.mrb[0].mxu0
      %v3202 = vadd.f32 %v572, %v3201
      %v3203 = vpop.f32.mrb[0].mxu0
      %v3204 = vadd.f32 %v576, %v3203
      %3205 = vmatprep.mubr.bf16.mxu0 %v715
      %3206 = vmatmul.mubr.bf16.gmra.mrb[0].mxu0 %v714
      %v3207 = vpop.f32.mrb[0].mxu0
      %v3208 = vadd.f32 %v572, %v3207
      %v3209 = vpop.f32.mrb[0].mxu0
      %v3210 = vadd.f32 %v576, %v3209
      %v3211 = vpop.f32.mrb[0].mxu0
      %v3212 = vadd.f32 %v572, %v3211
      %v3213 = vpop.f32.mrb[0].mxu0
      %v3214 = vadd.f32 %v576, %v3213
      %3215 = vmatprep.mubr.bf16.mxu0 %v720
      %3216 = vmatmul.mubr.bf16.gmra.mrb[0].mxu0 %v719
      %v3217 = vpop.f32.mrb[0].mxu0
      %v3218 = vadd.f32 %v572, %v3217
      %v3219 = vpop.f32.mrb[0].mxu0
      %v3220 = vadd.f32 %v576, %v3219
      %v3221 = vpop.f32.mrb[0].mxu0
      %v3222 = vpop.f32.mrb[0].mxu0
      %3223 = vdwg.mxu0
      %3224 = vmatprep.subr.bf16.mxu0 %v1751
      %3225 = vmatpush1.bf16.msra.mxu0 %v1750
      %3226 = vmatprep.subr.bf16.mxu0 %v1759
      %3227 = vmatpush1.bf16.msra.mxu0 %v1758
      %3228 = vmatprep.subr.bf16.mxu0 %v1767
      %3229 = vmatpush1.bf16.msra.mxu0 %v1766
      %3230 = vmatprep.subr.bf16.mxu0 %v1775
      %3231 = vmatpush1.bf16.msra.mxu0 %v1774
      %3232 = vmatprep.subr.bf16.mxu0 %v1783
      %3233 = vmatpush1.bf16.msra.mxu0 %v1782
      %3234 = vmatprep.subr.bf16.mxu0 %v1791
      %3235 = vmatpush1.bf16.msra.mxu0 %v1790
      %3236 = vmatprep.subr.bf16.mxu0 %v1799
      %3237 = vmatpush1.bf16.msra.mxu0 %v1798
      %3238 = vmatprep.subr.bf16.mxu0 %v1807
      %3239 = vmatpush1.bf16.msra.mxu0 %v1806
      %3240 = vmatprep.subr.bf16.mxu0 %v1815
      %3241 = vmatpush1.bf16.msra.mxu0 %v1814
      %3242 = vmatprep.subr.bf16.mxu0 %v1823
      %3243 = vmatpush1.bf16.msra.mxu0 %v1822
      %3244 = vmatprep.subr.bf16.mxu0 %v1831
      %3245 = vmatpush1.bf16.msra.mxu0 %v1830
      %3246 = vmatprep.subr.bf16.mxu0 %v1839
      %3247 = vmatpush1.bf16.msra.mxu0 %v1838
      %3248 = vmatprep.subr.bf16.mxu0 %v1847
      %3249 = vmatpush1.bf16.msra.mxu0 %v1846
      %3250 = vmatprep.subr.bf16.mxu0 %v1855
      %3251 = vmatpush1.bf16.msra.mxu0 %v1854
      %3252 = vmatprep.subr.bf16.mxu0 %v1863
      %3253 = vmatpush1.bf16.msra.mxu0 %v1862
      %3254 = vmatprep.subr.bf16.mxu0 %v1871
      %3255 = vmatpush1.bf16.msra.mxu0 %v1870
      %3256 = vmatprep.mubr.bf16.mxu0 %v692
      %3257 = vmatmul.mubr.bf16.gmra.mrb[0].mxu0 %v691
      %v3258 = vpop.f32.mrb[0].mxu0
      %v3259 = vadd.f32 %v3158, %v3258
      %v3260 = vpop.f32.mrb[0].mxu0
      %v3261 = vadd.f32 %v3160, %v3260
      %v3262 = vpop.f32.mrb[0].mxu0
      %v3263 = vadd.f32 %v3162, %v3262
      %v3264 = vpop.f32.mrb[0].mxu0
      %v3265 = vadd.f32 %v3164, %v3264
      %3266 = vmatprep.mubr.bf16.mxu0 %v697
      %3267 = vmatmul.mubr.bf16.gmra.mrb[0].mxu0 %v696
      %v3268 = vpop.f32.mrb[0].mxu0
      %v3269 = vadd.f32 %v3168, %v3268
      %v3270 = vpop.f32.mrb[0].mxu0
      %v3271 = vadd.f32 %v3170, %v3270
      %v3272 = vpop.f32.mrb[0].mxu0
      %v3273 = vadd.f32 %v3172, %v3272
      %v3274 = vpop.f32.mrb[0].mxu0
      %v3275 = vadd.f32 %v3174, %v3274
      %3276 = vmatprep.mubr.bf16.mxu0 %v702
      %3277 = vmatmul.mubr.bf16.gmra.mrb[0].mxu0 %v701
      %v3278 = vpop.f32.mrb[0].mxu0
      %v3279 = vadd.f32 %v3178, %v3278
      %v3280 = vpop.f32.mrb[0].mxu0
      %v3281 = vadd.f32 %v3180, %v3280
      %v3282 = vpop.f32.mrb[0].mxu0
      %v3283 = vadd.f32 %v3182, %v3282
      %v3284 = vpop.f32.mrb[0].mxu0
      %v3285 = vadd.f32 %v3184, %v3284
      %3286 = vmatprep.mubr.bf16.mxu0 %v707
      %3287 = vmatmul.mubr.bf16.gmra.mrb[0].mxu0 %v706
      %v3288 = vpop.f32.mrb[0].mxu0
      %v3289 = vadd.f32 %v3188, %v3288
      %v3290 = vpop.f32.mrb[0].mxu0
      %v3291 = vadd.f32 %v3190, %v3290
      %v3292 = vpop.f32.mrb[0].mxu0
      %v3293 = vadd.f32 %v3192, %v3292
      %v3294 = vpop.f32.mrb[0].mxu0
      %v3295 = vadd.f32 %v3194, %v3294
      %3296 = vmatprep.mubr.bf16.mxu0 %v712
      %3297 = vmatmul.mubr.bf16.gmra.mrb[0].mxu0 %v711
      %v3298 = vpop.f32.mrb[0].mxu0
      %v3299 = vadd.f32 %v3198, %v3298
      %v3300 = vpop.f32.mrb[0].mxu0
      %v3301 = vadd.f32 %v3200, %v3300
      %v3302 = vpop.f32.mrb[0].mxu0
      %v3303 = vadd.f32 %v3202, %v3302
      %v3304 = vpop.f32.mrb[0].mxu0
      %v3305 = vadd.f32 %v3204, %v3304
      %3306 = vmatprep.mubr.bf16.mxu0 %v717
      %3307 = vmatmul.mubr.bf16.gmra.mrb[0].mxu0 %v716
      %v3308 = vpop.f32.mrb[0].mxu0
      %v3309 = vadd.f32 %v3208, %v3308
      %v3310 = vpop.f32.mrb[0].mxu0
      %v3311 = vadd.f32 %v3210, %v3310
      %v3312 = vpop.f32.mrb[0].mxu0
      %v3313 = vadd.f32 %v3212, %v3312
      %v3314 = vpop.f32.mrb[0].mxu0
      %v3315 = vadd.f32 %v3214, %v3314
      %3316 = vmatprep.mubr.bf16.mxu0 %v722
      %3317 = vmatmul.mubr.bf16.gmra.mrb[0].mxu0 %v721
      %v3318 = vpop.f32.mrb[0].mxu0
      %v3319 = vadd.f32 %v3218, %v3318
      %v3320 = vpop.f32.mrb[0].mxu0
      %v3321 = vadd.f32 %v3220, %v3320
      %v3322 = vpop.f32.mrb[0].mxu0
      %v3323 = vpop.f32.mrb[0].mxu0
      %3324 = vdwg.mxu0
      %3325 = vmatprep.subr.bf16.mxu0 %v1879
      %3326 = vmatpush1.bf16.msra.mxu0 %v1878
      %3327 = vmatprep.subr.bf16.mxu0 %v1887
      %3328 = vmatpush1.bf16.msra.mxu0 %v1886
      %3329 = vmatprep.subr.bf16.mxu0 %v1895
      %3330 = vmatpush1.bf16.msra.mxu0 %v1894
      %3331 = vmatprep.subr.bf16.mxu0 %v1903
      %3332 = vmatpush1.bf16.msra.mxu0 %v1902
      %3333 = vmatprep.subr.bf16.mxu0 0
      %3334 = vmatpush1.bf16.msra.mxu0 0
      %3335 = vmatprep.subr.bf16.mxu0 0
      %3336 = vmatpush1.bf16.msra.mxu0 0
      %3337 = vmatprep.subr.bf16.mxu0 0
      %3338 = vmatpush1.bf16.msra.mxu0 0
      %3339 = vmatprep.subr.bf16.mxu0 0
      %3340 = vmatpush1.bf16.msra.mxu0 0
      %3341 = vmatprep.subr.bf16.mxu0 0
      %3342 = vmatpush1.bf16.msra.mxu0 0
      %3343 = vmatprep.subr.bf16.mxu0 0
      %3344 = vmatpush1.bf16.msra.mxu0 0
      %3345 = vmatprep.subr.bf16.mxu0 0
      %3346 = vmatpush1.bf16.msra.mxu0 0
      %3347 = vmatprep.subr.bf16.mxu0 0
      %3348 = vmatpush1.bf16.msra.mxu0 0
      %3349 = vmatprep.subr.bf16.mxu0 0
      %3350 = vmatpush1.bf16.msra.mxu0 0
      %3351 = vmatprep.subr.bf16.mxu0 0
      %3352 = vmatpush1.bf16.msra.mxu0 0
      %3353 = vmatprep.subr.bf16.mxu0 0
      %3354 = vmatpush1.bf16.msra.mxu0 0
      %3355 = vmatprep.subr.bf16.mxu0 0
      %3356 = vmatpush1.bf16.msra.mxu0 0
      %3357 = vmatprep.mubr.bf16.mxu0 0
      %3358 = vmatmul.mubr.bf16.gmra.mrb[0].mxu0 %v2194
      %v3359 = vpop.f32.mrb[0].mxu0
      %v3360 = vadd.f32 %v3259, %v3359
      %v3361 = vpop.f32.mrb[0].mxu0
      %v3362 = vadd.f32 %v3261, %v3361
      %v3363 = vpop.f32.mrb[0].mxu0
      %v3364 = vadd.f32 %v3263, %v3363
      %v3365 = vpop.f32.mrb[0].mxu0
      %v3366 = vadd.f32 %v3265, %v3365
      %3367 = vmatprep.mubr.bf16.mxu0 0
      %3368 = vmatmul.mubr.bf16.gmra.mrb[0].mxu0 %v2197
      %v3369 = vpop.f32.mrb[0].mxu0
      %v3370 = vadd.f32 %v3269, %v3369
      %v3371 = vpop.f32.mrb[0].mxu0
      %v3372 = vadd.f32 %v3271, %v3371
      %v3373 = vpop.f32.mrb[0].mxu0
      %v3374 = vadd.f32 %v3273, %v3373
      %v3375 = vpop.f32.mrb[0].mxu0
      %v3376 = vadd.f32 %v3275, %v3375
      %3377 = vmatprep.mubr.bf16.mxu0 0
      %3378 = vmatmul.mubr.bf16.gmra.mrb[0].mxu0 %v2200
      %v3379 = vpop.f32.mrb[0].mxu0
      %v3380 = vadd.f32 %v3279, %v3379
      %v3381 = vpop.f32.mrb[0].mxu0
      %v3382 = vadd.f32 %v3281, %v3381
      %v3383 = vpop.f32.mrb[0].mxu0
      %v3384 = vadd.f32 %v3283, %v3383
      %v3385 = vpop.f32.mrb[0].mxu0
      %v3386 = vadd.f32 %v3285, %v3385
      %3387 = vmatprep.mubr.bf16.mxu0 0
      %3388 = vmatmul.mubr.bf16.gmra.mrb[0].mxu0 %v2203
      %v3389 = vpop.f32.mrb[0].mxu0
      %v3390 = vadd.f32 %v3289, %v3389
      %v3391 = vpop.f32.mrb[0].mxu0
      %v3392 = vadd.f32 %v3291, %v3391
      %v3393 = vpop.f32.mrb[0].mxu0
      %v3394 = vadd.f32 %v3293, %v3393
      %v3395 = vpop.f32.mrb[0].mxu0
      %v3396 = vadd.f32 %v3295, %v3395
      %3397 = vmatprep.mubr.bf16.mxu0 0
      %3398 = vmatmul.mubr.bf16.gmra.mrb[0].mxu0 %v2206
      %v3399 = vpop.f32.mrb[0].mxu0
      %v3400 = vadd.f32 %v3299, %v3399
      %v3401 = vpop.f32.mrb[0].mxu0
      %v3402 = vadd.f32 %v3301, %v3401
      %v3403 = vpop.f32.mrb[0].mxu0
      %v3404 = vadd.f32 %v3303, %v3403
      %v3405 = vpop.f32.mrb[0].mxu0
      %v3406 = vadd.f32 %v3305, %v3405
      %3407 = vmatprep.mubr.bf16.mxu0 0
      %3408 = vmatmul.mubr.bf16.gmra.mrb[0].mxu0 %v2209
      %v3409 = vpop.f32.mrb[0].mxu0
      %v3410 = vadd.f32 %v3309, %v3409
      %v3411 = vpop.f32.mrb[0].mxu0
      %v3412 = vadd.f32 %v3311, %v3411
      %v3413 = vpop.f32.mrb[0].mxu0
      %v3414 = vadd.f32 %v3313, %v3413
      %v3415 = vpop.f32.mrb[0].mxu0
      %v3416 = vadd.f32 %v3315, %v3415
      %3417 = vmatprep.mubr.bf16.mxu0 0
      %3418 = vmatmul.mubr.bf16.gmra.mrb[0].mxu0 %v2212
      %v3419 = vpop.f32.mrb[0].mxu0
      %v3420 = vadd.f32 %v3319, %v3419
      %v3421 = vpop.f32.mrb[0].mxu0
      %v3422 = vadd.f32 %v3321, %v3421
      %v3423 = vpop.f32.mrb[0].mxu0
      %v3424 = vpop.f32.mrb[0].mxu0
      %3425 = vdwg.mxu0
      %v3426 = vxor.u32 %v2451, 2147483648
      %v3427 = vxor.u32 %v2453, 2147483648
      %v3428 = vxor.u32 %v2754, 2147483648
      %v3429 = vxor.u32 %v2756, 2147483648
      %v3430 = vxor.u32 %v3057, 2147483648
      %v3431 = vxor.u32 %v3059, 2147483648
      %v3432 = vxor.u32 %v3360, 2147483648
      %v3433 = vxor.u32 %v3362, 2147483648
      %v3434 = vxor.u32 %v2455, 2147483648
      %v3435 = vxor.u32 %v2457, 2147483648
      %v3436 = vxor.u32 %v2758, 2147483648
      %v3437 = vxor.u32 %v2760, 2147483648
      %v3438 = vxor.u32 %v3061, 2147483648
      %v3439 = vxor.u32 %v3063, 2147483648
      %v3440 = vxor.u32 %v3364, 2147483648
      %v3441 = vxor.u32 %v3366, 2147483648
      %v3442 = vxor.u32 %v2461, 2147483648
      %v3443 = vxor.u32 %v2463, 2147483648
      %v3444 = vxor.u32 %v2764, 2147483648
      %v3445 = vxor.u32 %v2766, 2147483648
      %v3446 = vxor.u32 %v3067, 2147483648
      %v3447 = vxor.u32 %v3069, 2147483648
      %v3448 = vxor.u32 %v3370, 2147483648
      %v3449 = vxor.u32 %v3372, 2147483648
      %v3450 = vxor.u32 %v2465, 2147483648
      %v3451 = vxor.u32 %v2467, 2147483648
      %v3452 = vxor.u32 %v2768, 2147483648
      %v3453 = vxor.u32 %v2770, 2147483648
      %v3454 = vxor.u32 %v3071, 2147483648
      %v3455 = vxor.u32 %v3073, 2147483648
      %v3456 = vxor.u32 %v3374, 2147483648
      %v3457 = vxor.u32 %v3376, 2147483648
      %v3458 = vxor.u32 %v2471, 2147483648
      %v3459 = vxor.u32 %v2473, 2147483648
      %v3460 = vxor.u32 %v2774, 2147483648
      %v3461 = vxor.u32 %v2776, 2147483648
      %v3462 = vxor.u32 %v3077, 2147483648
      %v3463 = vxor.u32 %v3079, 2147483648
      %v3464 = vxor.u32 %v3380, 2147483648
      %v3465 = vxor.u32 %v3382, 2147483648
      %v3466 = vxor.u32 %v2475, 2147483648
      %v3467 = vxor.u32 %v2477, 2147483648
      %v3468 = vxor.u32 %v2778, 2147483648
      %v3469 = vxor.u32 %v2780, 2147483648
      %v3470 = vxor.u32 %v3081, 2147483648
      %v3471 = vxor.u32 %v3083, 2147483648
      %v3472 = vxor.u32 %v3384, 2147483648
      %v3473 = vxor.u32 %v3386, 2147483648
      %v3474 = vxor.u32 %v2481, 2147483648
      %v3475 = vxor.u32 %v2483, 2147483648
      %v3476 = vxor.u32 %v2784, 2147483648
      %v3477 = vxor.u32 %v2786, 2147483648
      %v3478 = vxor.u32 %v3087, 2147483648
      %v3479 = vxor.u32 %v3089, 2147483648
      %v3480 = vxor.u32 %v3390, 2147483648
      %v3481 = vxor.u32 %v3392, 2147483648
      %v3482 = vxor.u32 %v2485, 2147483648
      %v3483 = vxor.u32 %v2487, 2147483648
      %v3484 = vxor.u32 %v2788, 2147483648
      %v3485 = vxor.u32 %v2790, 2147483648
      %v3486 = vxor.u32 %v3091, 2147483648
      %v3487 = vxor.u32 %v3093, 2147483648
      %v3488 = vxor.u32 %v3394, 2147483648
      %v3489 = vxor.u32 %v3396, 2147483648
      %v3490 = vxor.u32 %v2491, 2147483648
      %v3491 = vxor.u32 %v2493, 2147483648
      %v3492 = vxor.u32 %v2794, 2147483648
      %v3493 = vxor.u32 %v2796, 2147483648
      %v3494 = vxor.u32 %v3097, 2147483648
      %v3495 = vxor.u32 %v3099, 2147483648
      %v3496 = vxor.u32 %v3400, 2147483648
      %v3497 = vxor.u32 %v3402, 2147483648
      %v3498 = vxor.u32 %v2495, 2147483648
      %v3499 = vxor.u32 %v2497, 2147483648
      %v3500 = vxor.u32 %v2798, 2147483648
      %v3501 = vxor.u32 %v2800, 2147483648
      %v3502 = vxor.u32 %v3101, 2147483648
      %v3503 = vxor.u32 %v3103, 2147483648
      %v3504 = vxor.u32 %v3404, 2147483648
      %v3505 = vxor.u32 %v3406, 2147483648
      %v3506 = vxor.u32 %v2501, 2147483648
      %v3507 = vxor.u32 %v2503, 2147483648
      %v3508 = vxor.u32 %v2804, 2147483648
      %v3509 = vxor.u32 %v2806, 2147483648
      %v3510 = vxor.u32 %v3107, 2147483648
      %v3511 = vxor.u32 %v3109, 2147483648
      %v3512 = vxor.u32 %v3410, 2147483648
      %v3513 = vxor.u32 %v3412, 2147483648
      %v3514 = vxor.u32 %v2505, 2147483648
      %v3515 = vxor.u32 %v2507, 2147483648
      %v3516 = vxor.u32 %v2808, 2147483648
      %v3517 = vxor.u32 %v2810, 2147483648
      %v3518 = vxor.u32 %v3111, 2147483648
      %v3519 = vxor.u32 %v3113, 2147483648
      %v3520 = vxor.u32 %v3414, 2147483648
      %v3521 = vxor.u32 %v3416, 2147483648
      %v3522 = vxor.u32 %v2511, 2147483648
      %v3523 = vxor.u32 %v2513, 2147483648
      %v3524 = vxor.u32 %v2814, 2147483648
      %v3525 = vxor.u32 %v2816, 2147483648
      %v3526 = vxor.u32 %v3117, 2147483648
      %v3527 = vxor.u32 %v3119, 2147483648
      %v3528 = vxor.u32 %v3420, 2147483648
      %v3529 = vxor.u32 %v3422, 2147483648
      %v3530 = vmul.f32 %v3426, 1.442695
      %v3531 = vpow.pop %v3530
      %v3532 = vmul.f32 %v3427, 1.442695
      %v3533 = vpow.pop %v3532
      %v3534 = vmul.f32 %v3428, 1.442695
      %v3535 = vpow.pop %v3534
      %v3536 = vmul.f32 %v3429, 1.442695
      %v3537 = vpow.pop %v3536
      %v3538 = vmul.f32 %v3430, 1.442695
      %v3539 = vpow.pop %v3538
      %v3540 = vmul.f32 %v3431, 1.442695
      %v3541 = vpow.pop %v3540
      %v3542 = vmul.f32 %v3432, 1.442695
      %v3543 = vpow.pop %v3542
      %v3544 = vmul.f32 %v3433, 1.442695
      %v3545 = vpow.pop %v3544
      %v3546 = vmul.f32 %v3434, 1.442695
      %v3547 = vpow.pop %v3546
      %v3548 = vmul.f32 %v3435, 1.442695
      %v3549 = vpow.pop %v3548
      %v3550 = vmul.f32 %v3436, 1.442695
      %v3551 = vpow.pop %v3550
      %v3552 = vmul.f32 %v3437, 1.442695
      %v3553 = vpow.pop %v3552
      %v3554 = vmul.f32 %v3438, 1.442695
      %v3555 = vpow.pop %v3554
      %v3556 = vmul.f32 %v3439, 1.442695
      %v3557 = vpow.pop %v3556
      %v3558 = vmul.f32 %v3440, 1.442695
      %v3559 = vpow.pop %v3558
      %v3560 = vmul.f32 %v3441, 1.442695
      %v3561 = vpow.pop %v3560
      %v3562 = vmul.f32 %v3442, 1.442695
      %v3563 = vpow.pop %v3562
      %v3564 = vmul.f32 %v3443, 1.442695
      %v3565 = vpow.pop %v3564
      %v3566 = vmul.f32 %v3444, 1.442695
      %v3567 = vpow.pop %v3566
      %v3568 = vmul.f32 %v3445, 1.442695
      %v3569 = vpow.pop %v3568
      %v3570 = vmul.f32 %v3446, 1.442695
      %v3571 = vpow.pop %v3570
      %v3572 = vmul.f32 %v3447, 1.442695
      %v3573 = vpow.pop %v3572
      %v3574 = vmul.f32 %v3448, 1.442695
      %v3575 = vpow.pop %v3574
      %v3576 = vmul.f32 %v3449, 1.442695
      %v3577 = vpow.pop %v3576
      %v3578 = vmul.f32 %v3450, 1.442695
      %v3579 = vpow.pop %v3578
      %v3580 = vmul.f32 %v3451, 1.442695
      %v3581 = vpow.pop %v3580
      %v3582 = vmul.f32 %v3452, 1.442695
      %v3583 = vpow.pop %v3582
      %v3584 = vmul.f32 %v3453, 1.442695
      %v3585 = vpow.pop %v3584
      %v3586 = vmul.f32 %v3454, 1.442695
      %v3587 = vpow.pop %v3586
      %v3588 = vmul.f32 %v3455, 1.442695
      %v3589 = vpow.pop %v3588
      %v3590 = vmul.f32 %v3456, 1.442695
      %v3591 = vpow.pop %v3590
      %v3592 = vmul.f32 %v3457, 1.442695
      %v3593 = vpow.pop %v3592
      %v3594 = vmul.f32 %v3458, 1.442695
      %v3595 = vpow.pop %v3594
      %v3596 = vmul.f32 %v3459, 1.442695
      %v3597 = vpow.pop %v3596
      %v3598 = vmul.f32 %v3460, 1.442695
      %v3599 = vpow.pop %v3598
      %v3600 = vmul.f32 %v3461, 1.442695
      %v3601 = vpow.pop %v3600
      %v3602 = vmul.f32 %v3462, 1.442695
      %v3603 = vpow.pop %v3602
      %v3604 = vmul.f32 %v3463, 1.442695
      %v3605 = vpow.pop %v3604
      %v3606 = vmul.f32 %v3464, 1.442695
      %v3607 = vpow.pop %v3606
      %v3608 = vmul.f32 %v3465, 1.442695
      %v3609 = vpow.pop %v3608
      %v3610 = vmul.f32 %v3466, 1.442695
      %v3611 = vpow.pop %v3610
      %v3612 = vmul.f32 %v3467, 1.442695
      %v3613 = vpow.pop %v3612
      %v3614 = vmul.f32 %v3468, 1.442695
      %v3615 = vpow.pop %v3614
      %v3616 = vmul.f32 %v3469, 1.442695
      %v3617 = vpow.pop %v3616
      %v3618 = vmul.f32 %v3470, 1.442695
      %v3619 = vpow.pop %v3618
      %v3620 = vmul.f32 %v3471, 1.442695
      %v3621 = vpow.pop %v3620
      %v3622 = vmul.f32 %v3472, 1.442695
      %v3623 = vpow.pop %v3622
      %v3624 = vmul.f32 %v3473, 1.442695
      %v3625 = vpow.pop %v3624
      %v3626 = vmul.f32 %v3474, 1.442695
      %v3627 = vpow.pop %v3626
      %v3628 = vmul.f32 %v3475, 1.442695
      %v3629 = vpow.pop %v3628
      %v3630 = vmul.f32 %v3476, 1.442695
      %v3631 = vpow.pop %v3630
      %v3632 = vmul.f32 %v3477, 1.442695
      %v3633 = vpow.pop %v3632
      %v3634 = vmul.f32 %v3478, 1.442695
      %v3635 = vpow.pop %v3634
      %v3636 = vmul.f32 %v3479, 1.442695
      %v3637 = vpow.pop %v3636
      %v3638 = vmul.f32 %v3480, 1.442695
      %v3639 = vpow.pop %v3638
      %v3640 = vmul.f32 %v3481, 1.442695
      %v3641 = vpow.pop %v3640
      %v3642 = vmul.f32 %v3482, 1.442695
      %v3643 = vpow.pop %v3642
      %v3644 = vmul.f32 %v3483, 1.442695
      %v3645 = vpow.pop %v3644
      %v3646 = vmul.f32 %v3484, 1.442695
      %v3647 = vpow.pop %v3646
      %v3648 = vmul.f32 %v3485, 1.442695
      %v3649 = vpow.pop %v3648
      %v3650 = vmul.f32 %v3486, 1.442695
      %v3651 = vpow.pop %v3650
      %v3652 = vmul.f32 %v3487, 1.442695
      %v3653 = vpow.pop %v3652
      %v3654 = vmul.f32 %v3488, 1.442695
      %v3655 = vpow.pop %v3654
      %v3656 = vmul.f32 %v3489, 1.442695
      %v3657 = vpow.pop %v3656
      %v3658 = vmul.f32 %v3490, 1.442695
      %v3659 = vpow.pop %v3658
      %v3660 = vmul.f32 %v3491, 1.442695
      %v3661 = vpow.pop %v3660
      %v3662 = vmul.f32 %v3492, 1.442695
      %v3663 = vpow.pop %v3662
      %v3664 = vmul.f32 %v3493, 1.442695
      %v3665 = vpow.pop %v3664
      %v3666 = vmul.f32 %v3494, 1.442695
      %v3667 = vpow.pop %v3666
      %v3668 = vmul.f32 %v3495, 1.442695
      %v3669 = vpow.pop %v3668
      %v3670 = vmul.f32 %v3496, 1.442695
      %v3671 = vpow.pop %v3670
      %v3672 = vmul.f32 %v3497, 1.442695
      %v3673 = vpow.pop %v3672
      %v3674 = vmul.f32 %v3498, 1.442695
      %v3675 = vpow.pop %v3674
      %v3676 = vmul.f32 %v3499, 1.442695
      %v3677 = vpow.pop %v3676
      %v3678 = vmul.f32 %v3500, 1.442695
      %v3679 = vpow.pop %v3678
      %v3680 = vmul.f32 %v3501, 1.442695
      %v3681 = vpow.pop %v3680
      %v3682 = vmul.f32 %v3502, 1.442695
      %v3683 = vpow.pop %v3682
      %v3684 = vmul.f32 %v3503, 1.442695
      %v3685 = vpow.pop %v3684
      %v3686 = vmul.f32 %v3504, 1.442695
      %v3687 = vpow.pop %v3686
      %v3688 = vmul.f32 %v3505, 1.442695
      %v3689 = vpow.pop %v3688
      %v3690 = vmul.f32 %v3506, 1.442695
      %v3691 = vpow.pop %v3690
      %v3692 = vmul.f32 %v3507, 1.442695
      %v3693 = vpow.pop %v3692
      %v3694 = vmul.f32 %v3508, 1.442695
      %v3695 = vpow.pop %v3694
      %v3696 = vmul.f32 %v3509, 1.442695
      %v3697 = vpow.pop %v3696
      %v3698 = vmul.f32 %v3510, 1.442695
      %v3699 = vpow.pop %v3698
      %v3700 = vmul.f32 %v3511, 1.442695
      %v3701 = vpow.pop %v3700
      %v3702 = vmul.f32 %v3512, 1.442695
      %v3703 = vpow.pop %v3702
      %v3704 = vmul.f32 %v3513, 1.442695
      %v3705 = vpow.pop %v3704
      %v3706 = vmul.f32 %v3514, 1.442695
      %v3707 = vpow.pop %v3706
      %v3708 = vmul.f32 %v3515, 1.442695
      %v3709 = vpow.pop %v3708
      %v3710 = vmul.f32 %v3516, 1.442695
      %v3711 = vpow.pop %v3710
      %v3712 = vmul.f32 %v3517, 1.442695
      %v3713 = vpow.pop %v3712
      %v3714 = vmul.f32 %v3518, 1.442695
      %v3715 = vpow.pop %v3714
      %v3716 = vmul.f32 %v3519, 1.442695
      %v3717 = vpow.pop %v3716
      %v3718 = vmul.f32 %v3520, 1.442695
      %v3719 = vpow.pop %v3718
      %v3720 = vmul.f32 %v3521, 1.442695
      %v3721 = vpow.pop %v3720
      %v3722 = vmul.f32 %v3522, 1.442695
      %v3723 = vpow.pop %v3722
      %v3724 = vmul.f32 %v3523, 1.442695
      %v3725 = vpow.pop %v3724
      %v3726 = vmul.f32 %v3524, 1.442695
      %v3727 = vpow.pop %v3726
      %v3728 = vmul.f32 %v3525, 1.442695
      %v3729 = vpow.pop %v3728
      %v3730 = vmul.f32 %v3526, 1.442695
      %v3731 = vpow.pop %v3730
      %v3732 = vmul.f32 %v3527, 1.442695
      %v3733 = vpow.pop %v3732
      %v3734 = vmul.f32 %v3528, 1.442695
      %v3735 = vpow.pop %v3734
      %v3736 = vmul.f32 %v3529, 1.442695
      %v3737 = vpow.pop %v3736
      %v3738 = vadd.f32 %v3531, 1.0
      %v3739 = vadd.f32 %v3533, 1.0
      %v3740 = vadd.f32 %v3535, 1.0
      %v3741 = vadd.f32 %v3537, 1.0
      %v3742 = vadd.f32 %v3539, 1.0
      %v3743 = vadd.f32 %v3541, 1.0
      %v3744 = vadd.f32 %v3543, 1.0
      %v3745 = vadd.f32 %v3545, 1.0
      %v3746 = vadd.f32 %v3547, 1.0
      %v3747 = vadd.f32 %v3549, 1.0
      %v3748 = vadd.f32 %v3551, 1.0
      %v3749 = vadd.f32 %v3553, 1.0
      %v3750 = vadd.f32 %v3555, 1.0
      %v3751 = vadd.f32 %v3557, 1.0
      %v3752 = vadd.f32 %v3559, 1.0
      %v3753 = vadd.f32 %v3561, 1.0
      %v3754 = vadd.f32 %v3563, 1.0
      %v3755 = vadd.f32 %v3565, 1.0
      %v3756 = vadd.f32 %v3567, 1.0
      %v3757 = vadd.f32 %v3569, 1.0
      %v3758 = vadd.f32 %v3571, 1.0
      %v3759 = vadd.f32 %v3573, 1.0
      %v3760 = vadd.f32 %v3575, 1.0
      %v3761 = vadd.f32 %v3577, 1.0
      %v3762 = vadd.f32 %v3579, 1.0
      %v3763 = vadd.f32 %v3581, 1.0
      %v3764 = vadd.f32 %v3583, 1.0
      %v3765 = vadd.f32 %v3585, 1.0
      %v3766 = vadd.f32 %v3587, 1.0
      %v3767 = vadd.f32 %v3589, 1.0
      %v3768 = vadd.f32 %v3591, 1.0
      %v3769 = vadd.f32 %v3593, 1.0
      %v3770 = vadd.f32 %v3595, 1.0
      %v3771 = vadd.f32 %v3597, 1.0
      %v3772 = vadd.f32 %v3599, 1.0
      %v3773 = vadd.f32 %v3601, 1.0
      %v3774 = vadd.f32 %v3603, 1.0
      %v3775 = vadd.f32 %v3605, 1.0
      %v3776 = vadd.f32 %v3607, 1.0
      %v3777 = vadd.f32 %v3609, 1.0
      %v3778 = vadd.f32 %v3611, 1.0
      %v3779 = vadd.f32 %v3613, 1.0
      %v3780 = vadd.f32 %v3615, 1.0
      %v3781 = vadd.f32 %v3617, 1.0
      %v3782 = vadd.f32 %v3619, 1.0
      %v3783 = vadd.f32 %v3621, 1.0
      %v3784 = vadd.f32 %v3623, 1.0
      %v3785 = vadd.f32 %v3625, 1.0
      %v3786 = vadd.f32 %v3627, 1.0
      %v3787 = vadd.f32 %v3629, 1.0
      %v3788 = vadd.f32 %v3631, 1.0
      %v3789 = vadd.f32 %v3633, 1.0
      %v3790 = vadd.f32 %v3635, 1.0
      %v3791 = vadd.f32 %v3637, 1.0
      %v3792 = vadd.f32 %v3639, 1.0
      %v3793 = vadd.f32 %v3641, 1.0
      %v3794 = vadd.f32 %v3643, 1.0
      %v3795 = vadd.f32 %v3645, 1.0
      %v3796 = vadd.f32 %v3647, 1.0
      %v3797 = vadd.f32 %v3649, 1.0
      %v3798 = vadd.f32 %v3651, 1.0
      %v3799 = vadd.f32 %v3653, 1.0
      %v3800 = vadd.f32 %v3655, 1.0
      %v3801 = vadd.f32 %v3657, 1.0
      %v3802 = vadd.f32 %v3659, 1.0
      %v3803 = vadd.f32 %v3661, 1.0
      %v3804 = vadd.f32 %v3663, 1.0
      %v3805 = vadd.f32 %v3665, 1.0
      %v3806 = vadd.f32 %v3667, 1.0
      %v3807 = vadd.f32 %v3669, 1.0
      %v3808 = vadd.f32 %v3671, 1.0
      %v3809 = vadd.f32 %v3673, 1.0
      %v3810 = vadd.f32 %v3675, 1.0
      %v3811 = vadd.f32 %v3677, 1.0
      %v3812 = vadd.f32 %v3679, 1.0
      %v3813 = vadd.f32 %v3681, 1.0
      %v3814 = vadd.f32 %v3683, 1.0
      %v3815 = vadd.f32 %v3685, 1.0
      %v3816 = vadd.f32 %v3687, 1.0
      %v3817 = vadd.f32 %v3689, 1.0
      %v3818 = vadd.f32 %v3691, 1.0
      %v3819 = vadd.f32 %v3693, 1.0
      %v3820 = vadd.f32 %v3695, 1.0
      %v3821 = vadd.f32 %v3697, 1.0
      %v3822 = vadd.f32 %v3699, 1.0
      %v3823 = vadd.f32 %v3701, 1.0
      %v3824 = vadd.f32 %v3703, 1.0
      %v3825 = vadd.f32 %v3705, 1.0
      %v3826 = vadd.f32 %v3707, 1.0
      %v3827 = vadd.f32 %v3709, 1.0
      %v3828 = vadd.f32 %v3711, 1.0
      %v3829 = vadd.f32 %v3713, 1.0
      %v3830 = vadd.f32 %v3715, 1.0
      %v3831 = vadd.f32 %v3717, 1.0
      %v3832 = vadd.f32 %v3719, 1.0
      %v3833 = vadd.f32 %v3721, 1.0
      %v3834 = vadd.f32 %v3723, 1.0
      %v3835 = vadd.f32 %v3725, 1.0
      %v3836 = vadd.f32 %v3727, 1.0
      %v3837 = vadd.f32 %v3729, 1.0
      %v3838 = vadd.f32 %v3731, 1.0
      %v3839 = vadd.f32 %v3733, 1.0
      %v3840 = vadd.f32 %v3735, 1.0
      %v3841 = vadd.f32 %v3737, 1.0
      %v3842 = vrcp.pop %v3738
      %v3843 = vmul.f32 1.0, %v3842
      %v3844 = vrcp.pop %v3739
      %v3845 = vmul.f32 1.0, %v3844
      %v3846 = vrcp.pop %v3740
      %v3847 = vmul.f32 1.0, %v3846
      %v3848 = vrcp.pop %v3741
      %v3849 = vmul.f32 1.0, %v3848
      %v3850 = vrcp.pop %v3742
      %v3851 = vmul.f32 1.0, %v3850
      %v3852 = vrcp.pop %v3743
      %v3853 = vmul.f32 1.0, %v3852
      %v3854 = vrcp.pop %v3744
      %v3855 = vmul.f32 1.0, %v3854
      %v3856 = vrcp.pop %v3745
      %v3857 = vmul.f32 1.0, %v3856
      %v3858 = vrcp.pop %v3746
      %v3859 = vmul.f32 1.0, %v3858
      %v3860 = vrcp.pop %v3747
      %v3861 = vmul.f32 1.0, %v3860
      %v3862 = vrcp.pop %v3748
      %v3863 = vmul.f32 1.0, %v3862
      %v3864 = vrcp.pop %v3749
      %v3865 = vmul.f32 1.0, %v3864
      %v3866 = vrcp.pop %v3750
      %v3867 = vmul.f32 1.0, %v3866
      %v3868 = vrcp.pop %v3751
      %v3869 = vmul.f32 1.0, %v3868
      %v3870 = vrcp.pop %v3752
      %v3871 = vmul.f32 1.0, %v3870
      %v3872 = vrcp.pop %v3753
      %v3873 = vmul.f32 1.0, %v3872
      %v3874 = vrcp.pop %v3754
      %v3875 = vmul.f32 1.0, %v3874
      %v3876 = vrcp.pop %v3755
      %v3877 = vmul.f32 1.0, %v3876
      %v3878 = vrcp.pop %v3756
      %v3879 = vmul.f32 1.0, %v3878
      %v3880 = vrcp.pop %v3757
      %v3881 = vmul.f32 1.0, %v3880
      %v3882 = vrcp.pop %v3758
      %v3883 = vmul.f32 1.0, %v3882
      %v3884 = vrcp.pop %v3759
      %v3885 = vmul.f32 1.0, %v3884
      %v3886 = vrcp.pop %v3760
      %v3887 = vmul.f32 1.0, %v3886
      %v3888 = vrcp.pop %v3761
      %v3889 = vmul.f32 1.0, %v3888
      %v3890 = vrcp.pop %v3762
      %v3891 = vmul.f32 1.0, %v3890
      %v3892 = vrcp.pop %v3763
      %v3893 = vmul.f32 1.0, %v3892
      %v3894 = vrcp.pop %v3764
      %v3895 = vmul.f32 1.0, %v3894
      %v3896 = vrcp.pop %v3765
      %v3897 = vmul.f32 1.0, %v3896
      %v3898 = vrcp.pop %v3766
      %v3899 = vmul.f32 1.0, %v3898
      %v3900 = vrcp.pop %v3767
      %v3901 = vmul.f32 1.0, %v3900
      %v3902 = vrcp.pop %v3768
      %v3903 = vmul.f32 1.0, %v3902
      %v3904 = vrcp.pop %v3769
      %v3905 = vmul.f32 1.0, %v3904
      %v3906 = vrcp.pop %v3770
      %v3907 = vmul.f32 1.0, %v3906
      %v3908 = vrcp.pop %v3771
      %v3909 = vmul.f32 1.0, %v3908
      %v3910 = vrcp.pop %v3772
      %v3911 = vmul.f32 1.0, %v3910
      %v3912 = vrcp.pop %v3773
      %v3913 = vmul.f32 1.0, %v3912
      %v3914 = vrcp.pop %v3774
      %v3915 = vmul.f32 1.0, %v3914
      %v3916 = vrcp.pop %v3775
      %v3917 = vmul.f32 1.0, %v3916
      %v3918 = vrcp.pop %v3776
      %v3919 = vmul.f32 1.0, %v3918
      %v3920 = vrcp.pop %v3777
      %v3921 = vmul.f32 1.0, %v3920
      %v3922 = vrcp.pop %v3778
      %v3923 = vmul.f32 1.0, %v3922
      %v3924 = vrcp.pop %v3779
      %v3925 = vmul.f32 1.0, %v3924
      %v3926 = vrcp.pop %v3780
      %v3927 = vmul.f32 1.0, %v3926
      %v3928 = vrcp.pop %v3781
      %v3929 = vmul.f32 1.0, %v3928
      %v3930 = vrcp.pop %v3782
      %v3931 = vmul.f32 1.0, %v3930
      %v3932 = vrcp.pop %v3783
      %v3933 = vmul.f32 1.0, %v3932
      %v3934 = vrcp.pop %v3784
      %v3935 = vmul.f32 1.0, %v3934
      %v3936 = vrcp.pop %v3785
      %v3937 = vmul.f32 1.0, %v3936
      %v3938 = vrcp.pop %v3786
      %v3939 = vmul.f32 1.0, %v3938
      %v3940 = vrcp.pop %v3787
      %v3941 = vmul.f32 1.0, %v3940
      %v3942 = vrcp.pop %v3788
      %v3943 = vmul.f32 1.0, %v3942
      %v3944 = vrcp.pop %v3789
      %v3945 = vmul.f32 1.0, %v3944
      %v3946 = vrcp.pop %v3790
      %v3947 = vmul.f32 1.0, %v3946
      %v3948 = vrcp.pop %v3791
      %v3949 = vmul.f32 1.0, %v3948
      %v3950 = vrcp.pop %v3792
      %v3951 = vmul.f32 1.0, %v3950
      %v3952 = vrcp.pop %v3793
      %v3953 = vmul.f32 1.0, %v3952
      %v3954 = vrcp.pop %v3794
      %v3955 = vmul.f32 1.0, %v3954
      %v3956 = vrcp.pop %v3795
      %v3957 = vmul.f32 1.0, %v3956
      %v3958 = vrcp.pop %v3796
      %v3959 = vmul.f32 1.0, %v3958
      %v3960 = vrcp.pop %v3797
      %v3961 = vmul.f32 1.0, %v3960
      %v3962 = vrcp.pop %v3798
      %v3963 = vmul.f32 1.0, %v3962
      %v3964 = vrcp.pop %v3799
      %v3965 = vmul.f32 1.0, %v3964
      %v3966 = vrcp.pop %v3800
      %v3967 = vmul.f32 1.0, %v3966
      %v3968 = vrcp.pop %v3801
      %v3969 = vmul.f32 1.0, %v3968
      %v3970 = vrcp.pop %v3802
      %v3971 = vmul.f32 1.0, %v3970
      %v3972 = vrcp.pop %v3803
      %v3973 = vmul.f32 1.0, %v3972
      %v3974 = vrcp.pop %v3804
      %v3975 = vmul.f32 1.0, %v3974
      %v3976 = vrcp.pop %v3805
      %v3977 = vmul.f32 1.0, %v3976
      %v3978 = vrcp.pop %v3806
      %v3979 = vmul.f32 1.0, %v3978
      %v3980 = vrcp.pop %v3807
      %v3981 = vmul.f32 1.0, %v3980
      %v3982 = vrcp.pop %v3808
      %v3983 = vmul.f32 1.0, %v3982
      %v3984 = vrcp.pop %v3809
      %v3985 = vmul.f32 1.0, %v3984
      %v3986 = vrcp.pop %v3810
      %v3987 = vmul.f32 1.0, %v3986
      %v3988 = vrcp.pop %v3811
      %v3989 = vmul.f32 1.0, %v3988
      %v3990 = vrcp.pop %v3812
      %v3991 = vmul.f32 1.0, %v3990
      %v3992 = vrcp.pop %v3813
      %v3993 = vmul.f32 1.0, %v3992
      %v3994 = vrcp.pop %v3814
      %v3995 = vmul.f32 1.0, %v3994
      %v3996 = vrcp.pop %v3815
      %v3997 = vmul.f32 1.0, %v3996
      %v3998 = vrcp.pop %v3816
      %v3999 = vmul.f32 1.0, %v3998
      %v4000 = vrcp.pop %v3817
      %v4001 = vmul.f32 1.0, %v4000
      %v4002 = vrcp.pop %v3818
      %v4003 = vmul.f32 1.0, %v4002
      %v4004 = vrcp.pop %v3819
      %v4005 = vmul.f32 1.0, %v4004
      %v4006 = vrcp.pop %v3820
      %v4007 = vmul.f32 1.0, %v4006
      %v4008 = vrcp.pop %v3821
      %v4009 = vmul.f32 1.0, %v4008
      %v4010 = vrcp.pop %v3822
      %v4011 = vmul.f32 1.0, %v4010
      %v4012 = vrcp.pop %v3823
      %v4013 = vmul.f32 1.0, %v4012
      %v4014 = vrcp.pop %v3824
      %v4015 = vmul.f32 1.0, %v4014
      %v4016 = vrcp.pop %v3825
      %v4017 = vmul.f32 1.0, %v4016
      %v4018 = vrcp.pop %v3826
      %v4019 = vmul.f32 1.0, %v4018
      %v4020 = vrcp.pop %v3827
      %v4021 = vmul.f32 1.0, %v4020
      %v4022 = vrcp.pop %v3828
      %v4023 = vmul.f32 1.0, %v4022
      %v4024 = vrcp.pop %v3829
      %v4025 = vmul.f32 1.0, %v4024
      %v4026 = vrcp.pop %v3830
      %v4027 = vmul.f32 1.0, %v4026
      %v4028 = vrcp.pop %v3831
      %v4029 = vmul.f32 1.0, %v4028
      %v4030 = vrcp.pop %v3832
      %v4031 = vmul.f32 1.0, %v4030
      %v4032 = vrcp.pop %v3833
      %v4033 = vmul.f32 1.0, %v4032
      %v4034 = vrcp.pop %v3834
      %v4035 = vmul.f32 1.0, %v4034
      %v4036 = vrcp.pop %v3835
      %v4037 = vmul.f32 1.0, %v4036
      %v4038 = vrcp.pop %v3836
      %v4039 = vmul.f32 1.0, %v4038
      %v4040 = vrcp.pop %v3837
      %v4041 = vmul.f32 1.0, %v4040
      %v4042 = vrcp.pop %v3838
      %v4043 = vmul.f32 1.0, %v4042
      %v4044 = vrcp.pop %v3839
      %v4045 = vmul.f32 1.0, %v4044
      %v4046 = vrcp.pop %v3840
      %v4047 = vmul.f32 1.0, %v4046
      %v4048 = vrcp.pop %v3841
      %v4049 = vmul.f32 1.0, %v4048
      %v4050 = vmul.f32 %v2451, %v3843
      %v4051 = vmul.f32 %v2453, %v3845
      %v4052 = vmul.f32 %v2754, %v3847
      %v4053 = vmul.f32 %v2756, %v3849
      %v4054 = vmul.f32 %v3057, %v3851
      %v4055 = vmul.f32 %v3059, %v3853
      %v4056 = vmul.f32 %v3360, %v3855
      %v4057 = vmul.f32 %v3362, %v3857
      %v4058 = vmul.f32 %v2455, %v3859
      %v4059 = vmul.f32 %v2457, %v3861
      %v4060 = vmul.f32 %v2758, %v3863
      %v4061 = vmul.f32 %v2760, %v3865
      %v4062 = vmul.f32 %v3061, %v3867
      %v4063 = vmul.f32 %v3063, %v3869
      %v4064 = vmul.f32 %v3364, %v3871
      %v4065 = vmul.f32 %v3366, %v3873
      %v4066 = vmul.f32 %v2461, %v3875
      %v4067 = vmul.f32 %v2463, %v3877
      %v4068 = vmul.f32 %v2764, %v3879
      %v4069 = vmul.f32 %v2766, %v3881
      %v4070 = vmul.f32 %v3067, %v3883
      %v4071 = vmul.f32 %v3069, %v3885
      %v4072 = vmul.f32 %v3370, %v3887
      %v4073 = vmul.f32 %v3372, %v3889
      %v4074 = vmul.f32 %v2465, %v3891
      %v4075 = vmul.f32 %v2467, %v3893
      %v4076 = vmul.f32 %v2768, %v3895
      %v4077 = vmul.f32 %v2770, %v3897
      %v4078 = vmul.f32 %v3071, %v3899
      %v4079 = vmul.f32 %v3073, %v3901
      %v4080 = vmul.f32 %v3374, %v3903
      %v4081 = vmul.f32 %v3376, %v3905
      %v4082 = vmul.f32 %v2471, %v3907
      %v4083 = vmul.f32 %v2473, %v3909
      %v4084 = vmul.f32 %v2774, %v3911
      %v4085 = vmul.f32 %v2776, %v3913
      %v4086 = vmul.f32 %v3077, %v3915
      %v4087 = vmul.f32 %v3079, %v3917
      %v4088 = vmul.f32 %v3380, %v3919
      %v4089 = vmul.f32 %v3382, %v3921
      %v4090 = vmul.f32 %v2475, %v3923
      %v4091 = vmul.f32 %v2477, %v3925
      %v4092 = vmul.f32 %v2778, %v3927
      %v4093 = vmul.f32 %v2780, %v3929
      %v4094 = vmul.f32 %v3081, %v3931
      %v4095 = vmul.f32 %v3083, %v3933
      %v4096 = vmul.f32 %v3384, %v3935
      %v4097 = vmul.f32 %v3386, %v3937
      %v4098 = vmul.f32 %v2481, %v3939
      %v4099 = vmul.f32 %v2483, %v3941
      %v4100 = vmul.f32 %v2784, %v3943
      %v4101 = vmul.f32 %v2786, %v3945
      %v4102 = vmul.f32 %v3087, %v3947
      %v4103 = vmul.f32 %v3089, %v3949
      %v4104 = vmul.f32 %v3390, %v3951
      %v4105 = vmul.f32 %v3392, %v3953
      %v4106 = vmul.f32 %v2485, %v3955
      %v4107 = vmul.f32 %v2487, %v3957
      %v4108 = vmul.f32 %v2788, %v3959
      %v4109 = vmul.f32 %v2790, %v3961
      %v4110 = vmul.f32 %v3091, %v3963
      %v4111 = vmul.f32 %v3093, %v3965
      %v4112 = vmul.f32 %v3394, %v3967
      %v4113 = vmul.f32 %v3396, %v3969
      %v4114 = vmul.f32 %v2491, %v3971
      %v4115 = vmul.f32 %v2493, %v3973
      %v4116 = vmul.f32 %v2794, %v3975
      %v4117 = vmul.f32 %v2796, %v3977
      %v4118 = vmul.f32 %v3097, %v3979
      %v4119 = vmul.f32 %v3099, %v3981
      %v4120 = vmul.f32 %v3400, %v3983
      %v4121 = vmul.f32 %v3402, %v3985
      %v4122 = vmul.f32 %v2495, %v3987
      %v4123 = vmul.f32 %v2497, %v3989
      %v4124 = vmul.f32 %v2798, %v3991
      %v4125 = vmul.f32 %v2800, %v3993
      %v4126 = vmul.f32 %v3101, %v3995
      %v4127 = vmul.f32 %v3103, %v3997
      %v4128 = vmul.f32 %v3404, %v3999
      %v4129 = vmul.f32 %v3406, %v4001
      %v4130 = vmul.f32 %v2501, %v4003
      %v4131 = vmul.f32 %v2503, %v4005
      %v4132 = vmul.f32 %v2804, %v4007
      %v4133 = vmul.f32 %v2806, %v4009
      %v4134 = vmul.f32 %v3107, %v4011
      %v4135 = vmul.f32 %v3109, %v4013
      %v4136 = vmul.f32 %v3410, %v4015
      %v4137 = vmul.f32 %v3412, %v4017
      %v4138 = vmul.f32 %v2505, %v4019
      %v4139 = vmul.f32 %v2507, %v4021
      %v4140 = vmul.f32 %v2808, %v4023
      %v4141 = vmul.f32 %v2810, %v4025
      %v4142 = vmul.f32 %v3111, %v4027
      %v4143 = vmul.f32 %v3113, %v4029
      %v4144 = vmul.f32 %v3414, %v4031
      %v4145 = vmul.f32 %v3416, %v4033
      %v4146 = vmul.f32 %v2511, %v4035
      %v4147 = vmul.f32 %v2513, %v4037
      %v4148 = vmul.f32 %v2814, %v4039
      %v4149 = vmul.f32 %v2816, %v4041
      %v4150 = vmul.f32 %v3117, %v4043
      %v4151 = vmul.f32 %v3119, %v4045
      %v4152 = vmul.f32 %v3420, %v4047
      %v4153 = vmul.f32 %v3422, %v4049
      %4154 = vst [vmem:[%s213] sm:$0xff] %v4050
      %4155 = vst [vmem:[%s213 + $0x8] sm:$0xff] %v4051
      %4156 = vst [vmem:[%s213 + $0x10] sm:$0xff] %v4052
      %4157 = vst [vmem:[%s213 + $0x18] sm:$0xff] %v4053
      %4158 = vst [vmem:[%s213 + $0x20] sm:$0xff] %v4054
      %4159 = vst [vmem:[%s213 + $0x28] sm:$0xff] %v4055
      %4160 = vst [vmem:[%s213 + $0x30] sm:$0xff] %v4056
      %4161 = vst [vmem:[%s213 + $0x38] sm:$0xff] %v4057
      %4162 = vst [vmem:[%s213 + $0x40] sm:$0xff] %v4058
      %4163 = vst [vmem:[%s213 + $0x48] sm:$0xff] %v4059
      %4164 = vst [vmem:[%s213 + $0x50] sm:$0xff] %v4060
      %4165 = vst [vmem:[%s213 + $0x58] sm:$0xff] %v4061
      %4166 = vst [vmem:[%s213 + $0x60] sm:$0xff] %v4062
      %4167 = vst [vmem:[%s213 + $0x68] sm:$0xff] %v4063
      %4168 = vst [vmem:[%s213 + $0x70] sm:$0xff] %v4064
      %4169 = vst [vmem:[%s213 + $0x78] sm:$0xff] %v4065
      %4170 = vst [vmem:[%s213 + $0x80] sm:$0xff] %v4066
      %4171 = vst [vmem:[%s213 + $0x88] sm:$0xff] %v4067
      %4172 = vst [vmem:[%s213 + $0x90] sm:$0xff] %v4068
      %4173 = vst [vmem:[%s213 + $0x98] sm:$0xff] %v4069
      %4174 = vst [vmem:[%s213 + $0xa0] sm:$0xff] %v4070
      %4175 = vst [vmem:[%s213 + $0xa8] sm:$0xff] %v4071
      %4176 = vst [vmem:[%s213 + $0xb0] sm:$0xff] %v4072
      %4177 = vst [vmem:[%s213 + $0xb8] sm:$0xff] %v4073
      %4178 = vst [vmem:[%s213 + $0xc0] sm:$0xff] %v4074
      %4179 = vst [vmem:[%s213 + $0xc8] sm:$0xff] %v4075
      %4180 = vst [vmem:[%s213 + $0xd0] sm:$0xff] %v4076
      %4181 = vst [vmem:[%s213 + $0xd8] sm:$0xff] %v4077
      %4182 = vst [vmem:[%s213 + $0xe0] sm:$0xff] %v4078
      %4183 = vst [vmem:[%s213 + $0xe8] sm:$0xff] %v4079
      %4184 = vst [vmem:[%s213 + $0xf0] sm:$0xff] %v4080
      %4185 = vst [vmem:[%s213 + $0xf8] sm:$0xff] %v4081
      %4186 = vst [vmem:[%s213 + $0x100] sm:$0xff] %v4082
      %4187 = vst [vmem:[%s213 + $0x108] sm:$0xff] %v4083
      %4188 = vst [vmem:[%s213 + $0x110] sm:$0xff] %v4084
      %4189 = vst [vmem:[%s213 + $0x118] sm:$0xff] %v4085
      %4190 = vst [vmem:[%s213 + $0x120] sm:$0xff] %v4086
      %4191 = vst [vmem:[%s213 + $0x128] sm:$0xff] %v4087
      %4192 = vst [vmem:[%s213 + $0x130] sm:$0xff] %v4088
      %4193 = vst [vmem:[%s213 + $0x138] sm:$0xff] %v4089
      %4194 = vst [vmem:[%s213 + $0x140] sm:$0xff] %v4090
      %4195 = vst [vmem:[%s213 + $0x148] sm:$0xff] %v4091
      %4196 = vst [vmem:[%s213 + $0x150] sm:$0xff] %v4092
      %4197 = vst [vmem:[%s213 + $0x158] sm:$0xff] %v4093
      %4198 = vst [vmem:[%s213 + $0x160] sm:$0xff] %v4094
      %4199 = vst [vmem:[%s213 + $0x168] sm:$0xff] %v4095
      %4200 = vst [vmem:[%s213 + $0x170] sm:$0xff] %v4096
      %4201 = vst [vmem:[%s213 + $0x178] sm:$0xff] %v4097
      %4202 = vst [vmem:[%s213 + $0x180] sm:$0xff] %v4098
      %4203 = vst [vmem:[%s213 + $0x188] sm:$0xff] %v4099
      %4204 = vst [vmem:[%s213 + $0x190] sm:$0xff] %v4100
      %4205 = vst [vmem:[%s213 + $0x198] sm:$0xff] %v4101
      %4206 = vst [vmem:[%s213 + $0x1a0] sm:$0xff] %v4102
      %4207 = vst [vmem:[%s213 + $0x1a8] sm:$0xff] %v4103
      %4208 = vst [vmem:[%s213 + $0x1b0] sm:$0xff] %v4104
      %4209 = vst [vmem:[%s213 + $0x1b8] sm:$0xff] %v4105
      %4210 = vst [vmem:[%s213 + $0x1c0] sm:$0xff] %v4106
      %4211 = vst [vmem:[%s213 + $0x1c8] sm:$0xff] %v4107
      %4212 = vst [vmem:[%s213 + $0x1d0] sm:$0xff] %v4108
      %4213 = vst [vmem:[%s213 + $0x1d8] sm:$0xff] %v4109
      %4214 = vst [vmem:[%s213 + $0x1e0] sm:$0xff] %v4110
      %4215 = vst [vmem:[%s213 + $0x1e8] sm:$0xff] %v4111
      %4216 = vst [vmem:[%s213 + $0x1f0] sm:$0xff] %v4112
      %4217 = vst [vmem:[%s213 + $0x1f8] sm:$0xff] %v4113
      %4218 = vst [vmem:[%s213 + $0x200] sm:$0xff] %v4114
      %4219 = vst [vmem:[%s213 + $0x208] sm:$0xff] %v4115
      %4220 = vst [vmem:[%s213 + $0x210] sm:$0xff] %v4116
      %4221 = vst [vmem:[%s213 + $0x218] sm:$0xff] %v4117
      %4222 = vst [vmem:[%s213 + $0x220] sm:$0xff] %v4118
      %4223 = vst [vmem:[%s213 + $0x228] sm:$0xff] %v4119
      %4224 = vst [vmem:[%s213 + $0x230] sm:$0xff] %v4120
      %4225 = vst [vmem:[%s213 + $0x238] sm:$0xff] %v4121
      %4226 = vst [vmem:[%s213 + $0x240] sm:$0xff] %v4122
      %4227 = vst [vmem:[%s213 + $0x248] sm:$0xff] %v4123
      %4228 = vst [vmem:[%s213 + $0x250] sm:$0xff] %v4124
      %4229 = vst [vmem:[%s213 + $0x258] sm:$0xff] %v4125
      %4230 = vst [vmem:[%s213 + $0x260] sm:$0xff] %v4126
      %4231 = vst [vmem:[%s213 + $0x268] sm:$0xff] %v4127
      %4232 = vst [vmem:[%s213 + $0x270] sm:$0xff] %v4128
      %4233 = vst [vmem:[%s213 + $0x278] sm:$0xff] %v4129
      %4234 = vst [vmem:[%s213 + $0x280] sm:$0xff] %v4130
      %4235 = vst [vmem:[%s213 + $0x288] sm:$0xff] %v4131
      %4236 = vst [vmem:[%s213 + $0x290] sm:$0xff] %v4132
      %4237 = vst [vmem:[%s213 + $0x298] sm:$0xff] %v4133
      %4238 = vst [vmem:[%s213 + $0x2a0] sm:$0xff] %v4134
      %4239 = vst [vmem:[%s213 + $0x2a8] sm:$0xff] %v4135
      %4240 = vst [vmem:[%s213 + $0x2b0] sm:$0xff] %v4136
      %4241 = vst [vmem:[%s213 + $0x2b8] sm:$0xff] %v4137
      %4242 = vst [vmem:[%s213 + $0x2c0] sm:$0xff] %v4138
      %4243 = vst [vmem:[%s213 + $0x2c8] sm:$0xff] %v4139
      %4244 = vst [vmem:[%s213 + $0x2d0] sm:$0xff] %v4140
      %4245 = vst [vmem:[%s213 + $0x2d8] sm:$0xff] %v4141
      %4246 = vst [vmem:[%s213 + $0x2e0] sm:$0xff] %v4142
      %4247 = vst [vmem:[%s213 + $0x2e8] sm:$0xff] %v4143
      %4248 = vst [vmem:[%s213 + $0x2f0] sm:$0xff] %v4144
      %4249 = vst [vmem:[%s213 + $0x2f8] sm:$0xff] %v4145
      %4250 = vst [vmem:[%s213 + $0x300] sm:$0xff] %v4146
      %4251 = vst [vmem:[%s213 + $0x308] sm:$0xff] %v4147
      %4252 = vst [vmem:[%s213 + $0x310] sm:$0xff] %v4148
      %4253 = vst [vmem:[%s213 + $0x318] sm:$0xff] %v4149
      %4254 = vst [vmem:[%s213 + $0x320] sm:$0xff] %v4150
      %4255 = vst [vmem:[%s213 + $0x328] sm:$0xff] %v4151
      %4256 = vst [vmem:[%s213 + $0x330] sm:$0xff] %v4152
      %4257 = vst [vmem:[%s213 + $0x338] sm:$0xff] %v4153
      %s4258 = smul.u32 13, %s19
      %p4259 = scmp.lt.s32.totalorder %s18, 1
      %s4260 = scalar_select %p4259, %s18, 1
      %p4261 = scmp.lt.s32.totalorder %s4258, 12
      %s4262 = scalar_select %p4261, %s4258, 12
      %s4263 = smul.addr %s4262, 8
      %s4264 = smul.addr %s4260, 104
      %s4265 = sadd.s32 %s4263, %s4264
      %s4266 = smul.addr %s4265, 8
      %s4267 = scalar_lea.vmem %s3, %s4266
      // Predicated region
      $region33: #{conv_transpose_silu.1} parent=31 // pred_check
        %p4268 = pneg %p116
      $region34: #{conv_transpose_silu.1} parent=31 // pred_check_branch
        %4270 = sbr.rel (%p4268) target = $region36
      $region35: #{conv_transpose_silu.1} parent=31 // pred_region
        %s4271 = smul.u32 13, %s19
      $region36: #{conv_transpose_silu.1} parent=31 // pred_fallthru
        _
    $region32: #{conv_transpose_silu.1} parent=5 // pred_fallthru
      _
    %p4272 = scmp.le.s32.totalorder 2, %s9
    // Predicated region
    $region37: #{conv_transpose_silu.1} parent=5 // pred_check
      %p4273 = pneg %p4272
    $region38: #{conv_transpose_silu.1} parent=5 // pred_check_branch
      %4275 = sbr.rel (%p4273) target = $region40
    $region39: #{conv_transpose_silu.1} parent=5 // pred_region
      %s4276 = ssub.s32 %s9, 2
      // Predicated region
      $region41: #{conv_transpose_silu.1} parent=39 // pred_check
        %p4277 = pneg %p122
      $region42: #{conv_transpose_silu.1} parent=39 // pred_check_branch
        %4279 = sbr.rel (%p4277) target = $region44
      $region43: #{conv_transpose_silu.1} parent=39 // pred_region
        %s4280 = smul.u32 13, %s21
        %p4281 = scmp.lt.s32.totalorder %s20, 1
        %s4282 = scalar_select %p4281, %s20, 1
        %p4283 = scmp.lt.s32.totalorder %s4280, 12
        %s4284 = scalar_select %p4283, %s4280, 12
        %s4285 = smul.addr %s4284, 8
        %s4286 = smul.addr %s4282, 104
        %s4287 = sadd.s32 %s4285, %s4286
        %s4288 = smul.addr %s4287, 8
        %s4289 = scalar_lea.vmem %s3, %s4288
      $region44: #{conv_transpose_silu.1} parent=39 // pred_fallthru
        _
    $region40: #{conv_transpose_silu.1} parent=5 // pred_fallthru
      _
  $region6: #{conv_transpose_silu.1} parent=0 // loop_footer
    %s13 = sadd.s32 1, %s9
  $region7: #{conv_transpose_silu.1} parent=0 // loop_footer_branch
    %8 = sbr.rel target = $region3
  $region8: #{conv_transpose_silu.1} parent=0 // loop_exit
    _

</llo_original>
